<compile_context>
chip_gen: v5e
topology: v5e:2x2
jax: 0.10.0
libtpu: 0.0.40
codegen_flags: <defaults>
</compile_context>

<pallas_src>
import functools

import jax
import jax.numpy as jnp
from jax.experimental import pallas as pl
from jax.experimental.pallas import tpu as pltpu


def _vq_forward_kernel(m_valid_ref, x_ref, w_in_ref, b_in_ref, cb_ref, cb_sq_ref,
                       w_out_ref, b_out_ref, dec_ref, loss_ref, *,
                       tile_k, num_k_chunks):
    f32 = jnp.float32
    bf16 = jnp.bfloat16

    x = x_ref[...]                                                   # (TM, Dp) bf16

    # TODO(synk): the real encoder/decoder are hydra-instantiated sub-modules of
    # unknown architecture; here they are synthetic 1x1-conv (per-timestep linear)
    # layers, pre-folded with quant_conv / post_quant_conv in the wrapper.
    # fused encoder + quant_conv: (TM, Dp) -> (TM, Ep)
    h = jnp.dot(x, w_in_ref[...], preferred_element_type=f32) + b_in_ref[...]
    h_bf = h.astype(bf16)

    tm, e_pad = h.shape
    # built once per tile; reused by every K-chunk (no per-iteration re-broadcast)
    iota_k = jax.lax.broadcasted_iota(jnp.int32, (tm, tile_k), 1)

    # --- VQ bottleneck (BottleneckBlock): K-chunked online nearest-neighbor ---
    def chunk_body(kc, carry):
        d_best, quant = carry
        off = pl.multiple_of(kc * tile_k, tile_k)
        cb_c = cb_ref[pl.ds(off, tile_k), :]                         # (TK, Ep) bf16
        sq_c = cb_sq_ref[:, pl.ds(off, tile_k)]                      # (1, TK)  f32
        # distances up to a constant-in-k term:  ||cb||^2 - 2 * h . cb^T
        d = sq_c - 2.0 * jax.lax.dot_general(
            h_bf, cb_c, (((1,), (1,)), ((), ())), preferred_element_type=f32)
        d_min_c = jnp.min(d, axis=-1, keepdims=True)                 # (TM, 1)
        # in-chunk argmin with tie-break to the lowest index (min/where only)
        idx_c = jnp.min(jnp.where(d <= d_min_c, iota_k, tile_k),
                        axis=-1, keepdims=True)
        onehot = (iota_k == idx_c).astype(bf16)                      # exact 0/1
        quant_c = jnp.dot(onehot, cb_c, preferred_element_type=f32)  # (TM, Ep)
        take = d_min_c < d_best            # strict '<': earlier chunk wins ties
        d_best = jnp.where(take, d_min_c, d_best)
        quant = jnp.where(take, quant_c, quant)
        return d_best, quant

    d0 = jnp.full((tm, 1), jnp.inf, f32)
    q0 = jnp.zeros((tm, e_pad), f32)
    _, quant = jax.lax.fori_loop(0, num_k_chunks, chunk_body, (d0, q0),
                                 unroll=(num_k_chunks <= 8))

    # codebook loss: per-tile partial sum of squared residuals over valid rows.
    # TODO(synk): EMA codebook update (decay=0.99) and the beta/commitment weighting
    # of BottleneckBlock are training-time details; forward value here is
    # mean((h - quant)^2) (the mean is taken in the wrapper).
    row = jax.lax.broadcasted_iota(jnp.int32, (tm, 1), 0) + pl.program_id(0) * tm
    valid = (row < m_valid_ref[0]).astype(f32)
    resid = (h - quant) * valid
    loss_ref[0, 0] = jnp.sum(resid * resid)

    # straight-through estimator is a value no-op: quant flows forward as-is.
    # fused post_quant_conv + decoder: (TM, Ep) -> (TM, Dp)
    dec = jnp.dot(quant.astype(bf16), w_out_ref[...],
                  preferred_element_type=f32) + b_out_ref[...]
    dec_ref[...] = dec.astype(dec_ref.dtype)


def _round_up(n, m):
    return (n + m - 1) // m * m


def _vmem_limit_bytes(tile_m, d_pad, e_pad, k_pad, tile_k):
    io = 2 * tile_m * d_pad * (2 + 4)                 # double-buffered x(bf16)+dec(f32)
    weights = 2 * (d_pad * e_pad * 2 + e_pad * 4
                   + k_pad * e_pad * 2 + k_pad * 4
                   + e_pad * d_pad * 2 + d_pad * 4)
    interm = (tile_m * e_pad * 4 * 3                  # h / quant / resid
              + tile_m * tile_k * 4 * 3               # d / iota / onehot-ish
              + tile_m * d_pad * 4)                   # dec f32 before store
    est = io + weights + interm
    return int(min(max(2 * est, 32 * 1024 * 1024), 100 * 1024 * 1024))


def make_params(key, pose_dim, z_ch, embed_dim, n_embed):
    """Deterministic synthetic parameters (PyTorch-like uniform +-1/sqrt(fan_in))."""
    ks = jax.random.split(key, 9)

    def u(k, shape, fan_in):
        bound = 1.0 / float(fan_in) ** 0.5
        return jax.random.uniform(k, shape, jnp.float32, -bound, bound)

    return dict(
        w_enc=u(ks[0], (pose_dim, z_ch), pose_dim),
        b_enc=u(ks[1], (1, z_ch), pose_dim),
        w_qc=u(ks[2], (z_ch, embed_dim), z_ch),
        b_qc=u(ks[3], (1, embed_dim), z_ch),
        codebook=jax.random.normal(ks[4], (n_embed, embed_dim), jnp.float32),
        w_pqc=u(ks[5], (embed_dim, z_ch), embed_dim),
        b_pqc=u(ks[6], (1, z_ch), embed_dim),
        w_dec=u(ks[7], (z_ch, pose_dim), z_ch),
        b_dec=u(ks[8], (1, pose_dim), z_ch),
    )


def vq_model_forward(poses, params, *, tile_m=512):
    """poses: (B, T, pose_dim) float32 (channel-last; see layout comment above)."""
    f32, bf16 = jnp.float32, jnp.bfloat16
    B, T, D = poses.shape
    cb = params["codebook"].astype(f32)
    K, E = cb.shape
    M = B * T

    # Fold the 1x1-conv pairs into single linears (valid while encoder/decoder are
    # linear placeholders).
    # TODO(synk): drop this folding if real nonlinear encoder/decoder sub-modules land.
    w_in_f = params["w_enc"] @ params["w_qc"]                                   # (D, E)
    b_in_f = params["b_enc"] @ params["w_qc"] + params["b_qc"]                  # (1, E)
    w_out_f = params["w_pqc"] @ params["w_dec"]                                 # (E, D)
    b_out_f = params["b_pqc"] @ params["w_dec"] + params["b_dec"]               # (1, D)

    # Lane-dense padding: D/E/K -> multiples of 128; M -> multiple of TILE_M.
    d_pad = _round_up(D, 128)
    e_pad = _round_up(E, 128)
    k_base = _round_up(K, 128)
    if k_base > 2048:
        tile_k = 2048
        k_pad = _round_up(K, tile_k)
    else:
        tile_k = k_base
        k_pad = k_base
    num_k_chunks = k_pad // tile_k

    m_pad = _round_up(max(M, 1), tile_m)
    grid_m = m_pad // tile_m

    big = jnp.asarray(3.0e38, f32)   # padded codebook rows: never argmin-selected
    w_in = jnp.zeros((d_pad, e_pad), bf16).at[:D, :E].set(w_in_f.astype(bf16))
    b_in = jnp.zeros((1, e_pad), f32).at[:, :E].set(b_in_f.astype(f32))
    cb_p = jnp.zeros((k_pad, e_pad), bf16).at[:K, :E].set(cb.astype(bf16))
    cb_sq = jnp.full((1, k_pad), big, f32).at[:, :K].set(
        jnp.sum(cb * cb, axis=-1)[None, :])
    w_out = jnp.zeros((e_pad, d_pad), bf16).at[:E, :D].set(w_out_f.astype(bf16))
    b_out = jnp.zeros((1, d_pad), f32).at[:, :D].set(b_out_f.astype(f32))

    x2d = jnp.zeros((m_pad, d_pad), bf16).at[:M, :D].set(
        poses.reshape(M, D).astype(bf16))
    m_valid = jnp.array([M], jnp.int32)

    kernel = functools.partial(_vq_forward_kernel,
                               tile_k=tile_k, num_k_chunks=num_k_chunks)

    dec2d_pad, loss_parts = pl.pallas_call(
        kernel,
        grid=(grid_m,),
        in_specs=[
            pl.BlockSpec(memory_space=pltpu.MemorySpace.SMEM),        # m_valid
            pl.BlockSpec((tile_m, d_pad), lambda i: (i, 0)),          # x tile
            pl.BlockSpec((d_pad, e_pad), lambda i: (0, 0)),           # w_in
            pl.BlockSpec((1, e_pad), lambda i: (0, 0)),               # b_in
            pl.BlockSpec((k_pad, e_pad), lambda i: (0, 0)),           # codebook
            pl.BlockSpec((1, k_pad), lambda i: (0, 0)),               # ||cb||^2
            pl.BlockSpec((e_pad, d_pad), lambda i: (0, 0)),           # w_out
            pl.BlockSpec((1, d_pad), lambda i: (0, 0)),               # b_out
        ],
        out_specs=(
            pl.BlockSpec((tile_m, d_pad), lambda i: (i, 0)),          # dec tile
            pl.BlockSpec((1, 1), lambda i: (i, 0),
                         memory_space=pltpu.MemorySpace.SMEM),        # per-tile loss
        ),
        out_shape=(
            jax.ShapeDtypeStruct((m_pad, d_pad), jnp.float32),
            jax.ShapeDtypeStruct((grid_m, 1), jnp.float32),
        ),
        compiler_params=pltpu.CompilerParams(
            dimension_semantics=("parallel",),
            vmem_limit_bytes=_vmem_limit_bytes(tile_m, d_pad, e_pad, k_pad, tile_k),
        ),
    )(m_valid, x2d, w_in, b_in, cb_p, cb_sq, w_out, b_out)

    codebook_loss = jnp.sum(loss_parts) / (M * E)   # mean((h - quant)^2)
    dec = dec2d_pad[:M, :D].reshape(B, T, D)
    # TODO(synk): reference applies .double(); f64 is not native on TPU, so the output
    # stays float32 here (cast on host if a consumer truly needs f64).
    # TODO(synk): transforms.Datastruct is a project-specific wrapper; raw arrays returned.
    return {"pred_data": dec, "codebook_loss": codebook_loss, "gt_data": poses}


if __name__ == "__main__":
    B, T, POSE_DIM = 2, 16, 8
    Z_CH, EMBED_DIM, N_EMBED = 16, 16, 32

    key = jax.random.PRNGKey(0)
    k_x, k_p = jax.random.split(key)
    poses = jax.random.normal(k_x, (B, T, POSE_DIM), jnp.float32)
    params = make_params(k_p, POSE_DIM, Z_CH, EMBED_DIM, N_EMBED)

    out = vq_model_forward(poses, params)
    jax.block_until_ready(out["pred_data"])
    jax.block_until_ready(out["codebook_loss"])

    assert out["pred_data"].shape == (B, T, POSE_DIM)
    assert out["codebook_loss"].shape == ()
    assert bool(jnp.all(jnp.isfinite(out["pred_data"])))
    assert bool(jnp.isfinite(out["codebook_loss"]))
    print("KERNEL_OK")
</pallas_src>

<mosaic_0001>
module attributes {stable_mosaic.version = 11 : i64} {
  func.func @_vq_forward_kernel(%arg0: i32, %arg1: memref<1xi32, #tpu.memory_space<smem>>, %arg2: memref<512x128xbf16, #tpu.memory_space<vmem>>, %arg3: memref<128x128xbf16, #tpu.memory_space<vmem>>, %arg4: memref<1x128xf32, #tpu.memory_space<vmem>>, %arg5: memref<128x128xbf16, #tpu.memory_space<vmem>>, %arg6: memref<1x128xf32, #tpu.memory_space<vmem>>, %arg7: memref<128x128xbf16, #tpu.memory_space<vmem>>, %arg8: memref<1x128xf32, #tpu.memory_space<vmem>>, %arg9: memref<512x128xf32, #tpu.memory_space<vmem>>, %arg10: memref<1x1xf32, #tpu.memory_space<smem>>) attributes {dimension_semantics = [#tpu.dimension_semantics<parallel>], iteration_bounds = array<i64: 1>, scalar_prefetch = 0 : i64, scratch_operands = 0 : i64, tpu.core_type = #tpu.core_type<tc>, window_params = [{transform_indices = @transform_0, window_bounds = array<i64: 1>}, {transform_indices = @transform_1, window_bounds = array<i64: 512, 128>}, {pipeline_mode = #tpu.pipeline_mode<synchronous>, transform_indices = @transform_2, window_bounds = array<i64: 128, 128>}, {pipeline_mode = #tpu.pipeline_mode<synchronous>, transform_indices = @transform_3, window_bounds = array<i64: 1, 128>}, {pipeline_mode = #tpu.pipeline_mode<synchronous>, transform_indices = @transform_4, window_bounds = array<i64: 128, 128>}, {pipeline_mode = #tpu.pipeline_mode<synchronous>, transform_indices = @transform_5, window_bounds = array<i64: 1, 128>}, {pipeline_mode = #tpu.pipeline_mode<synchronous>, transform_indices = @transform_6, window_bounds = array<i64: 128, 128>}, {pipeline_mode = #tpu.pipeline_mode<synchronous>, transform_indices = @transform_7, window_bounds = array<i64: 1, 128>}, {transform_indices = @transform_8, window_bounds = array<i64: 512, 128>}, {transform_indices = @transform_9, window_bounds = array<i64: 1, 1>}]} {
    %c0 = arith.constant 0 : index
    %c0_0 = arith.constant 0 : index
    %0 = vector.load %arg2[%c0, %c0_0] : memref<512x128xbf16, #tpu.memory_space<vmem>>, vector<512x128xbf16>
    %c0_1 = arith.constant 0 : index
    %c0_2 = arith.constant 0 : index
    %1 = vector.load %arg3[%c0_1, %c0_2] : memref<128x128xbf16, #tpu.memory_space<vmem>>, vector<128x128xbf16>
    %cst = arith.constant dense<0.000000e+00> : vector<512x128xf32>
    %2 = tpu.matmul %0, %1, %cst {dimension_numbers = #tpu.dot_dimension_numbers<[1], [0], [0], [1], [0, 0, 1, 1], [], []>} : vector<512x128xbf16>, vector<128x128xbf16>, vector<512x128xf32> -> vector<512x128xf32>
    %c0_3 = arith.constant 0 : index
    %c0_4 = arith.constant 0 : index
    %3 = vector.load %arg4[%c0_3, %c0_4] : memref<1x128xf32, #tpu.memory_space<vmem>>, vector<1x128xf32>
    %4 = vector.broadcast %3 : vector<1x128xf32> to vector<512x128xf32>
    %5 = arith.addf %2, %4 : vector<512x128xf32>
    %6 = arith.truncf %5 : vector<512x128xf32> to vector<512x128xbf16>
    %7 = tpu.iota {dimensions = array<i32: 1>} : vector<512x128xi32>
    %cst_5 = arith.constant 0x7F800000 : f32
    %8 = vector.broadcast %cst_5 : f32 to vector<512x1xf32>
    %cst_6 = arith.constant 0.000000e+00 : f32
    %9 = vector.broadcast %cst_6 : f32 to vector<512x128xf32>
    %c0_i32 = arith.constant 0 : i32
    %c128_i32 = arith.constant 128 : i32
    %10 = arith.muli %c0_i32, %c128_i32 : i32
    %11 = tpu.assume_multiple %10, 128 : i32
    %12 = arith.index_cast %11 : i32 to index
    %c0_7 = arith.constant 0 : index
    %13 = vector.load %arg5[%12, %c0_7] : memref<128x128xbf16, #tpu.memory_space<vmem>>, vector<128x128xbf16>
    %c0_8 = arith.constant 0 : index
    %14 = arith.index_cast %11 : i32 to index
    %15 = vector.load %arg6[%c0_8, %14] : memref<1x128xf32, #tpu.memory_space<vmem>>, vector<1x128xf32>
    %cst_9 = arith.constant dense<0.000000e+00> : vector<512x128xf32>
    %16 = tpu.matmul %6, %13, %cst_9 {dimension_numbers = #tpu.dot_dimension_numbers<[1], [1], [0], [0], [0, 0, 1, 0], [], []>} : vector<512x128xbf16>, vector<128x128xbf16>, vector<512x128xf32> -> vector<512x128xf32>
    %cst_10 = arith.constant 2.000000e+00 : f32
    %17 = vector.broadcast %cst_10 : f32 to vector<512x128xf32>
    %18 = arith.mulf %17, %16 : vector<512x128xf32>
    %19 = vector.broadcast %15 : vector<1x128xf32> to vector<512x128xf32>
    %20 = arith.subf %19, %18 : vector<512x128xf32>
    %cst_11 = arith.constant dense<0x7F800000> : vector<512xf32>
    %21 = vector.multi_reduction <minimumf>, %20, %cst_11 [1] : vector<512x128xf32> to vector<512xf32>
    %22 = vector.shape_cast %21 : vector<512xf32> to vector<512x1xf32>
    %23 = vector.broadcast %22 : vector<512x1xf32> to vector<512x128xf32>
    %24 = arith.cmpf ole, %20, %23 : vector<512x128xf32>
    %c128_i32_12 = arith.constant 128 : i32
    %25 = vector.broadcast %c128_i32_12 : i32 to vector<512x128xi32>
    %26 = arith.select %24, %7, %25 : vector<512x128xi1>, vector<512x128xi32>
    %cst_13 = arith.constant dense<2147483647> : vector<512xi32>
    %27 = vector.multi_reduction <minsi>, %26, %cst_13 [1] : vector<512x128xi32> to vector<512xi32>
    %28 = vector.shape_cast %27 : vector<512xi32> to vector<512x1xi32>
    %29 = vector.broadcast %28 : vector<512x1xi32> to vector<512x128xi32>
    %30 = arith.cmpi eq, %7, %29 : vector<512x128xi32>
    %31 = arith.extui %30 : vector<512x128xi1> to vector<512x128xi32>
    %32 = arith.sitofp %31 : vector<512x128xi32> to vector<512x128xf32>
    %33 = arith.truncf %32 : vector<512x128xf32> to vector<512x128xbf16>
    %cst_14 = arith.constant dense<0.000000e+00> : vector<512x128xf32>
    %34 = tpu.matmul %33, %13, %cst_14 {dimension_numbers = #tpu.dot_dimension_numbers<[1], [0], [0], [1], [0, 0, 1, 1], [], []>} : vector<512x128xbf16>, vector<128x128xbf16>, vector<512x128xf32> -> vector<512x128xf32>
    %35 = arith.cmpf olt, %22, %8 : vector<512x1xf32>
    %36 = arith.select %35, %22, %8 : vector<512x1xi1>, vector<512x1xf32>
    %37 = vector.shape_cast %35 : vector<512x1xi1> to vector<512x1xi1>
    %38 = vector.broadcast %37 : vector<512x1xi1> to vector<512x128xi1>
    %39 = arith.select %38, %34, %9 : vector<512x128xi1>, vector<512x128xf32>
    %c1_i32 = arith.constant 1 : i32
    %40 = tpu.iota {dimensions = array<i32: 0>} : vector<512x1xi32>
    %c512_i32 = arith.constant 512 : i32
    %41 = arith.muli %arg0, %c512_i32 : i32
    %42 = vector.broadcast %41 : i32 to vector<512x1xi32>
    %43 = arith.addi %40, %42 : vector<512x1xi32>
    %c0_15 = arith.constant 0 : index
    %44 = memref.load %arg1[%c0_15] : memref<1xi32, #tpu.memory_space<smem>>
    %45 = vector.broadcast %44 : i32 to vector<512x1xi32>
    %46 = arith.cmpi slt, %43, %45 : vector<512x1xi32>
    %47 = arith.extui %46 : vector<512x1xi1> to vector<512x1xi32>
    %48 = arith.sitofp %47 : vector<512x1xi32> to vector<512x1xf32>
    %49 = arith.subf %5, %39 : vector<512x128xf32>
    %50 = vector.broadcast %48 : vector<512x1xf32> to vector<512x128xf32>
    %51 = arith.mulf %49, %50 : vector<512x128xf32>
    %52 = arith.mulf %51, %51 : vector<512x128xf32>
    %53 = vector.shape_cast %52 : vector<512x128xf32> to vector<1x512x128xf32>
    %cst_16 = arith.constant dense<0.000000e+00> : vector<1xf32>
    %54 = vector.multi_reduction <add>, %53, %cst_16 [1, 2] : vector<1x512x128xf32> to vector<1xf32>
    %55 = vector.shape_cast %54 : vector<1xf32> to vector<1x1x1xf32>
    %56 = vector.extract %55[0, 0, 0] : f32 from vector<1x1x1xf32>
    %c0_17 = arith.constant 0 : index
    %c0_18 = arith.constant 0 : index
    %57 = memref.load %arg10[%c0_17, %c0_18] : memref<1x1xf32, #tpu.memory_space<smem>>
    memref.store %56, %arg10[%c0_17, %c0_18] : memref<1x1xf32, #tpu.memory_space<smem>>
    %58 = arith.truncf %39 : vector<512x128xf32> to vector<512x128xbf16>
    %c0_19 = arith.constant 0 : index
    %c0_20 = arith.constant 0 : index
    %59 = vector.load %arg7[%c0_19, %c0_20] : memref<128x128xbf16, #tpu.memory_space<vmem>>, vector<128x128xbf16>
    %cst_21 = arith.constant dense<0.000000e+00> : vector<512x128xf32>
    %60 = tpu.matmul %58, %59, %cst_21 {dimension_numbers = #tpu.dot_dimension_numbers<[1], [0], [0], [1], [0, 0, 1, 1], [], []>} : vector<512x128xbf16>, vector<128x128xbf16>, vector<512x128xf32> -> vector<512x128xf32>
    %c0_22 = arith.constant 0 : index
    %c0_23 = arith.constant 0 : index
    %61 = vector.load %arg8[%c0_22, %c0_23] : memref<1x128xf32, #tpu.memory_space<vmem>>, vector<1x128xf32>
    %62 = vector.broadcast %61 : vector<1x128xf32> to vector<512x128xf32>
    %63 = arith.addf %60, %62 : vector<512x128xf32>
    %c0_24 = arith.constant 0 : index
    %c0_25 = arith.constant 0 : index
    %64 = vector.load %arg9[%c0_24, %c0_25] : memref<512x128xf32, #tpu.memory_space<vmem>>, vector<512x128xf32>
    tpu.vector_store %arg9[%c0_24, %c0_25], %63 {strides = array<i32>} : memref<512x128xf32, #tpu.memory_space<vmem>>, vector<512x128xf32>,
    return
  }
  func.func @transform_0(%arg0: i32) -> i32 {
    %c0_i32 = arith.constant 0 : i32
    %c0_i32_0 = arith.constant 0 : i32
    return %c0_i32 : i32
  }
  func.func @transform_1(%arg0: i32) -> (i32, i32) {
    %c0_i32 = arith.constant 0 : i32
    %c0_i32_0 = arith.constant 0 : i32
    return %arg0, %c0_i32 : i32, i32
  }
  func.func @transform_2(%arg0: i32) -> (i32, i32) {
    %c0_i32 = arith.constant 0 : i32
    %c0_i32_0 = arith.constant 0 : i32
    %c0_i32_1 = arith.constant 0 : i32
    return %c0_i32, %c0_i32_0 : i32, i32
  }
  func.func @transform_3(%arg0: i32) -> (i32, i32) {
    %c0_i32 = arith.constant 0 : i32
    %c0_i32_0 = arith.constant 0 : i32
    %c0_i32_1 = arith.constant 0 : i32
    return %c0_i32, %c0_i32_0 : i32, i32
  }
  func.func @transform_4(%arg0: i32) -> (i32, i32) {
    %c0_i32 = arith.constant 0 : i32
    %c0_i32_0 = arith.constant 0 : i32
    %c0_i32_1 = arith.constant 0 : i32
    return %c0_i32, %c0_i32_0 : i32, i32
  }
  func.func @transform_5(%arg0: i32) -> (i32, i32) {
    %c0_i32 = arith.constant 0 : i32
    %c0_i32_0 = arith.constant 0 : i32
    %c0_i32_1 = arith.constant 0 : i32
    return %c0_i32, %c0_i32_0 : i32, i32
  }
  func.func @transform_6(%arg0: i32) -> (i32, i32) {
    %c0_i32 = arith.constant 0 : i32
    %c0_i32_0 = arith.constant 0 : i32
    %c0_i32_1 = arith.constant 0 : i32
    return %c0_i32, %c0_i32_0 : i32, i32
  }
  func.func @transform_7(%arg0: i32) -> (i32, i32) {
    %c0_i32 = arith.constant 0 : i32
    %c0_i32_0 = arith.constant 0 : i32
    %c0_i32_1 = arith.constant 0 : i32
    return %c0_i32, %c0_i32_0 : i32, i32
  }
  func.func @transform_8(%arg0: i32) -> (i32, i32) {
    %c0_i32 = arith.constant 0 : i32
    %c0_i32_0 = arith.constant 0 : i32
    return %arg0, %c0_i32 : i32, i32
  }
  func.func @transform_9(%arg0: i32) -> (i32, i32) {
    %c0_i32 = arith.constant 0 : i32
    %c0_i32_0 = arith.constant 0 : i32
    return %arg0, %c0_i32 : i32, i32
  }
}

</mosaic_0001>

<llo_original>
// kernel: tpu_custom_call.1
$region0: #{tpu_custom_call.1}
  #allocation0 [shape = 'u32[]', space=smem, size = 0x4, offset = 0x4, fixed_abs, tag = 'smem constant byte address 0x4 - core index']
  #allocation1 [shape = 'u32[72,128]{1,0:T(1,128)}', space=vmem, size = 0x9000, scoped, tag = 'internal scratch']
  #allocation2 [shape = 's32[1]{0:T(128)S(6)}', space=smem, size = 0x200, scoped, tag = 'scoped memory for tpu_custom_call.1']
  %s0 = inlined_call_operand.<no memory space> [shape: s32[1], index: 0, kind: input, shape index: {}]
  %s1 = inlined_call_operand.hbm [shape: bf16[512,128], index: 1, kind: input, shape index: {}]
  %s2 = inlined_call_operand.hbm [shape: bf16[128,128], index: 2, kind: input, shape index: {}]
  %s3 = inlined_call_operand.vmem [shape: f32[1,128], index: 3, kind: input, shape index: {}]
  %s4 = inlined_call_operand.hbm [shape: bf16[128,128], index: 4, kind: input, shape index: {}]
  %s5 = inlined_call_operand.vmem [shape: f32[1,128], index: 5, kind: input, shape index: {}]
  %s6 = inlined_call_operand.hbm [shape: bf16[128,128], index: 6, kind: input, shape index: {}]
  %s7 = inlined_call_operand.vmem [shape: f32[1,128], index: 7, kind: input, shape index: {}]
  %s8 = inlined_call_operand.hbm [shape: f32[512,128], index: 8, kind: output, shape index: {0}]
  %s9 = inlined_call_operand.hbm [shape: f32[1,1], index: 9, kind: output, shape index: {1}]
  %10 = xla_tuple %s8, %s9
  %s11 = sld [smem:[#allocation0]]
  $region66: #{tpu_custom_call.1} parent=0
    _
  %s13 = ssub.s32 1, %s11
  %s14 = scalar_select 0, %s13, %s11
  %15 = sst [smem:[#allocation2]] %s0
  $region1: #{tpu_custom_call.1} parent=0
    #allocation3 [shape = 'u8[131072]{0}', space=vmem, size = 0x20000, scoped, tag = 'input window, operand 1, single buffered']
    #allocation4 [shape = 's32[1]{0}', space=sflag, size = 0x4, scoped, tag = 'scoped memory for tpu_custom_call.1']
    #allocation5 [shape = 's32[1]{0}', space=sflag, size = 0x4, scoped, tag = 'scoped memory for tpu_custom_call.1']
    #allocation6 [shape = 's32[1]{0}', space=sflag, size = 0x4, scoped, tag = 'scoped memory for tpu_custom_call.1']
    #allocation7 [shape = 'u8[32768]{0}', space=vmem, size = 0x8000, scoped, tag = 'input window, operand 2, single buffered']
    #allocation8 [shape = 's32[1]{0}', space=sflag, size = 0x4, scoped, tag = 'scoped memory for tpu_custom_call.1']
    #allocation9 [shape = 'u8[32768]{0}', space=vmem, size = 0x8000, scoped, tag = 'input window, operand 4, single buffered']
    #allocation10 [shape = 'u8[32768]{0}', space=vmem, size = 0x8000, scoped, tag = 'input window, operand 6, single buffered']
    #allocation11 [shape = 's32[1]{0}', space=sflag, size = 0x4, scoped, tag = 'scoped memory for tpu_custom_call.1']
    #allocation12 [shape = 'u8[262144]{0}', space=vmem, size = 0x40000, scoped, tag = 'output window, operand 0, single buffered']
    #allocation13 [shape = 'u8[512]{0}', space=smem, size = 0x200, scoped, tag = 'output window, operand 1, single buffered']
    %16 = vsyncpa [#allocation4], 0
    %17 = vsyncpa [#allocation8], 0
    %18 = vsyncpa [#allocation11], 0
    %19 = vsyncpa [#allocation5], 0
    %20 = vsyncpa [#allocation6], 0
    // Predicated region
    $region2: #{tpu_custom_call.1} parent=1 // pred_check
      _
    $region3: #{tpu_custom_call.1} parent=1 // pred_check_branch
      %22 = sbr.rel (0) target = $region5
    $region4: #{tpu_custom_call.1} parent=1 // pred_region
      _
    $region5: #{tpu_custom_call.1} parent=1 // pred_fallthru
      _
    // Predicated region
    $region6: #{tpu_custom_call.1} parent=1 // pred_check
      _
    $region7: #{tpu_custom_call.1} parent=1 // pred_check_branch
      %24 = sbr.rel (0) target = $region9
    $region8: #{tpu_custom_call.1} parent=1 // pred_region
      %26 = vsyncadd [#allocation4], 0
      %s27 = sshll.u32 %s1, 4
      %s28 = int_to_ptr.hbm [resolvable:$true] %s27
      %s29 = sshll.u32 [#allocation3], 4
      %s30 = int_to_ptr.vmem [resolvable:$true] %s29
      %35 = dma.hbm_to_vmem [thread:$0]  %s28, 4096, %s30, [#allocation4], 64, 64, 4
    $region9: #{tpu_custom_call.1} parent=1 // pred_fallthru
      _
    // Predicated region
    $region10: #{tpu_custom_call.1} parent=1 // pred_check
      _
    $region11: #{tpu_custom_call.1} parent=1 // pred_check_branch
      %37 = sbr.rel (0) target = $region13
    $region12: #{tpu_custom_call.1} parent=1 // pred_region
      %39 = vsyncadd [#allocation8], 0
      %s40 = sshll.u32 %s2, 4
      %s41 = int_to_ptr.hbm [resolvable:$true] %s40
      %s42 = sshll.u32 [#allocation7], 4
      %s43 = int_to_ptr.vmem [resolvable:$true] %s42
      %48 = dma.hbm_to_vmem [thread:$0]  %s41, 1024, %s43, [#allocation8], 64, 64, 4
    $region13: #{tpu_custom_call.1} parent=1 // pred_fallthru
      _
    // Predicated region
    $region14: #{tpu_custom_call.1} parent=1 // pred_check
      _
    $region15: #{tpu_custom_call.1} parent=1 // pred_check_branch
      %50 = sbr.rel (0) target = $region17
    $region16: #{tpu_custom_call.1} parent=1 // pred_region
      _
    $region17: #{tpu_custom_call.1} parent=1 // pred_fallthru
      _
    // Predicated region
    $region18: #{tpu_custom_call.1} parent=1 // pred_check
      _
    $region19: #{tpu_custom_call.1} parent=1 // pred_check_branch
      %52 = sbr.rel (0) target = $region21
    $region20: #{tpu_custom_call.1} parent=1 // pred_region
      %54 = vsyncadd [#allocation8], 0
      %s55 = sshll.u32 %s4, 4
      %s56 = int_to_ptr.hbm [resolvable:$true] %s55
      %s57 = sshll.u32 [#allocation9], 4
      %s58 = int_to_ptr.vmem [resolvable:$true] %s57
      %63 = dma.hbm_to_vmem [thread:$0]  %s56, 1024, %s58, [#allocation8], 64, 64, 4
    $region21: #{tpu_custom_call.1} parent=1 // pred_fallthru
      _
    // Predicated region
    $region22: #{tpu_custom_call.1} parent=1 // pred_check
      _
    $region23: #{tpu_custom_call.1} parent=1 // pred_check_branch
      %65 = sbr.rel (0) target = $region25
    $region24: #{tpu_custom_call.1} parent=1 // pred_region
      _
    $region25: #{tpu_custom_call.1} parent=1 // pred_fallthru
      _
    // Predicated region
    $region26: #{tpu_custom_call.1} parent=1 // pred_check
      _
    $region27: #{tpu_custom_call.1} parent=1 // pred_check_branch
      %67 = sbr.rel (0) target = $region29
    $region28: #{tpu_custom_call.1} parent=1 // pred_region
      %69 = vsyncadd [#allocation11], 0
      %s70 = sshll.u32 %s6, 4
      %s71 = int_to_ptr.hbm [resolvable:$true] %s70
      %s72 = sshll.u32 [#allocation10], 4
      %s73 = int_to_ptr.vmem [resolvable:$true] %s72
      %78 = dma.hbm_to_vmem [thread:$0]  %s71, 1024, %s73, [#allocation11], 64, 64, 4
    $region29: #{tpu_custom_call.1} parent=1 // pred_fallthru
      _
    // Predicated region
    $region30: #{tpu_custom_call.1} parent=1 // pred_check
      _
    $region31: #{tpu_custom_call.1} parent=1 // pred_check_branch
      %80 = sbr.rel (0) target = $region33
    $region32: #{tpu_custom_call.1} parent=1 // pred_region
      _
    $region33: #{tpu_custom_call.1} parent=1 // pred_fallthru
      _
    // Predicated region
    $region34: #{tpu_custom_call.1} parent=1 // pred_check
      _
    $region35: #{tpu_custom_call.1} parent=1 // pred_check_branch
      %82 = sbr.rel (0) target = $region37
    $region36: #{tpu_custom_call.1} parent=1 // pred_region
      %84 = dma.done [#allocation4], 4096
    $region37: #{tpu_custom_call.1} parent=1 // pred_fallthru
      _
    // Predicated region
    $region38: #{tpu_custom_call.1} parent=1 // pred_check
      _
    $region39: #{tpu_custom_call.1} parent=1 // pred_check_branch
      %86 = sbr.rel (0) target = $region41
    $region40: #{tpu_custom_call.1} parent=1 // pred_region
      %88 = dma.done [#allocation8], 1024
    $region41: #{tpu_custom_call.1} parent=1 // pred_fallthru
      _
    // Predicated region
    $region42: #{tpu_custom_call.1} parent=1 // pred_check
      _
    $region43: #{tpu_custom_call.1} parent=1 // pred_check_branch
      %90 = sbr.rel (0) target = $region45
    $region44: #{tpu_custom_call.1} parent=1 // pred_region
      %92 = dma.done [#allocation8], 1024
    $region45: #{tpu_custom_call.1} parent=1 // pred_fallthru
      _
    // Predicated region
    $region46: #{tpu_custom_call.1} parent=1 // pred_check
      _
    $region47: #{tpu_custom_call.1} parent=1 // pred_check_branch
      %94 = sbr.rel (0) target = $region49
    $region48: #{tpu_custom_call.1} parent=1 // pred_region
      %96 = dma.done [#allocation11], 1024
    $region49: #{tpu_custom_call.1} parent=1 // pred_fallthru
      _
    %v97 = vld [vmem:[#allocation3] sm:$0xf]
    %v98 = vld [vmem:[#allocation3 + $0x4] sm:$0xf]
    %v99 = vld [vmem:[#allocation3 + $0x8] sm:$0xf]
    %v100 = vld [vmem:[#allocation3 + $0xc] sm:$0xf]
    %v101 = vld [vmem:[#allocation3 + $0x10] sm:$0xf]
    %v102 = vld [vmem:[#allocation3 + $0x14] sm:$0xf]
    %v103 = vld [vmem:[#allocation3 + $0x18] sm:$0xf]
    %v104 = vld [vmem:[#allocation3 + $0x1c] sm:$0xf]
    %v105 = vld [vmem:[#allocation3 + $0x20] sm:$0xf]
    %v106 = vld [vmem:[#allocation3 + $0x24] sm:$0xf]
    %v107 = vld [vmem:[#allocation3 + $0x28] sm:$0xf]
    %v108 = vld [vmem:[#allocation3 + $0x2c] sm:$0xf]
    %v109 = vld [vmem:[#allocation3 + $0x30] sm:$0xf]
    %v110 = vld [vmem:[#allocation3 + $0x34] sm:$0xf]
    %v111 = vld [vmem:[#allocation3 + $0x38] sm:$0xf]
    %v112 = vld [vmem:[#allocation3 + $0x3c] sm:$0xf]
    %v113 = vld [vmem:[#allocation3 + $0x40] sm:$0xf]
    %v114 = vld [vmem:[#allocation3 + $0x44] sm:$0xf]
    %v115 = vld [vmem:[#allocation3 + $0x48] sm:$0xf]
    %v116 = vld [vmem:[#allocation3 + $0x4c] sm:$0xf]
    %v117 = vld [vmem:[#allocation3 + $0x50] sm:$0xf]
    %v118 = vld [vmem:[#allocation3 + $0x54] sm:$0xf]
    %v119 = vld [vmem:[#allocation3 + $0x58] sm:$0xf]
    %v120 = vld [vmem:[#allocation3 + $0x5c] sm:$0xf]
    %v121 = vld [vmem:[#allocation3 + $0x60] sm:$0xf]
    %v122 = vld [vmem:[#allocation3 + $0x64] sm:$0xf]
    %v123 = vld [vmem:[#allocation3 + $0x68] sm:$0xf]
    %v124 = vld [vmem:[#allocation3 + $0x6c] sm:$0xf]
    %v125 = vld [vmem:[#allocation3 + $0x70] sm:$0xf]
    %v126 = vld [vmem:[#allocation3 + $0x74] sm:$0xf]
    %v127 = vld [vmem:[#allocation3 + $0x78] sm:$0xf]
    %v128 = vld [vmem:[#allocation3 + $0x7c] sm:$0xf]
    %v129 = vld [vmem:[#allocation3 + $0x80] sm:$0xf]
    %v130 = vld [vmem:[#allocation3 + $0x84] sm:$0xf]
    %v131 = vld [vmem:[#allocation3 + $0x88] sm:$0xf]
    %v132 = vld [vmem:[#allocation3 + $0x8c] sm:$0xf]
    %v133 = vld [vmem:[#allocation3 + $0x90] sm:$0xf]
    %v134 = vld [vmem:[#allocation3 + $0x94] sm:$0xf]
    %v135 = vld [vmem:[#allocation3 + $0x98] sm:$0xf]
    %v136 = vld [vmem:[#allocation3 + $0x9c] sm:$0xf]
    %v137 = vld [vmem:[#allocation3 + $0xa0] sm:$0xf]
    %v138 = vld [vmem:[#allocation3 + $0xa4] sm:$0xf]
    %v139 = vld [vmem:[#allocation3 + $0xa8] sm:$0xf]
    %v140 = vld [vmem:[#allocation3 + $0xac] sm:$0xf]
    %v141 = vld [vmem:[#allocation3 + $0xb0] sm:$0xf]
    %v142 = vld [vmem:[#allocation3 + $0xb4] sm:$0xf]
    %v143 = vld [vmem:[#allocation3 + $0xb8] sm:$0xf]
    %v144 = vld [vmem:[#allocation3 + $0xbc] sm:$0xf]
    %v145 = vld [vmem:[#allocation3 + $0xc0] sm:$0xf]
    %v146 = vld [vmem:[#allocation3 + $0xc4] sm:$0xf]
    %v147 = vld [vmem:[#allocation3 + $0xc8] sm:$0xf]
    %v148 = vld [vmem:[#allocation3 + $0xcc] sm:$0xf]
    %v149 = vld [vmem:[#allocation3 + $0xd0] sm:$0xf]
    %v150 = vld [vmem:[#allocation3 + $0xd4] sm:$0xf]
    %v151 = vld [vmem:[#allocation3 + $0xd8] sm:$0xf]
    %v152 = vld [vmem:[#allocation3 + $0xdc] sm:$0xf]
    %v153 = vld [vmem:[#allocation3 + $0xe0] sm:$0xf]
    %v154 = vld [vmem:[#allocation3 + $0xe4] sm:$0xf]
    %v155 = vld [vmem:[#allocation3 + $0xe8] sm:$0xf]
    %v156 = vld [vmem:[#allocation3 + $0xec] sm:$0xf]
    %v157 = vld [vmem:[#allocation3 + $0xf0] sm:$0xf]
    %v158 = vld [vmem:[#allocation3 + $0xf4] sm:$0xf]
    %v159 = vld [vmem:[#allocation3 + $0xf8] sm:$0xf]
    %v160 = vld [vmem:[#allocation3 + $0xfc] sm:$0xf]
    %v161 = vld [vmem:[#allocation7] sm:$0xf]
    %v162 = vld [vmem:[#allocation7 + $0x4] sm:$0xf]
    %v163 = vld [vmem:[#allocation7 + $0x8] sm:$0xf]
    %v164 = vld [vmem:[#allocation7 + $0xc] sm:$0xf]
    %v165 = vld [vmem:[#allocation7 + $0x10] sm:$0xf]
    %v166 = vld [vmem:[#allocation7 + $0x14] sm:$0xf]
    %v167 = vld [vmem:[#allocation7 + $0x18] sm:$0xf]
    %v168 = vld [vmem:[#allocation7 + $0x1c] sm:$0xf]
    %v169 = vld [vmem:[#allocation7 + $0x20] sm:$0xf]
    %v170 = vld [vmem:[#allocation7 + $0x24] sm:$0xf]
    %v171 = vld [vmem:[#allocation7 + $0x28] sm:$0xf]
    %v172 = vld [vmem:[#allocation7 + $0x2c] sm:$0xf]
    %v173 = vld [vmem:[#allocation7 + $0x30] sm:$0xf]
    %v174 = vld [vmem:[#allocation7 + $0x34] sm:$0xf]
    %v175 = vld [vmem:[#allocation7 + $0x38] sm:$0xf]
    %v176 = vld [vmem:[#allocation7 + $0x3c] sm:$0xf]
    %v177 = vld [vmem:[%s3] sm:$0x1]
    %v179 = vperm.slane %v177, 0
    %v245 = vunpack.c.l.b16 %v97
    %v246 = vunpack.c.l.b16 %v98
    %v247 = vunpack.c.l.b16 %v99
    %v248 = vunpack.c.l.b16 %v100
    %v249 = vunpack.c.l.b16 %v101
    %v250 = vunpack.c.l.b16 %v102
    %v251 = vunpack.c.l.b16 %v103
    %v252 = vunpack.c.l.b16 %v104
    %v253 = vunpack.c.l.b16 %v105
    %v254 = vunpack.c.l.b16 %v106
    %v255 = vunpack.c.l.b16 %v107
    %v256 = vunpack.c.l.b16 %v108
    %v257 = vunpack.c.l.b16 %v109
    %v258 = vunpack.c.l.b16 %v110
    %v259 = vunpack.c.l.b16 %v111
    %v260 = vunpack.c.l.b16 %v112
    %v261 = vunpack.c.l.b16 %v113
    %v262 = vunpack.c.l.b16 %v114
    %v263 = vunpack.c.l.b16 %v115
    %v264 = vunpack.c.l.b16 %v116
    %v265 = vunpack.c.l.b16 %v117
    %v266 = vunpack.c.l.b16 %v118
    %v267 = vunpack.c.l.b16 %v119
    %v268 = vunpack.c.l.b16 %v120
    %v269 = vunpack.c.l.b16 %v121
    %v270 = vunpack.c.l.b16 %v122
    %v271 = vunpack.c.l.b16 %v123
    %v272 = vunpack.c.l.b16 %v124
    %v273 = vunpack.c.l.b16 %v125
    %v274 = vunpack.c.l.b16 %v126
    %v275 = vunpack.c.l.b16 %v127
    %v276 = vunpack.c.l.b16 %v128
    %v277 = vunpack.c.l.b16 %v129
    %v278 = vunpack.c.l.b16 %v130
    %v279 = vunpack.c.l.b16 %v131
    %v280 = vunpack.c.l.b16 %v132
    %v281 = vunpack.c.l.b16 %v133
    %v282 = vunpack.c.l.b16 %v134
    %v283 = vunpack.c.l.b16 %v135
    %v284 = vunpack.c.l.b16 %v136
    %v285 = vunpack.c.l.b16 %v137
    %v286 = vunpack.c.l.b16 %v138
    %v287 = vunpack.c.l.b16 %v139
    %v288 = vunpack.c.l.b16 %v140
    %v289 = vunpack.c.l.b16 %v141
    %v290 = vunpack.c.l.b16 %v142
    %v291 = vunpack.c.l.b16 %v143
    %v292 = vunpack.c.l.b16 %v144
    %v293 = vunpack.c.l.b16 %v145
    %v294 = vunpack.c.l.b16 %v146
    %v295 = vunpack.c.l.b16 %v147
    %v296 = vunpack.c.l.b16 %v148
    %v297 = vunpack.c.l.b16 %v149
    %v298 = vunpack.c.l.b16 %v150
    %v299 = vunpack.c.l.b16 %v151
    %v300 = vunpack.c.l.b16 %v152
    %v301 = vunpack.c.l.b16 %v153
    %v302 = vunpack.c.l.b16 %v154
    %v303 = vunpack.c.l.b16 %v155
    %v304 = vunpack.c.l.b16 %v156
    %v305 = vunpack.c.l.b16 %v157
    %v306 = vunpack.c.l.b16 %v158
    %v307 = vunpack.c.l.b16 %v159
    %v308 = vunpack.c.l.b16 %v160
    %v309 = vpack.c.b16 %v246, %v245
    %v310 = vpack.c.b16 %v248, %v247
    %v311 = vpack.c.b16 %v250, %v249
    %v312 = vpack.c.b16 %v252, %v251
    %v313 = vpack.c.b16 %v254, %v253
    %v314 = vpack.c.b16 %v256, %v255
    %v315 = vpack.c.b16 %v258, %v257
    %v316 = vpack.c.b16 %v260, %v259
    %v317 = vpack.c.b16 %v262, %v261
    %v318 = vpack.c.b16 %v264, %v263
    %v319 = vpack.c.b16 %v266, %v265
    %v320 = vpack.c.b16 %v268, %v267
    %v321 = vpack.c.b16 %v270, %v269
    %v322 = vpack.c.b16 %v272, %v271
    %v323 = vpack.c.b16 %v274, %v273
    %v324 = vpack.c.b16 %v276, %v275
    %v325 = vpack.c.b16 %v278, %v277
    %v326 = vpack.c.b16 %v280, %v279
    %v327 = vpack.c.b16 %v282, %v281
    %v328 = vpack.c.b16 %v284, %v283
    %v329 = vpack.c.b16 %v286, %v285
    %v330 = vpack.c.b16 %v288, %v287
    %v331 = vpack.c.b16 %v290, %v289
    %v332 = vpack.c.b16 %v292, %v291
    %v333 = vpack.c.b16 %v294, %v293
    %v334 = vpack.c.b16 %v296, %v295
    %v335 = vpack.c.b16 %v298, %v297
    %v336 = vpack.c.b16 %v300, %v299
    %v337 = vpack.c.b16 %v302, %v301
    %v338 = vpack.c.b16 %v304, %v303
    %v339 = vpack.c.b16 %v306, %v305
    %v340 = vpack.c.b16 %v308, %v307
    %v389 = vunpack.c.l.b16 %v161
    %v390 = vunpack.c.l.b16 %v162
    %v391 = vunpack.c.l.b16 %v163
    %v392 = vunpack.c.l.b16 %v164
    %v393 = vunpack.c.l.b16 %v165
    %v394 = vunpack.c.l.b16 %v166
    %v395 = vunpack.c.l.b16 %v167
    %v396 = vunpack.c.l.b16 %v168
    %v397 = vunpack.c.l.b16 %v169
    %v398 = vunpack.c.l.b16 %v170
    %v399 = vunpack.c.l.b16 %v171
    %v400 = vunpack.c.l.b16 %v172
    %v401 = vunpack.c.l.b16 %v173
    %v402 = vunpack.c.l.b16 %v174
    %v403 = vunpack.c.l.b16 %v175
    %v404 = vunpack.c.l.b16 %v176
    %v405 = vpack.c.b16 %v390, %v389
    %v406 = vpack.c.b16 %v392, %v391
    %v407 = vpack.c.b16 %v394, %v393
    %v408 = vpack.c.b16 %v396, %v395
    %v409 = vpack.c.b16 %v398, %v397
    %v410 = vpack.c.b16 %v400, %v399
    %v411 = vpack.c.b16 %v402, %v401
    %v412 = vpack.c.b16 %v404, %v403
    %421 = vmatpush.bf16.msra.mxu0 %v412
    %422 = vmatpush.bf16.msra.mxu0 %v411
    %423 = vmatpush.bf16.msra.mxu0 %v410
    %424 = vmatpush.bf16.msra.mxu0 %v409
    %425 = vmatpush.bf16.msra.mxu0 %v408
    %426 = vmatpush.bf16.msra.mxu0 %v407
    %427 = vmatpush.bf16.msra.mxu0 %v406
    %428 = vmatpush.bf16.msra.mxu0 %v405
    %429 = vmatmul.bf16.gmra.mxu0 %v309
    %v430 = vpop.f32.mrf.mxu0
    %v431 = vadd.f32 %v179, %v430
    %v432 = vpop.f32.mrf.mxu0
    %v433 = vadd.f32 %v179, %v432
    %434 = vmatmul.bf16.gmra.mxu0 %v310
    %v435 = vpop.f32.mrf.mxu0
    %v436 = vadd.f32 %v179, %v435
    %v437 = vpop.f32.mrf.mxu0
    %v438 = vadd.f32 %v179, %v437
    %439 = vmatmul.bf16.gmra.mxu0 %v311
    %v440 = vpop.f32.mrf.mxu0
    %v441 = vadd.f32 %v179, %v440
    %v442 = vpop.f32.mrf.mxu0
    %v443 = vadd.f32 %v179, %v442
    %444 = vmatmul.bf16.gmra.mxu0 %v312
    %v445 = vpop.f32.mrf.mxu0
    %v446 = vadd.f32 %v179, %v445
    %v447 = vpop.f32.mrf.mxu0
    %v448 = vadd.f32 %v179, %v447
    %449 = vmatmul.bf16.gmra.mxu0 %v313
    %v450 = vpop.f32.mrf.mxu0
    %v451 = vadd.f32 %v179, %v450
    %v452 = vpop.f32.mrf.mxu0
    %v453 = vadd.f32 %v179, %v452
    %454 = vmatmul.bf16.gmra.mxu0 %v314
    %v455 = vpop.f32.mrf.mxu0
    %v456 = vadd.f32 %v179, %v455
    %v457 = vpop.f32.mrf.mxu0
    %v458 = vadd.f32 %v179, %v457
    %459 = vmatmul.bf16.gmra.mxu0 %v315
    %v460 = vpop.f32.mrf.mxu0
    %v461 = vadd.f32 %v179, %v460
    %v462 = vpop.f32.mrf.mxu0
    %v463 = vadd.f32 %v179, %v462
    %464 = vmatmul.bf16.gmra.mxu0 %v316
    %v465 = vpop.f32.mrf.mxu0
    %v466 = vadd.f32 %v179, %v465
    %v467 = vpop.f32.mrf.mxu0
    %v468 = vadd.f32 %v179, %v467
    %469 = vmatmul.bf16.gmra.mxu0 %v317
    %v470 = vpop.f32.mrf.mxu0
    %v471 = vadd.f32 %v179, %v470
    %v472 = vpop.f32.mrf.mxu0
    %v473 = vadd.f32 %v179, %v472
    %474 = vmatmul.bf16.gmra.mxu0 %v318
    %v475 = vpop.f32.mrf.mxu0
    %v476 = vadd.f32 %v179, %v475
    %v477 = vpop.f32.mrf.mxu0
    %v478 = vadd.f32 %v179, %v477
    %479 = vmatmul.bf16.gmra.mxu0 %v319
    %v480 = vpop.f32.mrf.mxu0
    %v481 = vadd.f32 %v179, %v480
    %v482 = vpop.f32.mrf.mxu0
    %v483 = vadd.f32 %v179, %v482
    %484 = vmatmul.bf16.gmra.mxu0 %v320
    %v485 = vpop.f32.mrf.mxu0
    %v486 = vadd.f32 %v179, %v485
    %v487 = vpop.f32.mrf.mxu0
    %v488 = vadd.f32 %v179, %v487
    %489 = vmatmul.bf16.gmra.mxu0 %v321
    %v490 = vpop.f32.mrf.mxu0
    %v491 = vadd.f32 %v179, %v490
    %v492 = vpop.f32.mrf.mxu0
    %v493 = vadd.f32 %v179, %v492
    %494 = vmatmul.bf16.gmra.mxu0 %v322
    %v495 = vpop.f32.mrf.mxu0
    %v496 = vadd.f32 %v179, %v495
    %v497 = vpop.f32.mrf.mxu0
    %v498 = vadd.f32 %v179, %v497
    %499 = vmatmul.bf16.gmra.mxu0 %v323
    %v500 = vpop.f32.mrf.mxu0
    %v501 = vadd.f32 %v179, %v500
    %v502 = vpop.f32.mrf.mxu0
    %v503 = vadd.f32 %v179, %v502
    %504 = vmatmul.bf16.gmra.mxu0 %v324
    %v505 = vpop.f32.mrf.mxu0
    %v506 = vadd.f32 %v179, %v505
    %v507 = vpop.f32.mrf.mxu0
    %v508 = vadd.f32 %v179, %v507
    %509 = vmatmul.bf16.gmra.mxu0 %v325
    %v510 = vpop.f32.mrf.mxu0
    %v511 = vadd.f32 %v179, %v510
    %v512 = vpop.f32.mrf.mxu0
    %v513 = vadd.f32 %v179, %v512
    %514 = vmatmul.bf16.gmra.mxu0 %v326
    %v515 = vpop.f32.mrf.mxu0
    %v516 = vadd.f32 %v179, %v515
    %v517 = vpop.f32.mrf.mxu0
    %v518 = vadd.f32 %v179, %v517
    %519 = vmatmul.bf16.gmra.mxu0 %v327
    %v520 = vpop.f32.mrf.mxu0
    %v521 = vadd.f32 %v179, %v520
    %v522 = vpop.f32.mrf.mxu0
    %v523 = vadd.f32 %v179, %v522
    %524 = vmatmul.bf16.gmra.mxu0 %v328
    %v525 = vpop.f32.mrf.mxu0
    %v526 = vadd.f32 %v179, %v525
    %v527 = vpop.f32.mrf.mxu0
    %v528 = vadd.f32 %v179, %v527
    %529 = vmatmul.bf16.gmra.mxu0 %v329
    %v530 = vpop.f32.mrf.mxu0
    %v531 = vadd.f32 %v179, %v530
    %v532 = vpop.f32.mrf.mxu0
    %v533 = vadd.f32 %v179, %v532
    %534 = vmatmul.bf16.gmra.mxu0 %v330
    %v535 = vpop.f32.mrf.mxu0
    %v536 = vadd.f32 %v179, %v535
    %v537 = vpop.f32.mrf.mxu0
    %v538 = vadd.f32 %v179, %v537
    %539 = vmatmul.bf16.gmra.mxu0 %v331
    %v540 = vpop.f32.mrf.mxu0
    %v541 = vadd.f32 %v179, %v540
    %v542 = vpop.f32.mrf.mxu0
    %v543 = vadd.f32 %v179, %v542
    %544 = vmatmul.bf16.gmra.mxu0 %v332
    %v545 = vpop.f32.mrf.mxu0
    %v546 = vadd.f32 %v179, %v545
    %v547 = vpop.f32.mrf.mxu0
    %v548 = vadd.f32 %v179, %v547
    %549 = vmatmul.bf16.gmra.mxu0 %v333
    %v550 = vpop.f32.mrf.mxu0
    %v551 = vadd.f32 %v179, %v550
    %v552 = vpop.f32.mrf.mxu0
    %v553 = vadd.f32 %v179, %v552
    %554 = vmatmul.bf16.gmra.mxu0 %v334
    %v555 = vpop.f32.mrf.mxu0
    %v556 = vadd.f32 %v179, %v555
    %v557 = vpop.f32.mrf.mxu0
    %v558 = vadd.f32 %v179, %v557
    %559 = vmatmul.bf16.gmra.mxu0 %v335
    %v560 = vpop.f32.mrf.mxu0
    %v561 = vadd.f32 %v179, %v560
    %v562 = vpop.f32.mrf.mxu0
    %v563 = vadd.f32 %v179, %v562
    %564 = vmatmul.bf16.gmra.mxu0 %v336
    %v565 = vpop.f32.mrf.mxu0
    %v566 = vadd.f32 %v179, %v565
    %v567 = vpop.f32.mrf.mxu0
    %v568 = vadd.f32 %v179, %v567
    %569 = vmatmul.bf16.gmra.mxu0 %v337
    %v570 = vpop.f32.mrf.mxu0
    %v571 = vadd.f32 %v179, %v570
    %v572 = vpop.f32.mrf.mxu0
    %v573 = vadd.f32 %v179, %v572
    %574 = vmatmul.bf16.gmra.mxu0 %v338
    %v575 = vpop.f32.mrf.mxu0
    %v576 = vadd.f32 %v179, %v575
    %v577 = vpop.f32.mrf.mxu0
    %v578 = vadd.f32 %v179, %v577
    %579 = vmatmul.bf16.gmra.mxu0 %v339
    %v580 = vpop.f32.mrf.mxu0
    %v581 = vadd.f32 %v179, %v580
    %v582 = vpop.f32.mrf.mxu0
    %v583 = vadd.f32 %v179, %v582
    %584 = vmatmul.bf16.gmra.mxu0 %v340
    %v585 = vpop.f32.mrf.mxu0
    %v586 = vadd.f32 %v179, %v585
    %v587 = vpop.f32.mrf.mxu0
    %v588 = vadd.f32 %v179, %v587
    %589 = vdwg.mxu0
    %v590 = vpack.c.bf16 %v433, %v431
    %v591 = vpack.c.bf16 %v438, %v436
    %v592 = vpack.c.bf16 %v443, %v441
    %v593 = vpack.c.bf16 %v448, %v446
    %v594 = vpack.c.bf16 %v453, %v451
    %v595 = vpack.c.bf16 %v458, %v456
    %v596 = vpack.c.bf16 %v463, %v461
    %v597 = vpack.c.bf16 %v468, %v466
    %v598 = vpack.c.bf16 %v473, %v471
    %v599 = vpack.c.bf16 %v478, %v476
    %v600 = vpack.c.bf16 %v483, %v481
    %v601 = vpack.c.bf16 %v488, %v486
    %v602 = vpack.c.bf16 %v493, %v491
    %v603 = vpack.c.bf16 %v498, %v496
    %v604 = vpack.c.bf16 %v503, %v501
    %v605 = vpack.c.bf16 %v508, %v506
    %v606 = vpack.c.bf16 %v513, %v511
    %v607 = vpack.c.bf16 %v518, %v516
    %v608 = vpack.c.bf16 %v523, %v521
    %v609 = vpack.c.bf16 %v528, %v526
    %v610 = vpack.c.bf16 %v533, %v531
    %v611 = vpack.c.bf16 %v538, %v536
    %v612 = vpack.c.bf16 %v543, %v541
    %v613 = vpack.c.bf16 %v548, %v546
    %v614 = vpack.c.bf16 %v553, %v551
    %v615 = vpack.c.bf16 %v558, %v556
    %v616 = vpack.c.bf16 %v563, %v561
    %v617 = vpack.c.bf16 %v568, %v566
    %v618 = vpack.c.bf16 %v573, %v571
    %v619 = vpack.c.bf16 %v578, %v576
    %v620 = vpack.c.bf16 %v583, %v581
    %v621 = vpack.c.bf16 %v588, %v586
    %v622 = vlaneseq
    %v623 = vand.u32 %v622, 127
    %v624 = vld [vmem:[#allocation9] sm:$0xf]
    %v625 = vld [vmem:[#allocation9 + $0x4] sm:$0xf]
    %v626 = vld [vmem:[#allocation9 + $0x8] sm:$0xf]
    %v627 = vld [vmem:[#allocation9 + $0xc] sm:$0xf]
    %v628 = vld [vmem:[#allocation9 + $0x10] sm:$0xf]
    %v629 = vld [vmem:[#allocation9 + $0x14] sm:$0xf]
    %v630 = vld [vmem:[#allocation9 + $0x18] sm:$0xf]
    %v631 = vld [vmem:[#allocation9 + $0x1c] sm:$0xf]
    %v632 = vld [vmem:[#allocation9 + $0x20] sm:$0xf]
    %v633 = vld [vmem:[#allocation9 + $0x24] sm:$0xf]
    %v634 = vld [vmem:[#allocation9 + $0x28] sm:$0xf]
    %v635 = vld [vmem:[#allocation9 + $0x2c] sm:$0xf]
    %v636 = vld [vmem:[#allocation9 + $0x30] sm:$0xf]
    %v637 = vld [vmem:[#allocation9 + $0x34] sm:$0xf]
    %v638 = vld [vmem:[#allocation9 + $0x38] sm:$0xf]
    %v639 = vld [vmem:[#allocation9 + $0x3c] sm:$0xf]
    %v640 = vld [vmem:[%s5] sm:$0x1]
    %v657 = vunpack.c.l.b16 %v624
    %v658 = vunpack.c.l.b16 %v625
    %v659 = vunpack.c.l.b16 %v626
    %v660 = vunpack.c.l.b16 %v627
    %v661 = vunpack.c.l.b16 %v628
    %v662 = vunpack.c.l.b16 %v629
    %v663 = vunpack.c.l.b16 %v630
    %v664 = vunpack.c.l.b16 %v631
    %v665 = vunpack.c.l.b16 %v632
    %v666 = vunpack.c.l.b16 %v633
    %v667 = vunpack.c.l.b16 %v634
    %v668 = vunpack.c.l.b16 %v635
    %v669 = vunpack.c.l.b16 %v636
    %v670 = vunpack.c.l.b16 %v637
    %v671 = vunpack.c.l.b16 %v638
    %v672 = vunpack.c.l.b16 %v639
    %v673 = vpack.c.b16 %v658, %v657
    %v674 = vpack.c.b16 %v660, %v659
    %v675 = vpack.c.b16 %v662, %v661
    %v676 = vpack.c.b16 %v664, %v663
    %v677 = vpack.c.b16 %v666, %v665
    %v678 = vpack.c.b16 %v668, %v667
    %v679 = vpack.c.b16 %v670, %v669
    %v680 = vpack.c.b16 %v672, %v671
    %689 = vmatpush.bf16.xpose.msra.mxu0 %v680
    %690 = vmatpush.bf16.xpose.msra.mxu0 %v679
    %691 = vmatpush.bf16.xpose.msra.mxu0 %v678
    %692 = vmatpush.bf16.xpose.msra.mxu0 %v677
    %693 = vmatpush.bf16.xpose.msra.mxu0 %v676
    %694 = vmatpush.bf16.xpose.msra.mxu0 %v675
    %695 = vmatpush.bf16.xpose.msra.mxu0 %v674
    %696 = vmatpush.bf16.xpose.msra.mxu0 %v673
    %697 = vmatmul.bf16.gmra.mxu0 %v590
    %v698 = vpop.f32.mrf.mxu0
    %v699 = vadd.f32 0.0, %v698
    %v700 = vpop.f32.mrf.mxu0
    %v701 = vadd.f32 0.0, %v700
    %702 = vmatmul.bf16.gmra.mxu0 %v591
    %v703 = vpop.f32.mrf.mxu0
    %v704 = vadd.f32 0.0, %v703
    %v705 = vpop.f32.mrf.mxu0
    %v706 = vadd.f32 0.0, %v705
    %707 = vmatmul.bf16.gmra.mxu0 %v592
    %v708 = vpop.f32.mrf.mxu0
    %v709 = vadd.f32 0.0, %v708
    %v710 = vpop.f32.mrf.mxu0
    %v711 = vadd.f32 0.0, %v710
    %712 = vmatmul.bf16.gmra.mxu0 %v593
    %v713 = vpop.f32.mrf.mxu0
    %v714 = vadd.f32 0.0, %v713
    %v715 = vpop.f32.mrf.mxu0
    %v716 = vadd.f32 0.0, %v715
    %717 = vmatmul.bf16.gmra.mxu0 %v594
    %v718 = vpop.f32.mrf.mxu0
    %v719 = vadd.f32 0.0, %v718
    %v720 = vpop.f32.mrf.mxu0
    %v721 = vadd.f32 0.0, %v720
    %722 = vmatmul.bf16.gmra.mxu0 %v595
    %v723 = vpop.f32.mrf.mxu0
    %v724 = vadd.f32 0.0, %v723
    %v725 = vpop.f32.mrf.mxu0
    %v726 = vadd.f32 0.0, %v725
    %727 = vmatmul.bf16.gmra.mxu0 %v596
    %v728 = vpop.f32.mrf.mxu0
    %v729 = vadd.f32 0.0, %v728
    %v730 = vpop.f32.mrf.mxu0
    %v731 = vadd.f32 0.0, %v730
    %732 = vmatmul.bf16.gmra.mxu0 %v597
    %v733 = vpop.f32.mrf.mxu0
    %v734 = vadd.f32 0.0, %v733
    %v735 = vpop.f32.mrf.mxu0
    %v736 = vadd.f32 0.0, %v735
    %737 = vmatmul.bf16.gmra.mxu0 %v598
    %v738 = vpop.f32.mrf.mxu0
    %v739 = vadd.f32 0.0, %v738
    %v740 = vpop.f32.mrf.mxu0
    %v741 = vadd.f32 0.0, %v740
    %742 = vmatmul.bf16.gmra.mxu0 %v599
    %v743 = vpop.f32.mrf.mxu0
    %v744 = vadd.f32 0.0, %v743
    %v745 = vpop.f32.mrf.mxu0
    %v746 = vadd.f32 0.0, %v745
    %747 = vmatmul.bf16.gmra.mxu0 %v600
    %v748 = vpop.f32.mrf.mxu0
    %v749 = vadd.f32 0.0, %v748
    %v750 = vpop.f32.mrf.mxu0
    %v751 = vadd.f32 0.0, %v750
    %752 = vmatmul.bf16.gmra.mxu0 %v601
    %v753 = vpop.f32.mrf.mxu0
    %v754 = vadd.f32 0.0, %v753
    %v755 = vpop.f32.mrf.mxu0
    %v756 = vadd.f32 0.0, %v755
    %757 = vmatmul.bf16.gmra.mxu0 %v602
    %v758 = vpop.f32.mrf.mxu0
    %v759 = vadd.f32 0.0, %v758
    %v760 = vpop.f32.mrf.mxu0
    %v761 = vadd.f32 0.0, %v760
    %762 = vmatmul.bf16.gmra.mxu0 %v603
    %v763 = vpop.f32.mrf.mxu0
    %v764 = vadd.f32 0.0, %v763
    %v765 = vpop.f32.mrf.mxu0
    %v766 = vadd.f32 0.0, %v765
    %767 = vmatmul.bf16.gmra.mxu0 %v604
    %v768 = vpop.f32.mrf.mxu0
    %v769 = vadd.f32 0.0, %v768
    %v770 = vpop.f32.mrf.mxu0
    %v771 = vadd.f32 0.0, %v770
    %772 = vmatmul.bf16.gmra.mxu0 %v605
    %v773 = vpop.f32.mrf.mxu0
    %v774 = vadd.f32 0.0, %v773
    %v775 = vpop.f32.mrf.mxu0
    %v776 = vadd.f32 0.0, %v775
    %777 = vmatmul.bf16.gmra.mxu0 %v606
    %v778 = vpop.f32.mrf.mxu0
    %v779 = vadd.f32 0.0, %v778
    %v780 = vpop.f32.mrf.mxu0
    %v781 = vadd.f32 0.0, %v780
    %782 = vmatmul.bf16.gmra.mxu0 %v607
    %v783 = vpop.f32.mrf.mxu0
    %v784 = vadd.f32 0.0, %v783
    %v785 = vpop.f32.mrf.mxu0
    %v786 = vadd.f32 0.0, %v785
    %787 = vmatmul.bf16.gmra.mxu0 %v608
    %v788 = vpop.f32.mrf.mxu0
    %v789 = vadd.f32 0.0, %v788
    %v790 = vpop.f32.mrf.mxu0
    %v791 = vadd.f32 0.0, %v790
    %792 = vmatmul.bf16.gmra.mxu0 %v609
    %v793 = vpop.f32.mrf.mxu0
    %v794 = vadd.f32 0.0, %v793
    %v795 = vpop.f32.mrf.mxu0
    %v796 = vadd.f32 0.0, %v795
    %797 = vmatmul.bf16.gmra.mxu0 %v610
    %v798 = vpop.f32.mrf.mxu0
    %v799 = vadd.f32 0.0, %v798
    %v800 = vpop.f32.mrf.mxu0
    %v801 = vadd.f32 0.0, %v800
    %802 = vmatmul.bf16.gmra.mxu0 %v611
    %v803 = vpop.f32.mrf.mxu0
    %v804 = vadd.f32 0.0, %v803
    %v805 = vpop.f32.mrf.mxu0
    %v806 = vadd.f32 0.0, %v805
    %807 = vmatmul.bf16.gmra.mxu0 %v612
    %v808 = vpop.f32.mrf.mxu0
    %v809 = vadd.f32 0.0, %v808
    %v810 = vpop.f32.mrf.mxu0
    %v811 = vadd.f32 0.0, %v810
    %812 = vmatmul.bf16.gmra.mxu0 %v613
    %v813 = vpop.f32.mrf.mxu0
    %v814 = vadd.f32 0.0, %v813
    %v815 = vpop.f32.mrf.mxu0
    %v816 = vadd.f32 0.0, %v815
    %817 = vmatmul.bf16.gmra.mxu0 %v614
    %v818 = vpop.f32.mrf.mxu0
    %v819 = vadd.f32 0.0, %v818
    %v820 = vpop.f32.mrf.mxu0
    %v821 = vadd.f32 0.0, %v820
    %822 = vmatmul.bf16.gmra.mxu0 %v615
    %v823 = vpop.f32.mrf.mxu0
    %v824 = vadd.f32 0.0, %v823
    %v825 = vpop.f32.mrf.mxu0
    %v826 = vadd.f32 0.0, %v825
    %827 = vmatmul.bf16.gmra.mxu0 %v616
    %v828 = vpop.f32.mrf.mxu0
    %v829 = vadd.f32 0.0, %v828
    %v830 = vpop.f32.mrf.mxu0
    %v831 = vadd.f32 0.0, %v830
    %832 = vmatmul.bf16.gmra.mxu0 %v617
    %v833 = vpop.f32.mrf.mxu0
    %v834 = vadd.f32 0.0, %v833
    %v835 = vpop.f32.mrf.mxu0
    %v836 = vadd.f32 0.0, %v835
    %837 = vmatmul.bf16.gmra.mxu0 %v618
    %v838 = vpop.f32.mrf.mxu0
    %v839 = vadd.f32 0.0, %v838
    %v840 = vpop.f32.mrf.mxu0
    %v841 = vadd.f32 0.0, %v840
    %842 = vmatmul.bf16.gmra.mxu0 %v619
    %v843 = vpop.f32.mrf.mxu0
    %v844 = vadd.f32 0.0, %v843
    %v845 = vpop.f32.mrf.mxu0
    %v846 = vadd.f32 0.0, %v845
    %847 = vmatmul.bf16.gmra.mxu0 %v620
    %v848 = vpop.f32.mrf.mxu0
    %v849 = vadd.f32 0.0, %v848
    %v850 = vpop.f32.mrf.mxu0
    %v851 = vadd.f32 0.0, %v850
    %852 = vmatmul.bf16.gmra.mxu0 %v621
    %v853 = vpop.f32.mrf.mxu0
    %v854 = vadd.f32 0.0, %v853
    %v855 = vpop.f32.mrf.mxu0
    %v856 = vadd.f32 0.0, %v855
    %857 = vdwg.mxu0
    %v858 = vmul.f32 %v699, 2.0
    %v859 = vmul.f32 %v701, 2.0
    %v860 = vmul.f32 %v704, 2.0
    %v861 = vmul.f32 %v706, 2.0
    %v862 = vmul.f32 %v709, 2.0
    %v863 = vmul.f32 %v711, 2.0
    %v864 = vmul.f32 %v714, 2.0
    %v865 = vmul.f32 %v716, 2.0
    %v866 = vmul.f32 %v719, 2.0
    %v867 = vmul.f32 %v721, 2.0
    %v868 = vmul.f32 %v724, 2.0
    %v869 = vmul.f32 %v726, 2.0
    %v870 = vmul.f32 %v729, 2.0
    %v871 = vmul.f32 %v731, 2.0
    %v872 = vmul.f32 %v734, 2.0
    %v873 = vmul.f32 %v736, 2.0
    %v874 = vmul.f32 %v739, 2.0
    %v875 = vmul.f32 %v741, 2.0
    %v876 = vmul.f32 %v744, 2.0
    %v877 = vmul.f32 %v746, 2.0
    %v878 = vmul.f32 %v749, 2.0
    %v879 = vmul.f32 %v751, 2.0
    %v880 = vmul.f32 %v754, 2.0
    %v881 = vmul.f32 %v756, 2.0
    %v882 = vmul.f32 %v759, 2.0
    %v883 = vmul.f32 %v761, 2.0
    %v884 = vmul.f32 %v764, 2.0
    %v885 = vmul.f32 %v766, 2.0
    %v886 = vmul.f32 %v769, 2.0
    %v887 = vmul.f32 %v771, 2.0
    %v888 = vmul.f32 %v774, 2.0
    %v889 = vmul.f32 %v776, 2.0
    %v890 = vmul.f32 %v779, 2.0
    %v891 = vmul.f32 %v781, 2.0
    %v892 = vmul.f32 %v784, 2.0
    %v893 = vmul.f32 %v786, 2.0
    %v894 = vmul.f32 %v789, 2.0
    %v895 = vmul.f32 %v791, 2.0
    %v896 = vmul.f32 %v794, 2.0
    %v897 = vmul.f32 %v796, 2.0
    %v898 = vmul.f32 %v799, 2.0
    %v899 = vmul.f32 %v801, 2.0
    %v900 = vmul.f32 %v804, 2.0
    %v901 = vmul.f32 %v806, 2.0
    %v902 = vmul.f32 %v809, 2.0
    %v903 = vmul.f32 %v811, 2.0
    %v904 = vmul.f32 %v814, 2.0
    %v905 = vmul.f32 %v816, 2.0
    %v906 = vmul.f32 %v819, 2.0
    %v907 = vmul.f32 %v821, 2.0
    %v908 = vmul.f32 %v824, 2.0
    %v909 = vmul.f32 %v826, 2.0
    %v910 = vmul.f32 %v829, 2.0
    %v911 = vmul.f32 %v831, 2.0
    %v912 = vmul.f32 %v834, 2.0
    %v913 = vmul.f32 %v836, 2.0
    %v914 = vmul.f32 %v839, 2.0
    %v915 = vmul.f32 %v841, 2.0
    %v916 = vmul.f32 %v844, 2.0
    %v917 = vmul.f32 %v846, 2.0
    %v918 = vmul.f32 %v849, 2.0
    %v919 = vmul.f32 %v851, 2.0
    %v920 = vmul.f32 %v854, 2.0
    %v921 = vmul.f32 %v856, 2.0
    %v923 = vperm.slane %v640, 0
    %v925 = vsub.f32 %v923, %v858
    %v926 = vsub.f32 %v923, %v859
    %v927 = vsub.f32 %v923, %v860
    %v928 = vsub.f32 %v923, %v861
    %v929 = vsub.f32 %v923, %v862
    %v930 = vsub.f32 %v923, %v863
    %v931 = vsub.f32 %v923, %v864
    %v932 = vsub.f32 %v923, %v865
    %v933 = vsub.f32 %v923, %v866
    %v934 = vsub.f32 %v923, %v867
    %v935 = vsub.f32 %v923, %v868
    %v936 = vsub.f32 %v923, %v869
    %v937 = vsub.f32 %v923, %v870
    %v938 = vsub.f32 %v923, %v871
    %v939 = vsub.f32 %v923, %v872
    %v940 = vsub.f32 %v923, %v873
    %v941 = vsub.f32 %v923, %v874
    %v942 = vsub.f32 %v923, %v875
    %v943 = vsub.f32 %v923, %v876
    %v944 = vsub.f32 %v923, %v877
    %v945 = vsub.f32 %v923, %v878
    %v946 = vsub.f32 %v923, %v879
    %v947 = vsub.f32 %v923, %v880
    %v948 = vsub.f32 %v923, %v881
    %v949 = vsub.f32 %v923, %v882
    %v950 = vsub.f32 %v923, %v883
    %v951 = vsub.f32 %v923, %v884
    %v952 = vsub.f32 %v923, %v885
    %v953 = vsub.f32 %v923, %v886
    %v954 = vsub.f32 %v923, %v887
    %v955 = vsub.f32 %v923, %v888
    %v956 = vsub.f32 %v923, %v889
    %v957 = vsub.f32 %v923, %v890
    %v958 = vsub.f32 %v923, %v891
    %v959 = vsub.f32 %v923, %v892
    %v960 = vsub.f32 %v923, %v893
    %v961 = vsub.f32 %v923, %v894
    %v962 = vsub.f32 %v923, %v895
    %v963 = vsub.f32 %v923, %v896
    %v964 = vsub.f32 %v923, %v897
    %v965 = vsub.f32 %v923, %v898
    %v966 = vsub.f32 %v923, %v899
    %v967 = vsub.f32 %v923, %v900
    %v968 = vsub.f32 %v923, %v901
    %v969 = vsub.f32 %v923, %v902
    %v970 = vsub.f32 %v923, %v903
    %v971 = vsub.f32 %v923, %v904
    %v972 = vsub.f32 %v923, %v905
    %v973 = vsub.f32 %v923, %v906
    %v974 = vsub.f32 %v923, %v907
    %v975 = vsub.f32 %v923, %v908
    %v976 = vsub.f32 %v923, %v909
    %v977 = vsub.f32 %v923, %v910
    %v978 = vsub.f32 %v923, %v911
    %v979 = vsub.f32 %v923, %v912
    %v980 = vsub.f32 %v923, %v913
    %v981 = vsub.f32 %v923, %v914
    %v982 = vsub.f32 %v923, %v915
    %v983 = vsub.f32 %v923, %v916
    %v984 = vsub.f32 %v923, %v917
    %v985 = vsub.f32 %v923, %v918
    %v986 = vsub.f32 %v923, %v919
    %v987 = vsub.f32 %v923, %v920
    %v988 = vsub.f32 %v923, %v921
    %989 = vmin.xlane.f32.xlu0 %v925
    %v990 = vpop.xlane.xlu0 %989
    %991 = vmin.xlane.f32.xlu0 %v926
    %v992 = vpop.xlane.xlu0 %991
    %993 = vmin.xlane.f32.xlu0 %v927
    %v994 = vpop.xlane.xlu0 %993
    %995 = vmin.xlane.f32.xlu0 %v928
    %v996 = vpop.xlane.xlu0 %995
    %997 = vmin.xlane.f32.xlu0 %v929
    %v998 = vpop.xlane.xlu0 %997
    %999 = vmin.xlane.f32.xlu0 %v930
    %v1000 = vpop.xlane.xlu0 %999
    %1001 = vmin.xlane.f32.xlu0 %v931
    %v1002 = vpop.xlane.xlu0 %1001
    %1003 = vmin.xlane.f32.xlu0 %v932
    %v1004 = vpop.xlane.xlu0 %1003
    %1005 = vmin.xlane.f32.xlu0 %v933
    %v1006 = vpop.xlane.xlu0 %1005
    %1007 = vmin.xlane.f32.xlu0 %v934
    %v1008 = vpop.xlane.xlu0 %1007
    %1009 = vmin.xlane.f32.xlu0 %v935
    %v1010 = vpop.xlane.xlu0 %1009
    %1011 = vmin.xlane.f32.xlu0 %v936
    %v1012 = vpop.xlane.xlu0 %1011
    %1013 = vmin.xlane.f32.xlu0 %v937
    %v1014 = vpop.xlane.xlu0 %1013
    %1015 = vmin.xlane.f32.xlu0 %v938
    %v1016 = vpop.xlane.xlu0 %1015
    %1017 = vmin.xlane.f32.xlu0 %v939
    %v1018 = vpop.xlane.xlu0 %1017
    %1019 = vmin.xlane.f32.xlu0 %v940
    %v1020 = vpop.xlane.xlu0 %1019
    %1021 = vmin.xlane.f32.xlu0 %v941
    %v1022 = vpop.xlane.xlu0 %1021
    %1023 = vmin.xlane.f32.xlu0 %v942
    %v1024 = vpop.xlane.xlu0 %1023
    %1025 = vmin.xlane.f32.xlu0 %v943
    %v1026 = vpop.xlane.xlu0 %1025
    %1027 = vmin.xlane.f32.xlu0 %v944
    %v1028 = vpop.xlane.xlu0 %1027
    %1029 = vmin.xlane.f32.xlu0 %v945
    %v1030 = vpop.xlane.xlu0 %1029
    %1031 = vmin.xlane.f32.xlu0 %v946
    %v1032 = vpop.xlane.xlu0 %1031
    %1033 = vmin.xlane.f32.xlu0 %v947
    %v1034 = vpop.xlane.xlu0 %1033
    %1035 = vmin.xlane.f32.xlu0 %v948
    %v1036 = vpop.xlane.xlu0 %1035
    %1037 = vmin.xlane.f32.xlu0 %v949
    %v1038 = vpop.xlane.xlu0 %1037
    %1039 = vmin.xlane.f32.xlu0 %v950
    %v1040 = vpop.xlane.xlu0 %1039
    %1041 = vmin.xlane.f32.xlu0 %v951
    %v1042 = vpop.xlane.xlu0 %1041
    %1043 = vmin.xlane.f32.xlu0 %v952
    %v1044 = vpop.xlane.xlu0 %1043
    %1045 = vmin.xlane.f32.xlu0 %v953
    %v1046 = vpop.xlane.xlu0 %1045
    %1047 = vmin.xlane.f32.xlu0 %v954
    %v1048 = vpop.xlane.xlu0 %1047
    %1049 = vmin.xlane.f32.xlu0 %v955
    %v1050 = vpop.xlane.xlu0 %1049
    %1051 = vmin.xlane.f32.xlu0 %v956
    %v1052 = vpop.xlane.xlu0 %1051
    %1053 = vmin.xlane.f32.xlu0 %v957
    %v1054 = vpop.xlane.xlu0 %1053
    %1055 = vmin.xlane.f32.xlu0 %v958
    %v1056 = vpop.xlane.xlu0 %1055
    %1057 = vmin.xlane.f32.xlu0 %v959
    %v1058 = vpop.xlane.xlu0 %1057
    %1059 = vmin.xlane.f32.xlu0 %v960
    %v1060 = vpop.xlane.xlu0 %1059
    %1061 = vmin.xlane.f32.xlu0 %v961
    %v1062 = vpop.xlane.xlu0 %1061
    %1063 = vmin.xlane.f32.xlu0 %v962
    %v1064 = vpop.xlane.xlu0 %1063
    %1065 = vmin.xlane.f32.xlu0 %v963
    %v1066 = vpop.xlane.xlu0 %1065
    %1067 = vmin.xlane.f32.xlu0 %v964
    %v1068 = vpop.xlane.xlu0 %1067
    %1069 = vmin.xlane.f32.xlu0 %v965
    %v1070 = vpop.xlane.xlu0 %1069
    %1071 = vmin.xlane.f32.xlu0 %v966
    %v1072 = vpop.xlane.xlu0 %1071
    %1073 = vmin.xlane.f32.xlu0 %v967
    %v1074 = vpop.xlane.xlu0 %1073
    %1075 = vmin.xlane.f32.xlu0 %v968
    %v1076 = vpop.xlane.xlu0 %1075
    %1077 = vmin.xlane.f32.xlu0 %v969
    %v1078 = vpop.xlane.xlu0 %1077
    %1079 = vmin.xlane.f32.xlu0 %v970
    %v1080 = vpop.xlane.xlu0 %1079
    %1081 = vmin.xlane.f32.xlu0 %v971
    %v1082 = vpop.xlane.xlu0 %1081
    %1083 = vmin.xlane.f32.xlu0 %v972
    %v1084 = vpop.xlane.xlu0 %1083
    %1085 = vmin.xlane.f32.xlu0 %v973
    %v1086 = vpop.xlane.xlu0 %1085
    %1087 = vmin.xlane.f32.xlu0 %v974
    %v1088 = vpop.xlane.xlu0 %1087
    %1089 = vmin.xlane.f32.xlu0 %v975
    %v1090 = vpop.xlane.xlu0 %1089
    %1091 = vmin.xlane.f32.xlu0 %v976
    %v1092 = vpop.xlane.xlu0 %1091
    %1093 = vmin.xlane.f32.xlu0 %v977
    %v1094 = vpop.xlane.xlu0 %1093
    %1095 = vmin.xlane.f32.xlu0 %v978
    %v1096 = vpop.xlane.xlu0 %1095
    %1097 = vmin.xlane.f32.xlu0 %v979
    %v1098 = vpop.xlane.xlu0 %1097
    %1099 = vmin.xlane.f32.xlu0 %v980
    %v1100 = vpop.xlane.xlu0 %1099
    %1101 = vmin.xlane.f32.xlu0 %v981
    %v1102 = vpop.xlane.xlu0 %1101
    %1103 = vmin.xlane.f32.xlu0 %v982
    %v1104 = vpop.xlane.xlu0 %1103
    %1105 = vmin.xlane.f32.xlu0 %v983
    %v1106 = vpop.xlane.xlu0 %1105
    %1107 = vmin.xlane.f32.xlu0 %v984
    %v1108 = vpop.xlane.xlu0 %1107
    %1109 = vmin.xlane.f32.xlu0 %v985
    %v1110 = vpop.xlane.xlu0 %1109
    %1111 = vmin.xlane.f32.xlu0 %v986
    %v1112 = vpop.xlane.xlu0 %1111
    %1113 = vmin.xlane.f32.xlu0 %v987
    %v1114 = vpop.xlane.xlu0 %1113
    %1115 = vmin.xlane.f32.xlu0 %v988
    %v1116 = vpop.xlane.xlu0 %1115
    %vm1117 = vcmp.le.f32.partialorder %v925, %v990
    %vm1118 = vcmp.le.f32.partialorder %v926, %v992
    %vm1119 = vcmp.le.f32.partialorder %v927, %v994
    %vm1120 = vcmp.le.f32.partialorder %v928, %v996
    %vm1121 = vcmp.le.f32.partialorder %v929, %v998
    %vm1122 = vcmp.le.f32.partialorder %v930, %v1000
    %vm1123 = vcmp.le.f32.partialorder %v931, %v1002
    %vm1124 = vcmp.le.f32.partialorder %v932, %v1004
    %vm1125 = vcmp.le.f32.partialorder %v933, %v1006
    %vm1126 = vcmp.le.f32.partialorder %v934, %v1008
    %vm1127 = vcmp.le.f32.partialorder %v935, %v1010
    %vm1128 = vcmp.le.f32.partialorder %v936, %v1012
    %vm1129 = vcmp.le.f32.partialorder %v937, %v1014
    %vm1130 = vcmp.le.f32.partialorder %v938, %v1016
    %vm1131 = vcmp.le.f32.partialorder %v939, %v1018
    %vm1132 = vcmp.le.f32.partialorder %v940, %v1020
    %vm1133 = vcmp.le.f32.partialorder %v941, %v1022
    %vm1134 = vcmp.le.f32.partialorder %v942, %v1024
    %vm1135 = vcmp.le.f32.partialorder %v943, %v1026
    %vm1136 = vcmp.le.f32.partialorder %v944, %v1028
    %vm1137 = vcmp.le.f32.partialorder %v945, %v1030
    %vm1138 = vcmp.le.f32.partialorder %v946, %v1032
    %vm1139 = vcmp.le.f32.partialorder %v947, %v1034
    %vm1140 = vcmp.le.f32.partialorder %v948, %v1036
    %vm1141 = vcmp.le.f32.partialorder %v949, %v1038
    %vm1142 = vcmp.le.f32.partialorder %v950, %v1040
    %vm1143 = vcmp.le.f32.partialorder %v951, %v1042
    %vm1144 = vcmp.le.f32.partialorder %v952, %v1044
    %vm1145 = vcmp.le.f32.partialorder %v953, %v1046
    %vm1146 = vcmp.le.f32.partialorder %v954, %v1048
    %vm1147 = vcmp.le.f32.partialorder %v955, %v1050
    %vm1148 = vcmp.le.f32.partialorder %v956, %v1052
    %vm1149 = vcmp.le.f32.partialorder %v957, %v1054
    %vm1150 = vcmp.le.f32.partialorder %v958, %v1056
    %vm1151 = vcmp.le.f32.partialorder %v959, %v1058
    %vm1152 = vcmp.le.f32.partialorder %v960, %v1060
    %vm1153 = vcmp.le.f32.partialorder %v961, %v1062
    %vm1154 = vcmp.le.f32.partialorder %v962, %v1064
    %vm1155 = vcmp.le.f32.partialorder %v963, %v1066
    %vm1156 = vcmp.le.f32.partialorder %v964, %v1068
    %vm1157 = vcmp.le.f32.partialorder %v965, %v1070
    %vm1158 = vcmp.le.f32.partialorder %v966, %v1072
    %vm1159 = vcmp.le.f32.partialorder %v967, %v1074
    %vm1160 = vcmp.le.f32.partialorder %v968, %v1076
    %vm1161 = vcmp.le.f32.partialorder %v969, %v1078
    %vm1162 = vcmp.le.f32.partialorder %v970, %v1080
    %vm1163 = vcmp.le.f32.partialorder %v971, %v1082
    %vm1164 = vcmp.le.f32.partialorder %v972, %v1084
    %vm1165 = vcmp.le.f32.partialorder %v973, %v1086
    %vm1166 = vcmp.le.f32.partialorder %v974, %v1088
    %vm1167 = vcmp.le.f32.partialorder %v975, %v1090
    %vm1168 = vcmp.le.f32.partialorder %v976, %v1092
    %vm1169 = vcmp.le.f32.partialorder %v977, %v1094
    %vm1170 = vcmp.le.f32.partialorder %v978, %v1096
    %vm1171 = vcmp.le.f32.partialorder %v979, %v1098
    %vm1172 = vcmp.le.f32.partialorder %v980, %v1100
    %vm1173 = vcmp.le.f32.partialorder %v981, %v1102
    %vm1174 = vcmp.le.f32.partialorder %v982, %v1104
    %vm1175 = vcmp.le.f32.partialorder %v983, %v1106
    %vm1176 = vcmp.le.f32.partialorder %v984, %v1108
    %vm1177 = vcmp.le.f32.partialorder %v985, %v1110
    %vm1178 = vcmp.le.f32.partialorder %v986, %v1112
    %vm1179 = vcmp.le.f32.partialorder %v987, %v1114
    %vm1180 = vcmp.le.f32.partialorder %v988, %v1116
    %v1181 = vsel %vm1117, %v623, 128
    %v1182 = vsel %vm1118, %v623, 128
    %v1183 = vsel %vm1119, %v623, 128
    %v1184 = vsel %vm1120, %v623, 128
    %v1185 = vsel %vm1121, %v623, 128
    %v1186 = vsel %vm1122, %v623, 128
    %v1187 = vsel %vm1123, %v623, 128
    %v1188 = vsel %vm1124, %v623, 128
    %v1189 = vsel %vm1125, %v623, 128
    %v1190 = vsel %vm1126, %v623, 128
    %v1191 = vsel %vm1127, %v623, 128
    %v1192 = vsel %vm1128, %v623, 128
    %v1193 = vsel %vm1129, %v623, 128
    %v1194 = vsel %vm1130, %v623, 128
    %v1195 = vsel %vm1131, %v623, 128
    %v1196 = vsel %vm1132, %v623, 128
    %v1197 = vsel %vm1133, %v623, 128
    %v1198 = vsel %vm1134, %v623, 128
    %v1199 = vsel %vm1135, %v623, 128
    %v1200 = vsel %vm1136, %v623, 128
    %v1201 = vsel %vm1137, %v623, 128
    %v1202 = vsel %vm1138, %v623, 128
    %v1203 = vsel %vm1139, %v623, 128
    %v1204 = vsel %vm1140, %v623, 128
    %v1205 = vsel %vm1141, %v623, 128
    %v1206 = vsel %vm1142, %v623, 128
    %v1207 = vsel %vm1143, %v623, 128
    %v1208 = vsel %vm1144, %v623, 128
    %v1209 = vsel %vm1145, %v623, 128
    %v1210 = vsel %vm1146, %v623, 128
    %v1211 = vsel %vm1147, %v623, 128
    %v1212 = vsel %vm1148, %v623, 128
    %v1213 = vsel %vm1149, %v623, 128
    %v1214 = vsel %vm1150, %v623, 128
    %v1215 = vsel %vm1151, %v623, 128
    %v1216 = vsel %vm1152, %v623, 128
    %v1217 = vsel %vm1153, %v623, 128
    %v1218 = vsel %vm1154, %v623, 128
    %v1219 = vsel %vm1155, %v623, 128
    %v1220 = vsel %vm1156, %v623, 128
    %v1221 = vsel %vm1157, %v623, 128
    %v1222 = vsel %vm1158, %v623, 128
    %v1223 = vsel %vm1159, %v623, 128
    %v1224 = vsel %vm1160, %v623, 128
    %v1225 = vsel %vm1161, %v623, 128
    %v1226 = vsel %vm1162, %v623, 128
    %v1227 = vsel %vm1163, %v623, 128
    %v1228 = vsel %vm1164, %v623, 128
    %v1229 = vsel %vm1165, %v623, 128
    %v1230 = vsel %vm1166, %v623, 128
    %v1231 = vsel %vm1167, %v623, 128
    %v1232 = vsel %vm1168, %v623, 128
    %v1233 = vsel %vm1169, %v623, 128
    %v1234 = vsel %vm1170, %v623, 128
    %v1235 = vsel %vm1171, %v623, 128
    %v1236 = vsel %vm1172, %v623, 128
    %v1237 = vsel %vm1173, %v623, 128
    %v1238 = vsel %vm1174, %v623, 128
    %v1239 = vsel %vm1175, %v623, 128
    %v1240 = vsel %vm1176, %v623, 128
    %v1241 = vsel %vm1177, %v623, 128
    %v1242 = vsel %vm1178, %v623, 128
    %v1243 = vsel %vm1179, %v623, 128
    %v1244 = vsel %vm1180, %v623, 128
    %v1245 = vand.u32 %v1181, 65535
    %v1246 = vshra.s32 %v1181, 16
    %v1247 = vcvt.s32.f32 %v1245
    %v1248 = vcvt.s32.f32 %v1246
    %1249 = vmin.xlane.f32.xlu0 %v1248
    %v1250 = vpop.xlane.xlu0 %1249
    %vm1251 = vcmp.eq.f32.partialorder %v1248, %v1250
    %v1252 = vsel %vm1251, %v1247, inf
    %1253 = vmin.xlane.f32.xlu0 %v1252
    %v1254 = vpop.xlane.xlu0 %1253
    %v1255 = vcvt.f32.s32 %v1254
    %v1256 = vcvt.f32.s32 %v1250
    %v1257 = vshll.u32 %v1256, 16
    %v1258 = vadd.s32 %v1257, %v1255
    %v1259 = vand.u32 %v1182, 65535
    %v1260 = vshra.s32 %v1182, 16
    %v1261 = vcvt.s32.f32 %v1259
    %v1262 = vcvt.s32.f32 %v1260
    %1263 = vmin.xlane.f32.xlu0 %v1262
    %v1264 = vpop.xlane.xlu0 %1263
    %vm1265 = vcmp.eq.f32.partialorder %v1262, %v1264
    %v1266 = vsel %vm1265, %v1261, inf
    %1267 = vmin.xlane.f32.xlu0 %v1266
    %v1268 = vpop.xlane.xlu0 %1267
    %v1269 = vcvt.f32.s32 %v1268
    %v1270 = vcvt.f32.s32 %v1264
    %v1271 = vshll.u32 %v1270, 16
    %v1272 = vadd.s32 %v1271, %v1269
    %v1273 = vand.u32 %v1183, 65535
    %v1274 = vshra.s32 %v1183, 16
    %v1275 = vcvt.s32.f32 %v1273
    %v1276 = vcvt.s32.f32 %v1274
    %1277 = vmin.xlane.f32.xlu0 %v1276
    %v1278 = vpop.xlane.xlu0 %1277
    %vm1279 = vcmp.eq.f32.partialorder %v1276, %v1278
    %v1280 = vsel %vm1279, %v1275, inf
    %1281 = vmin.xlane.f32.xlu0 %v1280
    %v1282 = vpop.xlane.xlu0 %1281
    %v1283 = vcvt.f32.s32 %v1282
    %v1284 = vcvt.f32.s32 %v1278
    %v1285 = vshll.u32 %v1284, 16
    %v1286 = vadd.s32 %v1285, %v1283
    %v1287 = vand.u32 %v1184, 65535
    %v1288 = vshra.s32 %v1184, 16
    %v1289 = vcvt.s32.f32 %v1287
    %v1290 = vcvt.s32.f32 %v1288
    %1291 = vmin.xlane.f32.xlu0 %v1290
    %v1292 = vpop.xlane.xlu0 %1291
    %vm1293 = vcmp.eq.f32.partialorder %v1290, %v1292
    %v1294 = vsel %vm1293, %v1289, inf
    %1295 = vmin.xlane.f32.xlu0 %v1294
    %v1296 = vpop.xlane.xlu0 %1295
    %v1297 = vcvt.f32.s32 %v1296
    %v1298 = vcvt.f32.s32 %v1292
    %v1299 = vshll.u32 %v1298, 16
    %v1300 = vadd.s32 %v1299, %v1297
    %v1301 = vand.u32 %v1185, 65535
    %v1302 = vshra.s32 %v1185, 16
    %v1303 = vcvt.s32.f32 %v1301
    %v1304 = vcvt.s32.f32 %v1302
    %1305 = vmin.xlane.f32.xlu0 %v1304
    %v1306 = vpop.xlane.xlu0 %1305
    %vm1307 = vcmp.eq.f32.partialorder %v1304, %v1306
    %v1308 = vsel %vm1307, %v1303, inf
    %1309 = vmin.xlane.f32.xlu0 %v1308
    %v1310 = vpop.xlane.xlu0 %1309
    %v1311 = vcvt.f32.s32 %v1310
    %v1312 = vcvt.f32.s32 %v1306
    %v1313 = vshll.u32 %v1312, 16
    %v1314 = vadd.s32 %v1313, %v1311
    %v1315 = vand.u32 %v1186, 65535
    %v1316 = vshra.s32 %v1186, 16
    %v1317 = vcvt.s32.f32 %v1315
    %v1318 = vcvt.s32.f32 %v1316
    %1319 = vmin.xlane.f32.xlu0 %v1318
    %v1320 = vpop.xlane.xlu0 %1319
    %vm1321 = vcmp.eq.f32.partialorder %v1318, %v1320
    %v1322 = vsel %vm1321, %v1317, inf
    %1323 = vmin.xlane.f32.xlu0 %v1322
    %v1324 = vpop.xlane.xlu0 %1323
    %v1325 = vcvt.f32.s32 %v1324
    %v1326 = vcvt.f32.s32 %v1320
    %v1327 = vshll.u32 %v1326, 16
    %v1328 = vadd.s32 %v1327, %v1325
    %v1329 = vand.u32 %v1187, 65535
    %v1330 = vshra.s32 %v1187, 16
    %v1331 = vcvt.s32.f32 %v1329
    %v1332 = vcvt.s32.f32 %v1330
    %1333 = vmin.xlane.f32.xlu0 %v1332
    %v1334 = vpop.xlane.xlu0 %1333
    %vm1335 = vcmp.eq.f32.partialorder %v1332, %v1334
    %v1336 = vsel %vm1335, %v1331, inf
    %1337 = vmin.xlane.f32.xlu0 %v1336
    %v1338 = vpop.xlane.xlu0 %1337
    %v1339 = vcvt.f32.s32 %v1338
    %v1340 = vcvt.f32.s32 %v1334
    %v1341 = vshll.u32 %v1340, 16
    %v1342 = vadd.s32 %v1341, %v1339
    %v1343 = vand.u32 %v1188, 65535
    %v1344 = vshra.s32 %v1188, 16
    %v1345 = vcvt.s32.f32 %v1343
    %v1346 = vcvt.s32.f32 %v1344
    %1347 = vmin.xlane.f32.xlu0 %v1346
    %v1348 = vpop.xlane.xlu0 %1347
    %vm1349 = vcmp.eq.f32.partialorder %v1346, %v1348
    %v1350 = vsel %vm1349, %v1345, inf
    %1351 = vmin.xlane.f32.xlu0 %v1350
    %v1352 = vpop.xlane.xlu0 %1351
    %v1353 = vcvt.f32.s32 %v1352
    %v1354 = vcvt.f32.s32 %v1348
    %v1355 = vshll.u32 %v1354, 16
    %v1356 = vadd.s32 %v1355, %v1353
    %v1357 = vand.u32 %v1189, 65535
    %v1358 = vshra.s32 %v1189, 16
    %v1359 = vcvt.s32.f32 %v1357
    %v1360 = vcvt.s32.f32 %v1358
    %1361 = vmin.xlane.f32.xlu0 %v1360
    %v1362 = vpop.xlane.xlu0 %1361
    %vm1363 = vcmp.eq.f32.partialorder %v1360, %v1362
    %v1364 = vsel %vm1363, %v1359, inf
    %1365 = vmin.xlane.f32.xlu0 %v1364
    %v1366 = vpop.xlane.xlu0 %1365
    %v1367 = vcvt.f32.s32 %v1366
    %v1368 = vcvt.f32.s32 %v1362
    %v1369 = vshll.u32 %v1368, 16
    %v1370 = vadd.s32 %v1369, %v1367
    %v1371 = vand.u32 %v1190, 65535
    %v1372 = vshra.s32 %v1190, 16
    %v1373 = vcvt.s32.f32 %v1371
    %v1374 = vcvt.s32.f32 %v1372
    %1375 = vmin.xlane.f32.xlu0 %v1374
    %v1376 = vpop.xlane.xlu0 %1375
    %vm1377 = vcmp.eq.f32.partialorder %v1374, %v1376
    %v1378 = vsel %vm1377, %v1373, inf
    %1379 = vmin.xlane.f32.xlu0 %v1378
    %v1380 = vpop.xlane.xlu0 %1379
    %v1381 = vcvt.f32.s32 %v1380
    %v1382 = vcvt.f32.s32 %v1376
    %v1383 = vshll.u32 %v1382, 16
    %v1384 = vadd.s32 %v1383, %v1381
    %v1385 = vand.u32 %v1191, 65535
    %v1386 = vshra.s32 %v1191, 16
    %v1387 = vcvt.s32.f32 %v1385
    %v1388 = vcvt.s32.f32 %v1386
    %1389 = vmin.xlane.f32.xlu0 %v1388
    %v1390 = vpop.xlane.xlu0 %1389
    %vm1391 = vcmp.eq.f32.partialorder %v1388, %v1390
    %v1392 = vsel %vm1391, %v1387, inf
    %1393 = vmin.xlane.f32.xlu0 %v1392
    %v1394 = vpop.xlane.xlu0 %1393
    %v1395 = vcvt.f32.s32 %v1394
    %v1396 = vcvt.f32.s32 %v1390
    %v1397 = vshll.u32 %v1396, 16
    %v1398 = vadd.s32 %v1397, %v1395
    %v1399 = vand.u32 %v1192, 65535
    %v1400 = vshra.s32 %v1192, 16
    %v1401 = vcvt.s32.f32 %v1399
    %v1402 = vcvt.s32.f32 %v1400
    %1403 = vmin.xlane.f32.xlu0 %v1402
    %v1404 = vpop.xlane.xlu0 %1403
    %vm1405 = vcmp.eq.f32.partialorder %v1402, %v1404
    %v1406 = vsel %vm1405, %v1401, inf
    %1407 = vmin.xlane.f32.xlu0 %v1406
    %v1408 = vpop.xlane.xlu0 %1407
    %v1409 = vcvt.f32.s32 %v1408
    %v1410 = vcvt.f32.s32 %v1404
    %v1411 = vshll.u32 %v1410, 16
    %v1412 = vadd.s32 %v1411, %v1409
    %v1413 = vand.u32 %v1193, 65535
    %v1414 = vshra.s32 %v1193, 16
    %v1415 = vcvt.s32.f32 %v1413
    %v1416 = vcvt.s32.f32 %v1414
    %1417 = vmin.xlane.f32.xlu0 %v1416
    %v1418 = vpop.xlane.xlu0 %1417
    %vm1419 = vcmp.eq.f32.partialorder %v1416, %v1418
    %v1420 = vsel %vm1419, %v1415, inf
    %1421 = vmin.xlane.f32.xlu0 %v1420
    %v1422 = vpop.xlane.xlu0 %1421
    %v1423 = vcvt.f32.s32 %v1422
    %v1424 = vcvt.f32.s32 %v1418
    %v1425 = vshll.u32 %v1424, 16
    %v1426 = vadd.s32 %v1425, %v1423
    %v1427 = vand.u32 %v1194, 65535
    %v1428 = vshra.s32 %v1194, 16
    %v1429 = vcvt.s32.f32 %v1427
    %v1430 = vcvt.s32.f32 %v1428
    %1431 = vmin.xlane.f32.xlu0 %v1430
    %v1432 = vpop.xlane.xlu0 %1431
    %vm1433 = vcmp.eq.f32.partialorder %v1430, %v1432
    %v1434 = vsel %vm1433, %v1429, inf
    %1435 = vmin.xlane.f32.xlu0 %v1434
    %v1436 = vpop.xlane.xlu0 %1435
    %v1437 = vcvt.f32.s32 %v1436
    %v1438 = vcvt.f32.s32 %v1432
    %v1439 = vshll.u32 %v1438, 16
    %v1440 = vadd.s32 %v1439, %v1437
    %v1441 = vand.u32 %v1195, 65535
    %v1442 = vshra.s32 %v1195, 16
    %v1443 = vcvt.s32.f32 %v1441
    %v1444 = vcvt.s32.f32 %v1442
    %1445 = vmin.xlane.f32.xlu0 %v1444
    %v1446 = vpop.xlane.xlu0 %1445
    %vm1447 = vcmp.eq.f32.partialorder %v1444, %v1446
    %v1448 = vsel %vm1447, %v1443, inf
    %1449 = vmin.xlane.f32.xlu0 %v1448
    %v1450 = vpop.xlane.xlu0 %1449
    %v1451 = vcvt.f32.s32 %v1450
    %v1452 = vcvt.f32.s32 %v1446
    %v1453 = vshll.u32 %v1452, 16
    %v1454 = vadd.s32 %v1453, %v1451
    %v1455 = vand.u32 %v1196, 65535
    %v1456 = vshra.s32 %v1196, 16
    %v1457 = vcvt.s32.f32 %v1455
    %v1458 = vcvt.s32.f32 %v1456
    %1459 = vmin.xlane.f32.xlu0 %v1458
    %v1460 = vpop.xlane.xlu0 %1459
    %vm1461 = vcmp.eq.f32.partialorder %v1458, %v1460
    %v1462 = vsel %vm1461, %v1457, inf
    %1463 = vmin.xlane.f32.xlu0 %v1462
    %v1464 = vpop.xlane.xlu0 %1463
    %v1465 = vcvt.f32.s32 %v1464
    %v1466 = vcvt.f32.s32 %v1460
    %v1467 = vshll.u32 %v1466, 16
    %v1468 = vadd.s32 %v1467, %v1465
    %v1469 = vand.u32 %v1197, 65535
    %v1470 = vshra.s32 %v1197, 16
    %v1471 = vcvt.s32.f32 %v1469
    %v1472 = vcvt.s32.f32 %v1470
    %1473 = vmin.xlane.f32.xlu0 %v1472
    %v1474 = vpop.xlane.xlu0 %1473
    %vm1475 = vcmp.eq.f32.partialorder %v1472, %v1474
    %v1476 = vsel %vm1475, %v1471, inf
    %1477 = vmin.xlane.f32.xlu0 %v1476
    %v1478 = vpop.xlane.xlu0 %1477
    %v1479 = vcvt.f32.s32 %v1478
    %v1480 = vcvt.f32.s32 %v1474
    %v1481 = vshll.u32 %v1480, 16
    %v1482 = vadd.s32 %v1481, %v1479
    %v1483 = vand.u32 %v1198, 65535
    %v1484 = vshra.s32 %v1198, 16
    %v1485 = vcvt.s32.f32 %v1483
    %v1486 = vcvt.s32.f32 %v1484
    %1487 = vmin.xlane.f32.xlu0 %v1486
    %v1488 = vpop.xlane.xlu0 %1487
    %vm1489 = vcmp.eq.f32.partialorder %v1486, %v1488
    %v1490 = vsel %vm1489, %v1485, inf
    %1491 = vmin.xlane.f32.xlu0 %v1490
    %v1492 = vpop.xlane.xlu0 %1491
    %v1493 = vcvt.f32.s32 %v1492
    %v1494 = vcvt.f32.s32 %v1488
    %v1495 = vshll.u32 %v1494, 16
    %v1496 = vadd.s32 %v1495, %v1493
    %v1497 = vand.u32 %v1199, 65535
    %v1498 = vshra.s32 %v1199, 16
    %v1499 = vcvt.s32.f32 %v1497
    %v1500 = vcvt.s32.f32 %v1498
    %1501 = vmin.xlane.f32.xlu0 %v1500
    %v1502 = vpop.xlane.xlu0 %1501
    %vm1503 = vcmp.eq.f32.partialorder %v1500, %v1502
    %v1504 = vsel %vm1503, %v1499, inf
    %1505 = vmin.xlane.f32.xlu0 %v1504
    %v1506 = vpop.xlane.xlu0 %1505
    %v1507 = vcvt.f32.s32 %v1506
    %v1508 = vcvt.f32.s32 %v1502
    %v1509 = vshll.u32 %v1508, 16
    %v1510 = vadd.s32 %v1509, %v1507
    %v1511 = vand.u32 %v1200, 65535
    %v1512 = vshra.s32 %v1200, 16
    %v1513 = vcvt.s32.f32 %v1511
    %v1514 = vcvt.s32.f32 %v1512
    %1515 = vmin.xlane.f32.xlu0 %v1514
    %v1516 = vpop.xlane.xlu0 %1515
    %vm1517 = vcmp.eq.f32.partialorder %v1514, %v1516
    %v1518 = vsel %vm1517, %v1513, inf
    %1519 = vmin.xlane.f32.xlu0 %v1518
    %v1520 = vpop.xlane.xlu0 %1519
    %v1521 = vcvt.f32.s32 %v1520
    %v1522 = vcvt.f32.s32 %v1516
    %v1523 = vshll.u32 %v1522, 16
    %v1524 = vadd.s32 %v1523, %v1521
    %v1525 = vand.u32 %v1201, 65535
    %v1526 = vshra.s32 %v1201, 16
    %v1527 = vcvt.s32.f32 %v1525
    %v1528 = vcvt.s32.f32 %v1526
    %1529 = vmin.xlane.f32.xlu0 %v1528
    %v1530 = vpop.xlane.xlu0 %1529
    %vm1531 = vcmp.eq.f32.partialorder %v1528, %v1530
    %v1532 = vsel %vm1531, %v1527, inf
    %1533 = vmin.xlane.f32.xlu0 %v1532
    %v1534 = vpop.xlane.xlu0 %1533
    %v1535 = vcvt.f32.s32 %v1534
    %v1536 = vcvt.f32.s32 %v1530
    %v1537 = vshll.u32 %v1536, 16
    %v1538 = vadd.s32 %v1537, %v1535
    %v1539 = vand.u32 %v1202, 65535
    %v1540 = vshra.s32 %v1202, 16
    %v1541 = vcvt.s32.f32 %v1539
    %v1542 = vcvt.s32.f32 %v1540
    %1543 = vmin.xlane.f32.xlu0 %v1542
    %v1544 = vpop.xlane.xlu0 %1543
    %vm1545 = vcmp.eq.f32.partialorder %v1542, %v1544
    %v1546 = vsel %vm1545, %v1541, inf
    %1547 = vmin.xlane.f32.xlu0 %v1546
    %v1548 = vpop.xlane.xlu0 %1547
    %v1549 = vcvt.f32.s32 %v1548
    %v1550 = vcvt.f32.s32 %v1544
    %v1551 = vshll.u32 %v1550, 16
    %v1552 = vadd.s32 %v1551, %v1549
    %v1553 = vand.u32 %v1203, 65535
    %v1554 = vshra.s32 %v1203, 16
    %v1555 = vcvt.s32.f32 %v1553
    %v1556 = vcvt.s32.f32 %v1554
    %1557 = vmin.xlane.f32.xlu0 %v1556
    %v1558 = vpop.xlane.xlu0 %1557
    %vm1559 = vcmp.eq.f32.partialorder %v1556, %v1558
    %v1560 = vsel %vm1559, %v1555, inf
    %1561 = vmin.xlane.f32.xlu0 %v1560
    %v1562 = vpop.xlane.xlu0 %1561
    %v1563 = vcvt.f32.s32 %v1562
    %v1564 = vcvt.f32.s32 %v1558
    %v1565 = vshll.u32 %v1564, 16
    %v1566 = vadd.s32 %v1565, %v1563
    %v1567 = vand.u32 %v1204, 65535
    %v1568 = vshra.s32 %v1204, 16
    %v1569 = vcvt.s32.f32 %v1567
    %v1570 = vcvt.s32.f32 %v1568
    %1571 = vmin.xlane.f32.xlu0 %v1570
    %v1572 = vpop.xlane.xlu0 %1571
    %vm1573 = vcmp.eq.f32.partialorder %v1570, %v1572
    %v1574 = vsel %vm1573, %v1569, inf
    %1575 = vmin.xlane.f32.xlu0 %v1574
    %v1576 = vpop.xlane.xlu0 %1575
    %v1577 = vcvt.f32.s32 %v1576
    %v1578 = vcvt.f32.s32 %v1572
    %v1579 = vshll.u32 %v1578, 16
    %v1580 = vadd.s32 %v1579, %v1577
    %v1581 = vand.u32 %v1205, 65535
    %v1582 = vshra.s32 %v1205, 16
    %v1583 = vcvt.s32.f32 %v1581
    %v1584 = vcvt.s32.f32 %v1582
    %1585 = vmin.xlane.f32.xlu0 %v1584
    %v1586 = vpop.xlane.xlu0 %1585
    %vm1587 = vcmp.eq.f32.partialorder %v1584, %v1586
    %v1588 = vsel %vm1587, %v1583, inf
    %1589 = vmin.xlane.f32.xlu0 %v1588
    %v1590 = vpop.xlane.xlu0 %1589
    %v1591 = vcvt.f32.s32 %v1590
    %v1592 = vcvt.f32.s32 %v1586
    %v1593 = vshll.u32 %v1592, 16
    %v1594 = vadd.s32 %v1593, %v1591
    %v1595 = vand.u32 %v1206, 65535
    %v1596 = vshra.s32 %v1206, 16
    %v1597 = vcvt.s32.f32 %v1595
    %v1598 = vcvt.s32.f32 %v1596
    %1599 = vmin.xlane.f32.xlu0 %v1598
    %v1600 = vpop.xlane.xlu0 %1599
    %vm1601 = vcmp.eq.f32.partialorder %v1598, %v1600
    %v1602 = vsel %vm1601, %v1597, inf
    %1603 = vmin.xlane.f32.xlu0 %v1602
    %v1604 = vpop.xlane.xlu0 %1603
    %v1605 = vcvt.f32.s32 %v1604
    %v1606 = vcvt.f32.s32 %v1600
    %v1607 = vshll.u32 %v1606, 16
    %v1608 = vadd.s32 %v1607, %v1605
    %v1609 = vand.u32 %v1207, 65535
    %v1610 = vshra.s32 %v1207, 16
    %v1611 = vcvt.s32.f32 %v1609
    %v1612 = vcvt.s32.f32 %v1610
    %1613 = vmin.xlane.f32.xlu0 %v1612
    %v1614 = vpop.xlane.xlu0 %1613
    %vm1615 = vcmp.eq.f32.partialorder %v1612, %v1614
    %v1616 = vsel %vm1615, %v1611, inf
    %1617 = vmin.xlane.f32.xlu0 %v1616
    %v1618 = vpop.xlane.xlu0 %1617
    %v1619 = vcvt.f32.s32 %v1618
    %v1620 = vcvt.f32.s32 %v1614
    %v1621 = vshll.u32 %v1620, 16
    %v1622 = vadd.s32 %v1621, %v1619
    %v1623 = vand.u32 %v1208, 65535
    %v1624 = vshra.s32 %v1208, 16
    %v1625 = vcvt.s32.f32 %v1623
    %v1626 = vcvt.s32.f32 %v1624
    %1627 = vmin.xlane.f32.xlu0 %v1626
    %v1628 = vpop.xlane.xlu0 %1627
    %vm1629 = vcmp.eq.f32.partialorder %v1626, %v1628
    %v1630 = vsel %vm1629, %v1625, inf
    %1631 = vmin.xlane.f32.xlu0 %v1630
    %v1632 = vpop.xlane.xlu0 %1631
    %v1633 = vcvt.f32.s32 %v1632
    %v1634 = vcvt.f32.s32 %v1628
    %v1635 = vshll.u32 %v1634, 16
    %v1636 = vadd.s32 %v1635, %v1633
    %v1637 = vand.u32 %v1209, 65535
    %v1638 = vshra.s32 %v1209, 16
    %v1639 = vcvt.s32.f32 %v1637
    %v1640 = vcvt.s32.f32 %v1638
    %1641 = vmin.xlane.f32.xlu0 %v1640
    %v1642 = vpop.xlane.xlu0 %1641
    %vm1643 = vcmp.eq.f32.partialorder %v1640, %v1642
    %v1644 = vsel %vm1643, %v1639, inf
    %1645 = vmin.xlane.f32.xlu0 %v1644
    %v1646 = vpop.xlane.xlu0 %1645
    %v1647 = vcvt.f32.s32 %v1646
    %v1648 = vcvt.f32.s32 %v1642
    %v1649 = vshll.u32 %v1648, 16
    %v1650 = vadd.s32 %v1649, %v1647
    %v1651 = vand.u32 %v1210, 65535
    %v1652 = vshra.s32 %v1210, 16
    %v1653 = vcvt.s32.f32 %v1651
    %v1654 = vcvt.s32.f32 %v1652
    %1655 = vmin.xlane.f32.xlu0 %v1654
    %v1656 = vpop.xlane.xlu0 %1655
    %vm1657 = vcmp.eq.f32.partialorder %v1654, %v1656
    %v1658 = vsel %vm1657, %v1653, inf
    %1659 = vmin.xlane.f32.xlu0 %v1658
    %v1660 = vpop.xlane.xlu0 %1659
    %v1661 = vcvt.f32.s32 %v1660
    %v1662 = vcvt.f32.s32 %v1656
    %v1663 = vshll.u32 %v1662, 16
    %v1664 = vadd.s32 %v1663, %v1661
    %v1665 = vand.u32 %v1211, 65535
    %v1666 = vshra.s32 %v1211, 16
    %v1667 = vcvt.s32.f32 %v1665
    %v1668 = vcvt.s32.f32 %v1666
    %1669 = vmin.xlane.f32.xlu0 %v1668
    %v1670 = vpop.xlane.xlu0 %1669
    %vm1671 = vcmp.eq.f32.partialorder %v1668, %v1670
    %v1672 = vsel %vm1671, %v1667, inf
    %1673 = vmin.xlane.f32.xlu0 %v1672
    %v1674 = vpop.xlane.xlu0 %1673
    %v1675 = vcvt.f32.s32 %v1674
    %v1676 = vcvt.f32.s32 %v1670
    %v1677 = vshll.u32 %v1676, 16
    %v1678 = vadd.s32 %v1677, %v1675
    %v1679 = vand.u32 %v1212, 65535
    %v1680 = vshra.s32 %v1212, 16
    %v1681 = vcvt.s32.f32 %v1679
    %v1682 = vcvt.s32.f32 %v1680
    %1683 = vmin.xlane.f32.xlu0 %v1682
    %v1684 = vpop.xlane.xlu0 %1683
    %vm1685 = vcmp.eq.f32.partialorder %v1682, %v1684
    %v1686 = vsel %vm1685, %v1681, inf
    %1687 = vmin.xlane.f32.xlu0 %v1686
    %v1688 = vpop.xlane.xlu0 %1687
    %v1689 = vcvt.f32.s32 %v1688
    %v1690 = vcvt.f32.s32 %v1684
    %v1691 = vshll.u32 %v1690, 16
    %v1692 = vadd.s32 %v1691, %v1689
    %v1693 = vand.u32 %v1213, 65535
    %v1694 = vshra.s32 %v1213, 16
    %v1695 = vcvt.s32.f32 %v1693
    %v1696 = vcvt.s32.f32 %v1694
    %1697 = vmin.xlane.f32.xlu0 %v1696
    %v1698 = vpop.xlane.xlu0 %1697
    %vm1699 = vcmp.eq.f32.partialorder %v1696, %v1698
    %v1700 = vsel %vm1699, %v1695, inf
    %1701 = vmin.xlane.f32.xlu0 %v1700
    %v1702 = vpop.xlane.xlu0 %1701
    %v1703 = vcvt.f32.s32 %v1702
    %v1704 = vcvt.f32.s32 %v1698
    %v1705 = vshll.u32 %v1704, 16
    %v1706 = vadd.s32 %v1705, %v1703
    %v1707 = vand.u32 %v1214, 65535
    %v1708 = vshra.s32 %v1214, 16
    %v1709 = vcvt.s32.f32 %v1707
    %v1710 = vcvt.s32.f32 %v1708
    %1711 = vmin.xlane.f32.xlu0 %v1710
    %v1712 = vpop.xlane.xlu0 %1711
    %vm1713 = vcmp.eq.f32.partialorder %v1710, %v1712
    %v1714 = vsel %vm1713, %v1709, inf
    %1715 = vmin.xlane.f32.xlu0 %v1714
    %v1716 = vpop.xlane.xlu0 %1715
    %v1717 = vcvt.f32.s32 %v1716
    %v1718 = vcvt.f32.s32 %v1712
    %v1719 = vshll.u32 %v1718, 16
    %v1720 = vadd.s32 %v1719, %v1717
    %v1721 = vand.u32 %v1215, 65535
    %v1722 = vshra.s32 %v1215, 16
    %v1723 = vcvt.s32.f32 %v1721
    %v1724 = vcvt.s32.f32 %v1722
    %1725 = vmin.xlane.f32.xlu0 %v1724
    %v1726 = vpop.xlane.xlu0 %1725
    %vm1727 = vcmp.eq.f32.partialorder %v1724, %v1726
    %v1728 = vsel %vm1727, %v1723, inf
    %1729 = vmin.xlane.f32.xlu0 %v1728
    %v1730 = vpop.xlane.xlu0 %1729
    %v1731 = vcvt.f32.s32 %v1730
    %v1732 = vcvt.f32.s32 %v1726
    %v1733 = vshll.u32 %v1732, 16
    %v1734 = vadd.s32 %v1733, %v1731
    %v1735 = vand.u32 %v1216, 65535
    %v1736 = vshra.s32 %v1216, 16
    %v1737 = vcvt.s32.f32 %v1735
    %v1738 = vcvt.s32.f32 %v1736
    %1739 = vmin.xlane.f32.xlu0 %v1738
    %v1740 = vpop.xlane.xlu0 %1739
    %vm1741 = vcmp.eq.f32.partialorder %v1738, %v1740
    %v1742 = vsel %vm1741, %v1737, inf
    %1743 = vmin.xlane.f32.xlu0 %v1742
    %v1744 = vpop.xlane.xlu0 %1743
    %v1745 = vcvt.f32.s32 %v1744
    %v1746 = vcvt.f32.s32 %v1740
    %v1747 = vshll.u32 %v1746, 16
    %v1748 = vadd.s32 %v1747, %v1745
    %v1749 = vand.u32 %v1217, 65535
    %v1750 = vshra.s32 %v1217, 16
    %v1751 = vcvt.s32.f32 %v1749
    %v1752 = vcvt.s32.f32 %v1750
    %1753 = vmin.xlane.f32.xlu0 %v1752
    %v1754 = vpop.xlane.xlu0 %1753
    %vm1755 = vcmp.eq.f32.partialorder %v1752, %v1754
    %v1756 = vsel %vm1755, %v1751, inf
    %1757 = vmin.xlane.f32.xlu0 %v1756
    %v1758 = vpop.xlane.xlu0 %1757
    %v1759 = vcvt.f32.s32 %v1758
    %v1760 = vcvt.f32.s32 %v1754
    %v1761 = vshll.u32 %v1760, 16
    %v1762 = vadd.s32 %v1761, %v1759
    %v1763 = vand.u32 %v1218, 65535
    %v1764 = vshra.s32 %v1218, 16
    %v1765 = vcvt.s32.f32 %v1763
    %v1766 = vcvt.s32.f32 %v1764
    %1767 = vmin.xlane.f32.xlu0 %v1766
    %v1768 = vpop.xlane.xlu0 %1767
    %vm1769 = vcmp.eq.f32.partialorder %v1766, %v1768
    %v1770 = vsel %vm1769, %v1765, inf
    %1771 = vmin.xlane.f32.xlu0 %v1770
    %v1772 = vpop.xlane.xlu0 %1771
    %v1773 = vcvt.f32.s32 %v1772
    %v1774 = vcvt.f32.s32 %v1768
    %v1775 = vshll.u32 %v1774, 16
    %v1776 = vadd.s32 %v1775, %v1773
    %v1777 = vand.u32 %v1219, 65535
    %v1778 = vshra.s32 %v1219, 16
    %v1779 = vcvt.s32.f32 %v1777
    %v1780 = vcvt.s32.f32 %v1778
    %1781 = vmin.xlane.f32.xlu0 %v1780
    %v1782 = vpop.xlane.xlu0 %1781
    %vm1783 = vcmp.eq.f32.partialorder %v1780, %v1782
    %v1784 = vsel %vm1783, %v1779, inf
    %1785 = vmin.xlane.f32.xlu0 %v1784
    %v1786 = vpop.xlane.xlu0 %1785
    %v1787 = vcvt.f32.s32 %v1786
    %v1788 = vcvt.f32.s32 %v1782
    %v1789 = vshll.u32 %v1788, 16
    %v1790 = vadd.s32 %v1789, %v1787
    %v1791 = vand.u32 %v1220, 65535
    %v1792 = vshra.s32 %v1220, 16
    %v1793 = vcvt.s32.f32 %v1791
    %v1794 = vcvt.s32.f32 %v1792
    %1795 = vmin.xlane.f32.xlu0 %v1794
    %v1796 = vpop.xlane.xlu0 %1795
    %vm1797 = vcmp.eq.f32.partialorder %v1794, %v1796
    %v1798 = vsel %vm1797, %v1793, inf
    %1799 = vmin.xlane.f32.xlu0 %v1798
    %v1800 = vpop.xlane.xlu0 %1799
    %v1801 = vcvt.f32.s32 %v1800
    %v1802 = vcvt.f32.s32 %v1796
    %v1803 = vshll.u32 %v1802, 16
    %v1804 = vadd.s32 %v1803, %v1801
    %v1805 = vand.u32 %v1221, 65535
    %v1806 = vshra.s32 %v1221, 16
    %v1807 = vcvt.s32.f32 %v1805
    %v1808 = vcvt.s32.f32 %v1806
    %1809 = vmin.xlane.f32.xlu0 %v1808
    %v1810 = vpop.xlane.xlu0 %1809
    %vm1811 = vcmp.eq.f32.partialorder %v1808, %v1810
    %v1812 = vsel %vm1811, %v1807, inf
    %1813 = vmin.xlane.f32.xlu0 %v1812
    %v1814 = vpop.xlane.xlu0 %1813
    %v1815 = vcvt.f32.s32 %v1814
    %v1816 = vcvt.f32.s32 %v1810
    %v1817 = vshll.u32 %v1816, 16
    %v1818 = vadd.s32 %v1817, %v1815
    %v1819 = vand.u32 %v1222, 65535
    %v1820 = vshra.s32 %v1222, 16
    %v1821 = vcvt.s32.f32 %v1819
    %v1822 = vcvt.s32.f32 %v1820
    %1823 = vmin.xlane.f32.xlu0 %v1822
    %v1824 = vpop.xlane.xlu0 %1823
    %vm1825 = vcmp.eq.f32.partialorder %v1822, %v1824
    %v1826 = vsel %vm1825, %v1821, inf
    %1827 = vmin.xlane.f32.xlu0 %v1826
    %v1828 = vpop.xlane.xlu0 %1827
    %v1829 = vcvt.f32.s32 %v1828
    %v1830 = vcvt.f32.s32 %v1824
    %v1831 = vshll.u32 %v1830, 16
    %v1832 = vadd.s32 %v1831, %v1829
    %v1833 = vand.u32 %v1223, 65535
    %v1834 = vshra.s32 %v1223, 16
    %v1835 = vcvt.s32.f32 %v1833
    %v1836 = vcvt.s32.f32 %v1834
    %1837 = vmin.xlane.f32.xlu0 %v1836
    %v1838 = vpop.xlane.xlu0 %1837
    %vm1839 = vcmp.eq.f32.partialorder %v1836, %v1838
    %v1840 = vsel %vm1839, %v1835, inf
    %1841 = vmin.xlane.f32.xlu0 %v1840
    %v1842 = vpop.xlane.xlu0 %1841
    %v1843 = vcvt.f32.s32 %v1842
    %v1844 = vcvt.f32.s32 %v1838
    %v1845 = vshll.u32 %v1844, 16
    %v1846 = vadd.s32 %v1845, %v1843
    %v1847 = vand.u32 %v1224, 65535
    %v1848 = vshra.s32 %v1224, 16
    %v1849 = vcvt.s32.f32 %v1847
    %v1850 = vcvt.s32.f32 %v1848
    %1851 = vmin.xlane.f32.xlu0 %v1850
    %v1852 = vpop.xlane.xlu0 %1851
    %vm1853 = vcmp.eq.f32.partialorder %v1850, %v1852
    %v1854 = vsel %vm1853, %v1849, inf
    %1855 = vmin.xlane.f32.xlu0 %v1854
    %v1856 = vpop.xlane.xlu0 %1855
    %v1857 = vcvt.f32.s32 %v1856
    %v1858 = vcvt.f32.s32 %v1852
    %v1859 = vshll.u32 %v1858, 16
    %v1860 = vadd.s32 %v1859, %v1857
    %v1861 = vand.u32 %v1225, 65535
    %v1862 = vshra.s32 %v1225, 16
    %v1863 = vcvt.s32.f32 %v1861
    %v1864 = vcvt.s32.f32 %v1862
    %1865 = vmin.xlane.f32.xlu0 %v1864
    %v1866 = vpop.xlane.xlu0 %1865
    %vm1867 = vcmp.eq.f32.partialorder %v1864, %v1866
    %v1868 = vsel %vm1867, %v1863, inf
    %1869 = vmin.xlane.f32.xlu0 %v1868
    %v1870 = vpop.xlane.xlu0 %1869
    %v1871 = vcvt.f32.s32 %v1870
    %v1872 = vcvt.f32.s32 %v1866
    %v1873 = vshll.u32 %v1872, 16
    %v1874 = vadd.s32 %v1873, %v1871
    %v1875 = vand.u32 %v1226, 65535
    %v1876 = vshra.s32 %v1226, 16
    %v1877 = vcvt.s32.f32 %v1875
    %v1878 = vcvt.s32.f32 %v1876
    %1879 = vmin.xlane.f32.xlu0 %v1878
    %v1880 = vpop.xlane.xlu0 %1879
    %vm1881 = vcmp.eq.f32.partialorder %v1878, %v1880
    %v1882 = vsel %vm1881, %v1877, inf
    %1883 = vmin.xlane.f32.xlu0 %v1882
    %v1884 = vpop.xlane.xlu0 %1883
    %v1885 = vcvt.f32.s32 %v1884
    %v1886 = vcvt.f32.s32 %v1880
    %v1887 = vshll.u32 %v1886, 16
    %v1888 = vadd.s32 %v1887, %v1885
    %v1889 = vand.u32 %v1227, 65535
    %v1890 = vshra.s32 %v1227, 16
    %v1891 = vcvt.s32.f32 %v1889
    %v1892 = vcvt.s32.f32 %v1890
    %1893 = vmin.xlane.f32.xlu0 %v1892
    %v1894 = vpop.xlane.xlu0 %1893
    %vm1895 = vcmp.eq.f32.partialorder %v1892, %v1894
    %v1896 = vsel %vm1895, %v1891, inf
    %1897 = vmin.xlane.f32.xlu0 %v1896
    %v1898 = vpop.xlane.xlu0 %1897
    %v1899 = vcvt.f32.s32 %v1898
    %v1900 = vcvt.f32.s32 %v1894
    %v1901 = vshll.u32 %v1900, 16
    %v1902 = vadd.s32 %v1901, %v1899
    %v1903 = vand.u32 %v1228, 65535
    %v1904 = vshra.s32 %v1228, 16
    %v1905 = vcvt.s32.f32 %v1903
    %v1906 = vcvt.s32.f32 %v1904
    %1907 = vmin.xlane.f32.xlu0 %v1906
    %v1908 = vpop.xlane.xlu0 %1907
    %vm1909 = vcmp.eq.f32.partialorder %v1906, %v1908
    %v1910 = vsel %vm1909, %v1905, inf
    %1911 = vmin.xlane.f32.xlu0 %v1910
    %v1912 = vpop.xlane.xlu0 %1911
    %v1913 = vcvt.f32.s32 %v1912
    %v1914 = vcvt.f32.s32 %v1908
    %v1915 = vshll.u32 %v1914, 16
    %v1916 = vadd.s32 %v1915, %v1913
    %v1917 = vand.u32 %v1229, 65535
    %v1918 = vshra.s32 %v1229, 16
    %v1919 = vcvt.s32.f32 %v1917
    %v1920 = vcvt.s32.f32 %v1918
    %1921 = vmin.xlane.f32.xlu0 %v1920
    %v1922 = vpop.xlane.xlu0 %1921
    %vm1923 = vcmp.eq.f32.partialorder %v1920, %v1922
    %v1924 = vsel %vm1923, %v1919, inf
    %1925 = vmin.xlane.f32.xlu0 %v1924
    %v1926 = vpop.xlane.xlu0 %1925
    %v1927 = vcvt.f32.s32 %v1926
    %v1928 = vcvt.f32.s32 %v1922
    %v1929 = vshll.u32 %v1928, 16
    %v1930 = vadd.s32 %v1929, %v1927
    %v1931 = vand.u32 %v1230, 65535
    %v1932 = vshra.s32 %v1230, 16
    %v1933 = vcvt.s32.f32 %v1931
    %v1934 = vcvt.s32.f32 %v1932
    %1935 = vmin.xlane.f32.xlu0 %v1934
    %v1936 = vpop.xlane.xlu0 %1935
    %vm1937 = vcmp.eq.f32.partialorder %v1934, %v1936
    %v1938 = vsel %vm1937, %v1933, inf
    %1939 = vmin.xlane.f32.xlu0 %v1938
    %v1940 = vpop.xlane.xlu0 %1939
    %v1941 = vcvt.f32.s32 %v1940
    %v1942 = vcvt.f32.s32 %v1936
    %v1943 = vshll.u32 %v1942, 16
    %v1944 = vadd.s32 %v1943, %v1941
    %v1945 = vand.u32 %v1231, 65535
    %v1946 = vshra.s32 %v1231, 16
    %v1947 = vcvt.s32.f32 %v1945
    %v1948 = vcvt.s32.f32 %v1946
    %1949 = vmin.xlane.f32.xlu0 %v1948
    %v1950 = vpop.xlane.xlu0 %1949
    %vm1951 = vcmp.eq.f32.partialorder %v1948, %v1950
    %v1952 = vsel %vm1951, %v1947, inf
    %1953 = vmin.xlane.f32.xlu0 %v1952
    %v1954 = vpop.xlane.xlu0 %1953
    %v1955 = vcvt.f32.s32 %v1954
    %v1956 = vcvt.f32.s32 %v1950
    %v1957 = vshll.u32 %v1956, 16
    %v1958 = vadd.s32 %v1957, %v1955
    %v1959 = vand.u32 %v1232, 65535
    %v1960 = vshra.s32 %v1232, 16
    %v1961 = vcvt.s32.f32 %v1959
    %v1962 = vcvt.s32.f32 %v1960
    %1963 = vmin.xlane.f32.xlu0 %v1962
    %v1964 = vpop.xlane.xlu0 %1963
    %vm1965 = vcmp.eq.f32.partialorder %v1962, %v1964
    %v1966 = vsel %vm1965, %v1961, inf
    %1967 = vmin.xlane.f32.xlu0 %v1966
    %v1968 = vpop.xlane.xlu0 %1967
    %v1969 = vcvt.f32.s32 %v1968
    %v1970 = vcvt.f32.s32 %v1964
    %v1971 = vshll.u32 %v1970, 16
    %v1972 = vadd.s32 %v1971, %v1969
    %v1973 = vand.u32 %v1233, 65535
    %v1974 = vshra.s32 %v1233, 16
    %v1975 = vcvt.s32.f32 %v1973
    %v1976 = vcvt.s32.f32 %v1974
    %1977 = vmin.xlane.f32.xlu0 %v1976
    %v1978 = vpop.xlane.xlu0 %1977
    %vm1979 = vcmp.eq.f32.partialorder %v1976, %v1978
    %v1980 = vsel %vm1979, %v1975, inf
    %1981 = vmin.xlane.f32.xlu0 %v1980
    %v1982 = vpop.xlane.xlu0 %1981
    %v1983 = vcvt.f32.s32 %v1982
    %v1984 = vcvt.f32.s32 %v1978
    %v1985 = vshll.u32 %v1984, 16
    %v1986 = vadd.s32 %v1985, %v1983
    %v1987 = vand.u32 %v1234, 65535
    %v1988 = vshra.s32 %v1234, 16
    %v1989 = vcvt.s32.f32 %v1987
    %v1990 = vcvt.s32.f32 %v1988
    %1991 = vmin.xlane.f32.xlu0 %v1990
    %v1992 = vpop.xlane.xlu0 %1991
    %vm1993 = vcmp.eq.f32.partialorder %v1990, %v1992
    %v1994 = vsel %vm1993, %v1989, inf
    %1995 = vmin.xlane.f32.xlu0 %v1994
    %v1996 = vpop.xlane.xlu0 %1995
    %v1997 = vcvt.f32.s32 %v1996
    %v1998 = vcvt.f32.s32 %v1992
    %v1999 = vshll.u32 %v1998, 16
    %v2000 = vadd.s32 %v1999, %v1997
    %v2001 = vand.u32 %v1235, 65535
    %v2002 = vshra.s32 %v1235, 16
    %v2003 = vcvt.s32.f32 %v2001
    %v2004 = vcvt.s32.f32 %v2002
    %2005 = vmin.xlane.f32.xlu0 %v2004
    %v2006 = vpop.xlane.xlu0 %2005
    %vm2007 = vcmp.eq.f32.partialorder %v2004, %v2006
    %v2008 = vsel %vm2007, %v2003, inf
    %2009 = vmin.xlane.f32.xlu0 %v2008
    %v2010 = vpop.xlane.xlu0 %2009
    %v2011 = vcvt.f32.s32 %v2010
    %v2012 = vcvt.f32.s32 %v2006
    %v2013 = vshll.u32 %v2012, 16
    %v2014 = vadd.s32 %v2013, %v2011
    %v2015 = vand.u32 %v1236, 65535
    %v2016 = vshra.s32 %v1236, 16
    %v2017 = vcvt.s32.f32 %v2015
    %v2018 = vcvt.s32.f32 %v2016
    %2019 = vmin.xlane.f32.xlu0 %v2018
    %v2020 = vpop.xlane.xlu0 %2019
    %vm2021 = vcmp.eq.f32.partialorder %v2018, %v2020
    %v2022 = vsel %vm2021, %v2017, inf
    %2023 = vmin.xlane.f32.xlu0 %v2022
    %v2024 = vpop.xlane.xlu0 %2023
    %v2025 = vcvt.f32.s32 %v2024
    %v2026 = vcvt.f32.s32 %v2020
    %v2027 = vshll.u32 %v2026, 16
    %v2028 = vadd.s32 %v2027, %v2025
    %v2029 = vand.u32 %v1237, 65535
    %v2030 = vshra.s32 %v1237, 16
    %v2031 = vcvt.s32.f32 %v2029
    %v2032 = vcvt.s32.f32 %v2030
    %2033 = vmin.xlane.f32.xlu0 %v2032
    %v2034 = vpop.xlane.xlu0 %2033
    %vm2035 = vcmp.eq.f32.partialorder %v2032, %v2034
    %v2036 = vsel %vm2035, %v2031, inf
    %2037 = vmin.xlane.f32.xlu0 %v2036
    %v2038 = vpop.xlane.xlu0 %2037
    %v2039 = vcvt.f32.s32 %v2038
    %v2040 = vcvt.f32.s32 %v2034
    %v2041 = vshll.u32 %v2040, 16
    %v2042 = vadd.s32 %v2041, %v2039
    %v2043 = vand.u32 %v1238, 65535
    %v2044 = vshra.s32 %v1238, 16
    %v2045 = vcvt.s32.f32 %v2043
    %v2046 = vcvt.s32.f32 %v2044
    %2047 = vmin.xlane.f32.xlu0 %v2046
    %v2048 = vpop.xlane.xlu0 %2047
    %vm2049 = vcmp.eq.f32.partialorder %v2046, %v2048
    %v2050 = vsel %vm2049, %v2045, inf
    %2051 = vmin.xlane.f32.xlu0 %v2050
    %v2052 = vpop.xlane.xlu0 %2051
    %v2053 = vcvt.f32.s32 %v2052
    %v2054 = vcvt.f32.s32 %v2048
    %v2055 = vshll.u32 %v2054, 16
    %v2056 = vadd.s32 %v2055, %v2053
    %v2057 = vand.u32 %v1239, 65535
    %v2058 = vshra.s32 %v1239, 16
    %v2059 = vcvt.s32.f32 %v2057
    %v2060 = vcvt.s32.f32 %v2058
    %2061 = vmin.xlane.f32.xlu0 %v2060
    %v2062 = vpop.xlane.xlu0 %2061
    %vm2063 = vcmp.eq.f32.partialorder %v2060, %v2062
    %v2064 = vsel %vm2063, %v2059, inf
    %2065 = vmin.xlane.f32.xlu0 %v2064
    %v2066 = vpop.xlane.xlu0 %2065
    %v2067 = vcvt.f32.s32 %v2066
    %v2068 = vcvt.f32.s32 %v2062
    %v2069 = vshll.u32 %v2068, 16
    %v2070 = vadd.s32 %v2069, %v2067
    %v2071 = vand.u32 %v1240, 65535
    %v2072 = vshra.s32 %v1240, 16
    %v2073 = vcvt.s32.f32 %v2071
    %v2074 = vcvt.s32.f32 %v2072
    %2075 = vmin.xlane.f32.xlu0 %v2074
    %v2076 = vpop.xlane.xlu0 %2075
    %vm2077 = vcmp.eq.f32.partialorder %v2074, %v2076
    %v2078 = vsel %vm2077, %v2073, inf
    %2079 = vmin.xlane.f32.xlu0 %v2078
    %v2080 = vpop.xlane.xlu0 %2079
    %v2081 = vcvt.f32.s32 %v2080
    %v2082 = vcvt.f32.s32 %v2076
    %v2083 = vshll.u32 %v2082, 16
    %v2084 = vadd.s32 %v2083, %v2081
    %v2085 = vand.u32 %v1241, 65535
    %v2086 = vshra.s32 %v1241, 16
    %v2087 = vcvt.s32.f32 %v2085
    %v2088 = vcvt.s32.f32 %v2086
    %2089 = vmin.xlane.f32.xlu0 %v2088
    %v2090 = vpop.xlane.xlu0 %2089
    %vm2091 = vcmp.eq.f32.partialorder %v2088, %v2090
    %v2092 = vsel %vm2091, %v2087, inf
    %2093 = vmin.xlane.f32.xlu0 %v2092
    %v2094 = vpop.xlane.xlu0 %2093
    %v2095 = vcvt.f32.s32 %v2094
    %v2096 = vcvt.f32.s32 %v2090
    %v2097 = vshll.u32 %v2096, 16
    %v2098 = vadd.s32 %v2097, %v2095
    %v2099 = vand.u32 %v1242, 65535
    %v2100 = vshra.s32 %v1242, 16
    %v2101 = vcvt.s32.f32 %v2099
    %v2102 = vcvt.s32.f32 %v2100
    %2103 = vmin.xlane.f32.xlu0 %v2102
    %v2104 = vpop.xlane.xlu0 %2103
    %vm2105 = vcmp.eq.f32.partialorder %v2102, %v2104
    %v2106 = vsel %vm2105, %v2101, inf
    %2107 = vmin.xlane.f32.xlu0 %v2106
    %v2108 = vpop.xlane.xlu0 %2107
    %v2109 = vcvt.f32.s32 %v2108
    %v2110 = vcvt.f32.s32 %v2104
    %v2111 = vshll.u32 %v2110, 16
    %v2112 = vadd.s32 %v2111, %v2109
    %v2113 = vand.u32 %v1243, 65535
    %v2114 = vshra.s32 %v1243, 16
    %v2115 = vcvt.s32.f32 %v2113
    %v2116 = vcvt.s32.f32 %v2114
    %2117 = vmin.xlane.f32.xlu0 %v2116
    %v2118 = vpop.xlane.xlu0 %2117
    %vm2119 = vcmp.eq.f32.partialorder %v2116, %v2118
    %v2120 = vsel %vm2119, %v2115, inf
    %2121 = vmin.xlane.f32.xlu0 %v2120
    %v2122 = vpop.xlane.xlu0 %2121
    %v2123 = vcvt.f32.s32 %v2122
    %v2124 = vcvt.f32.s32 %v2118
    %v2125 = vshll.u32 %v2124, 16
    %v2126 = vadd.s32 %v2125, %v2123
    %v2127 = vand.u32 %v1244, 65535
    %v2128 = vshra.s32 %v1244, 16
    %v2129 = vcvt.s32.f32 %v2127
    %v2130 = vcvt.s32.f32 %v2128
    %2131 = vmin.xlane.f32.xlu0 %v2130
    %v2132 = vpop.xlane.xlu0 %2131
    %vm2133 = vcmp.eq.f32.partialorder %v2130, %v2132
    %v2134 = vsel %vm2133, %v2129, inf
    %2135 = vmin.xlane.f32.xlu0 %v2134
    %v2136 = vpop.xlane.xlu0 %2135
    %v2137 = vcvt.f32.s32 %v2136
    %v2138 = vcvt.f32.s32 %v2132
    %v2139 = vshll.u32 %v2138, 16
    %v2140 = vadd.s32 %v2139, %v2137
    %vm2141 = vcmp.eq.s32.totalorder %v623, %v1258
    %vm2142 = vcmp.eq.s32.totalorder %v623, %v1272
    %vm2143 = vcmp.eq.s32.totalorder %v623, %v1286
    %vm2144 = vcmp.eq.s32.totalorder %v623, %v1300
    %vm2145 = vcmp.eq.s32.totalorder %v623, %v1314
    %vm2146 = vcmp.eq.s32.totalorder %v623, %v1328
    %vm2147 = vcmp.eq.s32.totalorder %v623, %v1342
    %vm2148 = vcmp.eq.s32.totalorder %v623, %v1356
    %vm2149 = vcmp.eq.s32.totalorder %v623, %v1370
    %vm2150 = vcmp.eq.s32.totalorder %v623, %v1384
    %vm2151 = vcmp.eq.s32.totalorder %v623, %v1398
    %vm2152 = vcmp.eq.s32.totalorder %v623, %v1412
    %vm2153 = vcmp.eq.s32.totalorder %v623, %v1426
    %vm2154 = vcmp.eq.s32.totalorder %v623, %v1440
    %vm2155 = vcmp.eq.s32.totalorder %v623, %v1454
    %vm2156 = vcmp.eq.s32.totalorder %v623, %v1468
    %vm2157 = vcmp.eq.s32.totalorder %v623, %v1482
    %vm2158 = vcmp.eq.s32.totalorder %v623, %v1496
    %vm2159 = vcmp.eq.s32.totalorder %v623, %v1510
    %vm2160 = vcmp.eq.s32.totalorder %v623, %v1524
    %vm2161 = vcmp.eq.s32.totalorder %v623, %v1538
    %vm2162 = vcmp.eq.s32.totalorder %v623, %v1552
    %vm2163 = vcmp.eq.s32.totalorder %v623, %v1566
    %vm2164 = vcmp.eq.s32.totalorder %v623, %v1580
    %vm2165 = vcmp.eq.s32.totalorder %v623, %v1594
    %vm2166 = vcmp.eq.s32.totalorder %v623, %v1608
    %vm2167 = vcmp.eq.s32.totalorder %v623, %v1622
    %vm2168 = vcmp.eq.s32.totalorder %v623, %v1636
    %vm2169 = vcmp.eq.s32.totalorder %v623, %v1650
    %vm2170 = vcmp.eq.s32.totalorder %v623, %v1664
    %vm2171 = vcmp.eq.s32.totalorder %v623, %v1678
    %vm2172 = vcmp.eq.s32.totalorder %v623, %v1692
    %vm2173 = vcmp.eq.s32.totalorder %v623, %v1706
    %vm2174 = vcmp.eq.s32.totalorder %v623, %v1720
    %vm2175 = vcmp.eq.s32.totalorder %v623, %v1734
    %vm2176 = vcmp.eq.s32.totalorder %v623, %v1748
    %vm2177 = vcmp.eq.s32.totalorder %v623, %v1762
    %vm2178 = vcmp.eq.s32.totalorder %v623, %v1776
    %vm2179 = vcmp.eq.s32.totalorder %v623, %v1790
    %vm2180 = vcmp.eq.s32.totalorder %v623, %v1804
    %vm2181 = vcmp.eq.s32.totalorder %v623, %v1818
    %vm2182 = vcmp.eq.s32.totalorder %v623, %v1832
    %vm2183 = vcmp.eq.s32.totalorder %v623, %v1846
    %vm2184 = vcmp.eq.s32.totalorder %v623, %v1860
    %vm2185 = vcmp.eq.s32.totalorder %v623, %v1874
    %vm2186 = vcmp.eq.s32.totalorder %v623, %v1888
    %vm2187 = vcmp.eq.s32.totalorder %v623, %v1902
    %vm2188 = vcmp.eq.s32.totalorder %v623, %v1916
    %vm2189 = vcmp.eq.s32.totalorder %v623, %v1930
    %vm2190 = vcmp.eq.s32.totalorder %v623, %v1944
    %vm2191 = vcmp.eq.s32.totalorder %v623, %v1958
    %vm2192 = vcmp.eq.s32.totalorder %v623, %v1972
    %vm2193 = vcmp.eq.s32.totalorder %v623, %v1986
    %vm2194 = vcmp.eq.s32.totalorder %v623, %v2000
    %vm2195 = vcmp.eq.s32.totalorder %v623, %v2014
    %vm2196 = vcmp.eq.s32.totalorder %v623, %v2028
    %vm2197 = vcmp.eq.s32.totalorder %v623, %v2042
    %vm2198 = vcmp.eq.s32.totalorder %v623, %v2056
    %vm2199 = vcmp.eq.s32.totalorder %v623, %v2070
    %vm2200 = vcmp.eq.s32.totalorder %v623, %v2084
    %vm2201 = vcmp.eq.s32.totalorder %v623, %v2098
    %vm2202 = vcmp.eq.s32.totalorder %v623, %v2112
    %vm2203 = vcmp.eq.s32.totalorder %v623, %v2126
    %vm2204 = vcmp.eq.s32.totalorder %v623, %v2140
    %v2205 = vsel %vm2141, 1, 0
    %v2206 = vsel %vm2142, 1, 0
    %v2207 = vsel %vm2143, 1, 0
    %v2208 = vsel %vm2144, 1, 0
    %v2209 = vsel %vm2145, 1, 0
    %v2210 = vsel %vm2146, 1, 0
    %v2211 = vsel %vm2147, 1, 0
    %v2212 = vsel %vm2148, 1, 0
    %v2213 = vsel %vm2149, 1, 0
    %v2214 = vsel %vm2150, 1, 0
    %v2215 = vsel %vm2151, 1, 0
    %v2216 = vsel %vm2152, 1, 0
    %v2217 = vsel %vm2153, 1, 0
    %v2218 = vsel %vm2154, 1, 0
    %v2219 = vsel %vm2155, 1, 0
    %v2220 = vsel %vm2156, 1, 0
    %v2221 = vsel %vm2157, 1, 0
    %v2222 = vsel %vm2158, 1, 0
    %v2223 = vsel %vm2159, 1, 0
    %v2224 = vsel %vm2160, 1, 0
    %v2225 = vsel %vm2161, 1, 0
    %v2226 = vsel %vm2162, 1, 0
    %v2227 = vsel %vm2163, 1, 0
    %v2228 = vsel %vm2164, 1, 0
    %v2229 = vsel %vm2165, 1, 0
    %v2230 = vsel %vm2166, 1, 0
    %v2231 = vsel %vm2167, 1, 0
    %v2232 = vsel %vm2168, 1, 0
    %v2233 = vsel %vm2169, 1, 0
    %v2234 = vsel %vm2170, 1, 0
    %v2235 = vsel %vm2171, 1, 0
    %v2236 = vsel %vm2172, 1, 0
    %v2237 = vsel %vm2173, 1, 0
    %v2238 = vsel %vm2174, 1, 0
    %v2239 = vsel %vm2175, 1, 0
    %v2240 = vsel %vm2176, 1, 0
    %v2241 = vsel %vm2177, 1, 0
    %v2242 = vsel %vm2178, 1, 0
    %v2243 = vsel %vm2179, 1, 0
    %v2244 = vsel %vm2180, 1, 0
    %v2245 = vsel %vm2181, 1, 0
    %v2246 = vsel %vm2182, 1, 0
    %v2247 = vsel %vm2183, 1, 0
    %v2248 = vsel %vm2184, 1, 0
    %v2249 = vsel %vm2185, 1, 0
    %v2250 = vsel %vm2186, 1, 0
    %v2251 = vsel %vm2187, 1, 0
    %v2252 = vsel %vm2188, 1, 0
    %v2253 = vsel %vm2189, 1, 0
    %v2254 = vsel %vm2190, 1, 0
    %v2255 = vsel %vm2191, 1, 0
    %v2256 = vsel %vm2192, 1, 0
    %v2257 = vsel %vm2193, 1, 0
    %v2258 = vsel %vm2194, 1, 0
    %v2259 = vsel %vm2195, 1, 0
    %v2260 = vsel %vm2196, 1, 0
    %v2261 = vsel %vm2197, 1, 0
    %v2262 = vsel %vm2198, 1, 0
    %v2263 = vsel %vm2199, 1, 0
    %v2264 = vsel %vm2200, 1, 0
    %v2265 = vsel %vm2201, 1, 0
    %v2266 = vsel %vm2202, 1, 0
    %v2267 = vsel %vm2203, 1, 0
    %v2268 = vsel %vm2204, 1, 0
    %v2269 = vcvt.s32.f32 %v2205
    %v2270 = vcvt.s32.f32 %v2206
    %v2271 = vcvt.s32.f32 %v2207
    %v2272 = vcvt.s32.f32 %v2208
    %v2273 = vcvt.s32.f32 %v2209
    %v2274 = vcvt.s32.f32 %v2210
    %v2275 = vcvt.s32.f32 %v2211
    %v2276 = vcvt.s32.f32 %v2212
    %v2277 = vcvt.s32.f32 %v2213
    %v2278 = vcvt.s32.f32 %v2214
    %v2279 = vcvt.s32.f32 %v2215
    %v2280 = vcvt.s32.f32 %v2216
    %v2281 = vcvt.s32.f32 %v2217
    %v2282 = vcvt.s32.f32 %v2218
    %v2283 = vcvt.s32.f32 %v2219
    %v2284 = vcvt.s32.f32 %v2220
    %v2285 = vcvt.s32.f32 %v2221
    %v2286 = vcvt.s32.f32 %v2222
    %v2287 = vcvt.s32.f32 %v2223
    %v2288 = vcvt.s32.f32 %v2224
    %v2289 = vcvt.s32.f32 %v2225
    %v2290 = vcvt.s32.f32 %v2226
    %v2291 = vcvt.s32.f32 %v2227
    %v2292 = vcvt.s32.f32 %v2228
    %v2293 = vcvt.s32.f32 %v2229
    %v2294 = vcvt.s32.f32 %v2230
    %v2295 = vcvt.s32.f32 %v2231
    %v2296 = vcvt.s32.f32 %v2232
    %v2297 = vcvt.s32.f32 %v2233
    %v2298 = vcvt.s32.f32 %v2234
    %v2299 = vcvt.s32.f32 %v2235
    %v2300 = vcvt.s32.f32 %v2236
    %v2301 = vcvt.s32.f32 %v2237
    %v2302 = vcvt.s32.f32 %v2238
    %v2303 = vcvt.s32.f32 %v2239
    %v2304 = vcvt.s32.f32 %v2240
    %v2305 = vcvt.s32.f32 %v2241
    %v2306 = vcvt.s32.f32 %v2242
    %v2307 = vcvt.s32.f32 %v2243
    %v2308 = vcvt.s32.f32 %v2244
    %v2309 = vcvt.s32.f32 %v2245
    %v2310 = vcvt.s32.f32 %v2246
    %v2311 = vcvt.s32.f32 %v2247
    %v2312 = vcvt.s32.f32 %v2248
    %v2313 = vcvt.s32.f32 %v2249
    %v2314 = vcvt.s32.f32 %v2250
    %v2315 = vcvt.s32.f32 %v2251
    %v2316 = vcvt.s32.f32 %v2252
    %v2317 = vcvt.s32.f32 %v2253
    %v2318 = vcvt.s32.f32 %v2254
    %v2319 = vcvt.s32.f32 %v2255
    %v2320 = vcvt.s32.f32 %v2256
    %v2321 = vcvt.s32.f32 %v2257
    %v2322 = vcvt.s32.f32 %v2258
    %v2323 = vcvt.s32.f32 %v2259
    %v2324 = vcvt.s32.f32 %v2260
    %v2325 = vcvt.s32.f32 %v2261
    %v2326 = vcvt.s32.f32 %v2262
    %v2327 = vcvt.s32.f32 %v2263
    %v2328 = vcvt.s32.f32 %v2264
    %v2329 = vcvt.s32.f32 %v2265
    %v2330 = vcvt.s32.f32 %v2266
    %v2331 = vcvt.s32.f32 %v2267
    %v2332 = vcvt.s32.f32 %v2268
    %v2333 = vpack.c.bf16 %v2270, %v2269
    %v2334 = vpack.c.bf16 %v2272, %v2271
    %v2335 = vpack.c.bf16 %v2274, %v2273
    %v2336 = vpack.c.bf16 %v2276, %v2275
    %v2337 = vpack.c.bf16 %v2278, %v2277
    %v2338 = vpack.c.bf16 %v2280, %v2279
    %v2339 = vpack.c.bf16 %v2282, %v2281
    %v2340 = vpack.c.bf16 %v2284, %v2283
    %v2341 = vpack.c.bf16 %v2286, %v2285
    %v2342 = vpack.c.bf16 %v2288, %v2287
    %v2343 = vpack.c.bf16 %v2290, %v2289
    %v2344 = vpack.c.bf16 %v2292, %v2291
    %v2345 = vpack.c.bf16 %v2294, %v2293
    %v2346 = vpack.c.bf16 %v2296, %v2295
    %v2347 = vpack.c.bf16 %v2298, %v2297
    %v2348 = vpack.c.bf16 %v2300, %v2299
    %v2349 = vpack.c.bf16 %v2302, %v2301
    %v2350 = vpack.c.bf16 %v2304, %v2303
    %v2351 = vpack.c.bf16 %v2306, %v2305
    %v2352 = vpack.c.bf16 %v2308, %v2307
    %v2353 = vpack.c.bf16 %v2310, %v2309
    %v2354 = vpack.c.bf16 %v2312, %v2311
    %v2355 = vpack.c.bf16 %v2314, %v2313
    %v2356 = vpack.c.bf16 %v2316, %v2315
    %v2357 = vpack.c.bf16 %v2318, %v2317
    %v2358 = vpack.c.bf16 %v2320, %v2319
    %v2359 = vpack.c.bf16 %v2322, %v2321
    %v2360 = vpack.c.bf16 %v2324, %v2323
    %v2361 = vpack.c.bf16 %v2326, %v2325
    %v2362 = vpack.c.bf16 %v2328, %v2327
    %v2363 = vpack.c.bf16 %v2330, %v2329
    %v2364 = vpack.c.bf16 %v2332, %v2331
    %2365 = vmatpush.bf16.msra.mxu0 %v680
    %2366 = vmatpush.bf16.msra.mxu0 %v679
    %2367 = vmatpush.bf16.msra.mxu0 %v678
    %2368 = vmatpush.bf16.msra.mxu0 %v677
    %2369 = vmatpush.bf16.msra.mxu0 %v676
    %2370 = vmatpush.bf16.msra.mxu0 %v675
    %2371 = vmatpush.bf16.msra.mxu0 %v674
    %2372 = vmatpush.bf16.msra.mxu0 %v673
    %2373 = vmatmul.bf16.gmra.mxu0 %v2333
    %v2374 = vpop.f32.mrf.mxu0
    %v2375 = vadd.f32 0.0, %v2374
    %v2376 = vpop.f32.mrf.mxu0
    %v2377 = vadd.f32 0.0, %v2376
    %2378 = vmatmul.bf16.gmra.mxu0 %v2334
    %v2379 = vpop.f32.mrf.mxu0
    %v2380 = vadd.f32 0.0, %v2379
    %v2381 = vpop.f32.mrf.mxu0
    %v2382 = vadd.f32 0.0, %v2381
    %2383 = vmatmul.bf16.gmra.mxu0 %v2335
    %v2384 = vpop.f32.mrf.mxu0
    %v2385 = vadd.f32 0.0, %v2384
    %v2386 = vpop.f32.mrf.mxu0
    %v2387 = vadd.f32 0.0, %v2386
    %2388 = vmatmul.bf16.gmra.mxu0 %v2336
    %v2389 = vpop.f32.mrf.mxu0
    %v2390 = vadd.f32 0.0, %v2389
    %v2391 = vpop.f32.mrf.mxu0
    %v2392 = vadd.f32 0.0, %v2391
    %2393 = vmatmul.bf16.gmra.mxu0 %v2337
    %v2394 = vpop.f32.mrf.mxu0
    %v2395 = vadd.f32 0.0, %v2394
    %v2396 = vpop.f32.mrf.mxu0
    %v2397 = vadd.f32 0.0, %v2396
    %2398 = vmatmul.bf16.gmra.mxu0 %v2338
    %v2399 = vpop.f32.mrf.mxu0
    %v2400 = vadd.f32 0.0, %v2399
    %v2401 = vpop.f32.mrf.mxu0
    %v2402 = vadd.f32 0.0, %v2401
    %2403 = vmatmul.bf16.gmra.mxu0 %v2339
    %v2404 = vpop.f32.mrf.mxu0
    %v2405 = vadd.f32 0.0, %v2404
    %v2406 = vpop.f32.mrf.mxu0
    %v2407 = vadd.f32 0.0, %v2406
    %2408 = vmatmul.bf16.gmra.mxu0 %v2340
    %v2409 = vpop.f32.mrf.mxu0
    %v2410 = vadd.f32 0.0, %v2409
    %v2411 = vpop.f32.mrf.mxu0
    %v2412 = vadd.f32 0.0, %v2411
    %2413 = vmatmul.bf16.gmra.mxu0 %v2341
    %v2414 = vpop.f32.mrf.mxu0
    %v2415 = vadd.f32 0.0, %v2414
    %v2416 = vpop.f32.mrf.mxu0
    %v2417 = vadd.f32 0.0, %v2416
    %2418 = vmatmul.bf16.gmra.mxu0 %v2342
    %v2419 = vpop.f32.mrf.mxu0
    %v2420 = vadd.f32 0.0, %v2419
    %v2421 = vpop.f32.mrf.mxu0
    %v2422 = vadd.f32 0.0, %v2421
    %2423 = vmatmul.bf16.gmra.mxu0 %v2343
    %v2424 = vpop.f32.mrf.mxu0
    %v2425 = vadd.f32 0.0, %v2424
    %v2426 = vpop.f32.mrf.mxu0
    %v2427 = vadd.f32 0.0, %v2426
    %2428 = vmatmul.bf16.gmra.mxu0 %v2344
    %v2429 = vpop.f32.mrf.mxu0
    %v2430 = vadd.f32 0.0, %v2429
    %v2431 = vpop.f32.mrf.mxu0
    %v2432 = vadd.f32 0.0, %v2431
    %2433 = vmatmul.bf16.gmra.mxu0 %v2345
    %v2434 = vpop.f32.mrf.mxu0
    %v2435 = vadd.f32 0.0, %v2434
    %v2436 = vpop.f32.mrf.mxu0
    %v2437 = vadd.f32 0.0, %v2436
    %2438 = vmatmul.bf16.gmra.mxu0 %v2346
    %v2439 = vpop.f32.mrf.mxu0
    %v2440 = vadd.f32 0.0, %v2439
    %v2441 = vpop.f32.mrf.mxu0
    %v2442 = vadd.f32 0.0, %v2441
    %2443 = vmatmul.bf16.gmra.mxu0 %v2347
    %v2444 = vpop.f32.mrf.mxu0
    %v2445 = vadd.f32 0.0, %v2444
    %v2446 = vpop.f32.mrf.mxu0
    %v2447 = vadd.f32 0.0, %v2446
    %2448 = vmatmul.bf16.gmra.mxu0 %v2348
    %v2449 = vpop.f32.mrf.mxu0
    %v2450 = vadd.f32 0.0, %v2449
    %v2451 = vpop.f32.mrf.mxu0
    %v2452 = vadd.f32 0.0, %v2451
    %2453 = vmatmul.bf16.gmra.mxu0 %v2349
    %v2454 = vpop.f32.mrf.mxu0
    %v2455 = vadd.f32 0.0, %v2454
    %v2456 = vpop.f32.mrf.mxu0
    %v2457 = vadd.f32 0.0, %v2456
    %2458 = vmatmul.bf16.gmra.mxu0 %v2350
    %v2459 = vpop.f32.mrf.mxu0
    %v2460 = vadd.f32 0.0, %v2459
    %v2461 = vpop.f32.mrf.mxu0
    %v2462 = vadd.f32 0.0, %v2461
    %2463 = vmatmul.bf16.gmra.mxu0 %v2351
    %v2464 = vpop.f32.mrf.mxu0
    %v2465 = vadd.f32 0.0, %v2464
    %v2466 = vpop.f32.mrf.mxu0
    %v2467 = vadd.f32 0.0, %v2466
    %2468 = vmatmul.bf16.gmra.mxu0 %v2352
    %v2469 = vpop.f32.mrf.mxu0
    %v2470 = vadd.f32 0.0, %v2469
    %v2471 = vpop.f32.mrf.mxu0
    %v2472 = vadd.f32 0.0, %v2471
    %2473 = vmatmul.bf16.gmra.mxu0 %v2353
    %v2474 = vpop.f32.mrf.mxu0
    %v2475 = vadd.f32 0.0, %v2474
    %v2476 = vpop.f32.mrf.mxu0
    %v2477 = vadd.f32 0.0, %v2476
    %2478 = vmatmul.bf16.gmra.mxu0 %v2354
    %v2479 = vpop.f32.mrf.mxu0
    %v2480 = vadd.f32 0.0, %v2479
    %v2481 = vpop.f32.mrf.mxu0
    %v2482 = vadd.f32 0.0, %v2481
    %2483 = vmatmul.bf16.gmra.mxu0 %v2355
    %v2484 = vpop.f32.mrf.mxu0
    %v2485 = vadd.f32 0.0, %v2484
    %v2486 = vpop.f32.mrf.mxu0
    %v2487 = vadd.f32 0.0, %v2486
    %2488 = vmatmul.bf16.gmra.mxu0 %v2356
    %v2489 = vpop.f32.mrf.mxu0
    %v2490 = vadd.f32 0.0, %v2489
    %v2491 = vpop.f32.mrf.mxu0
    %v2492 = vadd.f32 0.0, %v2491
    %2493 = vmatmul.bf16.gmra.mxu0 %v2357
    %v2494 = vpop.f32.mrf.mxu0
    %v2495 = vadd.f32 0.0, %v2494
    %v2496 = vpop.f32.mrf.mxu0
    %v2497 = vadd.f32 0.0, %v2496
    %2498 = vmatmul.bf16.gmra.mxu0 %v2358
    %v2499 = vpop.f32.mrf.mxu0
    %v2500 = vadd.f32 0.0, %v2499
    %v2501 = vpop.f32.mrf.mxu0
    %v2502 = vadd.f32 0.0, %v2501
    %2503 = vmatmul.bf16.gmra.mxu0 %v2359
    %v2504 = vpop.f32.mrf.mxu0
    %v2505 = vadd.f32 0.0, %v2504
    %v2506 = vpop.f32.mrf.mxu0
    %v2507 = vadd.f32 0.0, %v2506
    %2508 = vmatmul.bf16.gmra.mxu0 %v2360
    %v2509 = vpop.f32.mrf.mxu0
    %v2510 = vadd.f32 0.0, %v2509
    %v2511 = vpop.f32.mrf.mxu0
    %v2512 = vadd.f32 0.0, %v2511
    %2513 = vmatmul.bf16.gmra.mxu0 %v2361
    %v2514 = vpop.f32.mrf.mxu0
    %v2515 = vadd.f32 0.0, %v2514
    %v2516 = vpop.f32.mrf.mxu0
    %v2517 = vadd.f32 0.0, %v2516
    %2518 = vmatmul.bf16.gmra.mxu0 %v2362
    %v2519 = vpop.f32.mrf.mxu0
    %v2520 = vadd.f32 0.0, %v2519
    %v2521 = vpop.f32.mrf.mxu0
    %v2522 = vadd.f32 0.0, %v2521
    %2523 = vmatmul.bf16.gmra.mxu0 %v2363
    %v2524 = vpop.f32.mrf.mxu0
    %v2525 = vadd.f32 0.0, %v2524
    %v2526 = vpop.f32.mrf.mxu0
    %v2527 = vadd.f32 0.0, %v2526
    %2528 = vmatmul.bf16.gmra.mxu0 %v2364
    %v2529 = vpop.f32.mrf.mxu0
    %v2530 = vadd.f32 0.0, %v2529
    %v2531 = vpop.f32.mrf.mxu0
    %v2532 = vadd.f32 0.0, %v2531
    %2533 = vdwg.mxu0
    %vm2534 = vcmp.lt.f32.partialorder %v990, inf
    %vm2535 = vcmp.lt.f32.partialorder %v992, inf
    %vm2536 = vcmp.lt.f32.partialorder %v994, inf
    %vm2537 = vcmp.lt.f32.partialorder %v996, inf
    %vm2538 = vcmp.lt.f32.partialorder %v998, inf
    %vm2539 = vcmp.lt.f32.partialorder %v1000, inf
    %vm2540 = vcmp.lt.f32.partialorder %v1002, inf
    %vm2541 = vcmp.lt.f32.partialorder %v1004, inf
    %vm2542 = vcmp.lt.f32.partialorder %v1006, inf
    %vm2543 = vcmp.lt.f32.partialorder %v1008, inf
    %vm2544 = vcmp.lt.f32.partialorder %v1010, inf
    %vm2545 = vcmp.lt.f32.partialorder %v1012, inf
    %vm2546 = vcmp.lt.f32.partialorder %v1014, inf
    %vm2547 = vcmp.lt.f32.partialorder %v1016, inf
    %vm2548 = vcmp.lt.f32.partialorder %v1018, inf
    %vm2549 = vcmp.lt.f32.partialorder %v1020, inf
    %vm2550 = vcmp.lt.f32.partialorder %v1022, inf
    %vm2551 = vcmp.lt.f32.partialorder %v1024, inf
    %vm2552 = vcmp.lt.f32.partialorder %v1026, inf
    %vm2553 = vcmp.lt.f32.partialorder %v1028, inf
    %vm2554 = vcmp.lt.f32.partialorder %v1030, inf
    %vm2555 = vcmp.lt.f32.partialorder %v1032, inf
    %vm2556 = vcmp.lt.f32.partialorder %v1034, inf
    %vm2557 = vcmp.lt.f32.partialorder %v1036, inf
    %vm2558 = vcmp.lt.f32.partialorder %v1038, inf
    %vm2559 = vcmp.lt.f32.partialorder %v1040, inf
    %vm2560 = vcmp.lt.f32.partialorder %v1042, inf
    %vm2561 = vcmp.lt.f32.partialorder %v1044, inf
    %vm2562 = vcmp.lt.f32.partialorder %v1046, inf
    %vm2563 = vcmp.lt.f32.partialorder %v1048, inf
    %vm2564 = vcmp.lt.f32.partialorder %v1050, inf
    %vm2565 = vcmp.lt.f32.partialorder %v1052, inf
    %vm2566 = vcmp.lt.f32.partialorder %v1054, inf
    %vm2567 = vcmp.lt.f32.partialorder %v1056, inf
    %vm2568 = vcmp.lt.f32.partialorder %v1058, inf
    %vm2569 = vcmp.lt.f32.partialorder %v1060, inf
    %vm2570 = vcmp.lt.f32.partialorder %v1062, inf
    %vm2571 = vcmp.lt.f32.partialorder %v1064, inf
    %vm2572 = vcmp.lt.f32.partialorder %v1066, inf
    %vm2573 = vcmp.lt.f32.partialorder %v1068, inf
    %vm2574 = vcmp.lt.f32.partialorder %v1070, inf
    %vm2575 = vcmp.lt.f32.partialorder %v1072, inf
    %vm2576 = vcmp.lt.f32.partialorder %v1074, inf
    %vm2577 = vcmp.lt.f32.partialorder %v1076, inf
    %vm2578 = vcmp.lt.f32.partialorder %v1078, inf
    %vm2579 = vcmp.lt.f32.partialorder %v1080, inf
    %vm2580 = vcmp.lt.f32.partialorder %v1082, inf
    %vm2581 = vcmp.lt.f32.partialorder %v1084, inf
    %vm2582 = vcmp.lt.f32.partialorder %v1086, inf
    %vm2583 = vcmp.lt.f32.partialorder %v1088, inf
    %vm2584 = vcmp.lt.f32.partialorder %v1090, inf
    %vm2585 = vcmp.lt.f32.partialorder %v1092, inf
    %vm2586 = vcmp.lt.f32.partialorder %v1094, inf
    %vm2587 = vcmp.lt.f32.partialorder %v1096, inf
    %vm2588 = vcmp.lt.f32.partialorder %v1098, inf
    %vm2589 = vcmp.lt.f32.partialorder %v1100, inf
    %vm2590 = vcmp.lt.f32.partialorder %v1102, inf
    %vm2591 = vcmp.lt.f32.partialorder %v1104, inf
    %vm2592 = vcmp.lt.f32.partialorder %v1106, inf
    %vm2593 = vcmp.lt.f32.partialorder %v1108, inf
    %vm2594 = vcmp.lt.f32.partialorder %v1110, inf
    %vm2595 = vcmp.lt.f32.partialorder %v1112, inf
    %vm2596 = vcmp.lt.f32.partialorder %v1114, inf
    %vm2597 = vcmp.lt.f32.partialorder %v1116, inf
    %v2598 = vsel %vm2534, 1, 0
    %v2599 = vsel %vm2535, 1, 0
    %v2600 = vsel %vm2536, 1, 0
    %v2601 = vsel %vm2537, 1, 0
    %v2602 = vsel %vm2538, 1, 0
    %v2603 = vsel %vm2539, 1, 0
    %v2604 = vsel %vm2540, 1, 0
    %v2605 = vsel %vm2541, 1, 0
    %v2606 = vsel %vm2542, 1, 0
    %v2607 = vsel %vm2543, 1, 0
    %v2608 = vsel %vm2544, 1, 0
    %v2609 = vsel %vm2545, 1, 0
    %v2610 = vsel %vm2546, 1, 0
    %v2611 = vsel %vm2547, 1, 0
    %v2612 = vsel %vm2548, 1, 0
    %v2613 = vsel %vm2549, 1, 0
    %v2614 = vsel %vm2550, 1, 0
    %v2615 = vsel %vm2551, 1, 0
    %v2616 = vsel %vm2552, 1, 0
    %v2617 = vsel %vm2553, 1, 0
    %v2618 = vsel %vm2554, 1, 0
    %v2619 = vsel %vm2555, 1, 0
    %v2620 = vsel %vm2556, 1, 0
    %v2621 = vsel %vm2557, 1, 0
    %v2622 = vsel %vm2558, 1, 0
    %v2623 = vsel %vm2559, 1, 0
    %v2624 = vsel %vm2560, 1, 0
    %v2625 = vsel %vm2561, 1, 0
    %v2626 = vsel %vm2562, 1, 0
    %v2627 = vsel %vm2563, 1, 0
    %v2628 = vsel %vm2564, 1, 0
    %v2629 = vsel %vm2565, 1, 0
    %v2630 = vsel %vm2566, 1, 0
    %v2631 = vsel %vm2567, 1, 0
    %v2632 = vsel %vm2568, 1, 0
    %v2633 = vsel %vm2569, 1, 0
    %v2634 = vsel %vm2570, 1, 0
    %v2635 = vsel %vm2571, 1, 0
    %v2636 = vsel %vm2572, 1, 0
    %v2637 = vsel %vm2573, 1, 0
    %v2638 = vsel %vm2574, 1, 0
    %v2639 = vsel %vm2575, 1, 0
    %v2640 = vsel %vm2576, 1, 0
    %v2641 = vsel %vm2577, 1, 0
    %v2642 = vsel %vm2578, 1, 0
    %v2643 = vsel %vm2579, 1, 0
    %v2644 = vsel %vm2580, 1, 0
    %v2645 = vsel %vm2581, 1, 0
    %v2646 = vsel %vm2582, 1, 0
    %v2647 = vsel %vm2583, 1, 0
    %v2648 = vsel %vm2584, 1, 0
    %v2649 = vsel %vm2585, 1, 0
    %v2650 = vsel %vm2586, 1, 0
    %v2651 = vsel %vm2587, 1, 0
    %v2652 = vsel %vm2588, 1, 0
    %v2653 = vsel %vm2589, 1, 0
    %v2654 = vsel %vm2590, 1, 0
    %v2655 = vsel %vm2591, 1, 0
    %v2656 = vsel %vm2592, 1, 0
    %v2657 = vsel %vm2593, 1, 0
    %v2658 = vsel %vm2594, 1, 0
    %v2659 = vsel %vm2595, 1, 0
    %v2660 = vsel %vm2596, 1, 0
    %v2661 = vsel %vm2597, 1, 0
    %vm2662 = vcmp.eq.s32.totalorder %v2598, 1
    %vm2663 = vcmp.eq.s32.totalorder %v2599, 1
    %vm2664 = vcmp.eq.s32.totalorder %v2600, 1
    %vm2665 = vcmp.eq.s32.totalorder %v2601, 1
    %vm2666 = vcmp.eq.s32.totalorder %v2602, 1
    %vm2667 = vcmp.eq.s32.totalorder %v2603, 1
    %vm2668 = vcmp.eq.s32.totalorder %v2604, 1
    %vm2669 = vcmp.eq.s32.totalorder %v2605, 1
    %vm2670 = vcmp.eq.s32.totalorder %v2606, 1
    %vm2671 = vcmp.eq.s32.totalorder %v2607, 1
    %vm2672 = vcmp.eq.s32.totalorder %v2608, 1
    %vm2673 = vcmp.eq.s32.totalorder %v2609, 1
    %vm2674 = vcmp.eq.s32.totalorder %v2610, 1
    %vm2675 = vcmp.eq.s32.totalorder %v2611, 1
    %vm2676 = vcmp.eq.s32.totalorder %v2612, 1
    %vm2677 = vcmp.eq.s32.totalorder %v2613, 1
    %vm2678 = vcmp.eq.s32.totalorder %v2614, 1
    %vm2679 = vcmp.eq.s32.totalorder %v2615, 1
    %vm2680 = vcmp.eq.s32.totalorder %v2616, 1
    %vm2681 = vcmp.eq.s32.totalorder %v2617, 1
    %vm2682 = vcmp.eq.s32.totalorder %v2618, 1
    %vm2683 = vcmp.eq.s32.totalorder %v2619, 1
    %vm2684 = vcmp.eq.s32.totalorder %v2620, 1
    %vm2685 = vcmp.eq.s32.totalorder %v2621, 1
    %vm2686 = vcmp.eq.s32.totalorder %v2622, 1
    %vm2687 = vcmp.eq.s32.totalorder %v2623, 1
    %vm2688 = vcmp.eq.s32.totalorder %v2624, 1
    %vm2689 = vcmp.eq.s32.totalorder %v2625, 1
    %vm2690 = vcmp.eq.s32.totalorder %v2626, 1
    %vm2691 = vcmp.eq.s32.totalorder %v2627, 1
    %vm2692 = vcmp.eq.s32.totalorder %v2628, 1
    %vm2693 = vcmp.eq.s32.totalorder %v2629, 1
    %vm2694 = vcmp.eq.s32.totalorder %v2630, 1
    %vm2695 = vcmp.eq.s32.totalorder %v2631, 1
    %vm2696 = vcmp.eq.s32.totalorder %v2632, 1
    %vm2697 = vcmp.eq.s32.totalorder %v2633, 1
    %vm2698 = vcmp.eq.s32.totalorder %v2634, 1
    %vm2699 = vcmp.eq.s32.totalorder %v2635, 1
    %vm2700 = vcmp.eq.s32.totalorder %v2636, 1
    %vm2701 = vcmp.eq.s32.totalorder %v2637, 1
    %vm2702 = vcmp.eq.s32.totalorder %v2638, 1
    %vm2703 = vcmp.eq.s32.totalorder %v2639, 1
    %vm2704 = vcmp.eq.s32.totalorder %v2640, 1
    %vm2705 = vcmp.eq.s32.totalorder %v2641, 1
    %vm2706 = vcmp.eq.s32.totalorder %v2642, 1
    %vm2707 = vcmp.eq.s32.totalorder %v2643, 1
    %vm2708 = vcmp.eq.s32.totalorder %v2644, 1
    %vm2709 = vcmp.eq.s32.totalorder %v2645, 1
    %vm2710 = vcmp.eq.s32.totalorder %v2646, 1
    %vm2711 = vcmp.eq.s32.totalorder %v2647, 1
    %vm2712 = vcmp.eq.s32.totalorder %v2648, 1
    %vm2713 = vcmp.eq.s32.totalorder %v2649, 1
    %vm2714 = vcmp.eq.s32.totalorder %v2650, 1
    %vm2715 = vcmp.eq.s32.totalorder %v2651, 1
    %vm2716 = vcmp.eq.s32.totalorder %v2652, 1
    %vm2717 = vcmp.eq.s32.totalorder %v2653, 1
    %vm2718 = vcmp.eq.s32.totalorder %v2654, 1
    %vm2719 = vcmp.eq.s32.totalorder %v2655, 1
    %vm2720 = vcmp.eq.s32.totalorder %v2656, 1
    %vm2721 = vcmp.eq.s32.totalorder %v2657, 1
    %vm2722 = vcmp.eq.s32.totalorder %v2658, 1
    %vm2723 = vcmp.eq.s32.totalorder %v2659, 1
    %vm2724 = vcmp.eq.s32.totalorder %v2660, 1
    %vm2725 = vcmp.eq.s32.totalorder %v2661, 1
    %v2726 = vsel %vm2662, %v2375, 0.0
    %v2727 = vsel %vm2663, %v2377, 0.0
    %v2728 = vsel %vm2664, %v2380, 0.0
    %v2729 = vsel %vm2665, %v2382, 0.0
    %v2730 = vsel %vm2666, %v2385, 0.0
    %v2731 = vsel %vm2667, %v2387, 0.0
    %v2732 = vsel %vm2668, %v2390, 0.0
    %v2733 = vsel %vm2669, %v2392, 0.0
    %v2734 = vsel %vm2670, %v2395, 0.0
    %v2735 = vsel %vm2671, %v2397, 0.0
    %v2736 = vsel %vm2672, %v2400, 0.0
    %v2737 = vsel %vm2673, %v2402, 0.0
    %v2738 = vsel %vm2674, %v2405, 0.0
    %v2739 = vsel %vm2675, %v2407, 0.0
    %v2740 = vsel %vm2676, %v2410, 0.0
    %v2741 = vsel %vm2677, %v2412, 0.0
    %v2742 = vsel %vm2678, %v2415, 0.0
    %v2743 = vsel %vm2679, %v2417, 0.0
    %v2744 = vsel %vm2680, %v2420, 0.0
    %v2745 = vsel %vm2681, %v2422, 0.0
    %v2746 = vsel %vm2682, %v2425, 0.0
    %v2747 = vsel %vm2683, %v2427, 0.0
    %v2748 = vsel %vm2684, %v2430, 0.0
    %v2749 = vsel %vm2685, %v2432, 0.0
    %v2750 = vsel %vm2686, %v2435, 0.0
    %v2751 = vsel %vm2687, %v2437, 0.0
    %v2752 = vsel %vm2688, %v2440, 0.0
    %v2753 = vsel %vm2689, %v2442, 0.0
    %v2754 = vsel %vm2690, %v2445, 0.0
    %v2755 = vsel %vm2691, %v2447, 0.0
    %v2756 = vsel %vm2692, %v2450, 0.0
    %v2757 = vsel %vm2693, %v2452, 0.0
    %v2758 = vsel %vm2694, %v2455, 0.0
    %v2759 = vsel %vm2695, %v2457, 0.0
    %v2760 = vsel %vm2696, %v2460, 0.0
    %v2761 = vsel %vm2697, %v2462, 0.0
    %v2762 = vsel %vm2698, %v2465, 0.0
    %v2763 = vsel %vm2699, %v2467, 0.0
    %v2764 = vsel %vm2700, %v2470, 0.0
    %v2765 = vsel %vm2701, %v2472, 0.0
    %v2766 = vsel %vm2702, %v2475, 0.0
    %v2767 = vsel %vm2703, %v2477, 0.0
    %v2768 = vsel %vm2704, %v2480, 0.0
    %v2769 = vsel %vm2705, %v2482, 0.0
    %v2770 = vsel %vm2706, %v2485, 0.0
    %v2771 = vsel %vm2707, %v2487, 0.0
    %v2772 = vsel %vm2708, %v2490, 0.0
    %v2773 = vsel %vm2709, %v2492, 0.0
    %v2774 = vsel %vm2710, %v2495, 0.0
    %v2775 = vsel %vm2711, %v2497, 0.0
    %v2776 = vsel %vm2712, %v2500, 0.0
    %v2777 = vsel %vm2713, %v2502, 0.0
    %v2778 = vsel %vm2714, %v2505, 0.0
    %v2779 = vsel %vm2715, %v2507, 0.0
    %v2780 = vsel %vm2716, %v2510, 0.0
    %v2781 = vsel %vm2717, %v2512, 0.0
    %v2782 = vsel %vm2718, %v2515, 0.0
    %v2783 = vsel %vm2719, %v2517, 0.0
    %v2784 = vsel %vm2720, %v2520, 0.0
    %v2785 = vsel %vm2721, %v2522, 0.0
    %v2786 = vsel %vm2722, %v2525, 0.0
    %v2787 = vsel %vm2723, %v2527, 0.0
    %v2788 = vsel %vm2724, %v2530, 0.0
    %v2789 = vsel %vm2725, %v2532, 0.0
    %v2790 = vlaneseq
    %v2791 = vshrl.u32 %v2790, 7
    %v2792 = vadd.s32 %v2791, 8
    %v2793 = vadd.s32 %v2791, 16
    %v2794 = vadd.s32 %v2791, 24
    %v2795 = vadd.s32 %v2791, 32
    %v2796 = vadd.s32 %v2791, 40
    %v2797 = vadd.s32 %v2791, 48
    %v2798 = vadd.s32 %v2791, 56
    %v2799 = vadd.s32 %v2791, 64
    %v2800 = vadd.s32 %v2791, 72
    %v2801 = vadd.s32 %v2791, 80
    %v2802 = vadd.s32 %v2791, 88
    %v2803 = vadd.s32 %v2791, 96
    %v2804 = vadd.s32 %v2791, 104
    %v2805 = vadd.s32 %v2791, 112
    %v2806 = vadd.s32 %v2791, 120
    %v2807 = vadd.s32 %v2791, 128
    %v2808 = vadd.s32 %v2791, 136
    %v2809 = vadd.s32 %v2791, 144
    %v2810 = vadd.s32 %v2791, 152
    %v2811 = vadd.s32 %v2791, 160
    %v2812 = vadd.s32 %v2791, 168
    %v2813 = vadd.s32 %v2791, 176
    %v2814 = vadd.s32 %v2791, 184
    %v2815 = vadd.s32 %v2791, 192
    %v2816 = vadd.s32 %v2791, 200
    %v2817 = vadd.s32 %v2791, 208
    %v2818 = vadd.s32 %v2791, 216
    %v2819 = vadd.s32 %v2791, 224
    %v2820 = vadd.s32 %v2791, 232
    %v2821 = vadd.s32 %v2791, 240
    %v2822 = vadd.s32 %v2791, 248
    %v2823 = vadd.s32 %v2791, 256
    %v2824 = vadd.s32 %v2791, 264
    %v2825 = vadd.s32 %v2791, 272
    %v2826 = vadd.s32 %v2791, 280
    %v2827 = vadd.s32 %v2791, 288
    %v2828 = vadd.s32 %v2791, 296
    %v2829 = vadd.s32 %v2791, 304
    %v2830 = vadd.s32 %v2791, 312
    %v2831 = vadd.s32 %v2791, 320
    %v2832 = vadd.s32 %v2791, 328
    %v2833 = vadd.s32 %v2791, 336
    %v2834 = vadd.s32 %v2791, 344
    %v2835 = vadd.s32 %v2791, 352
    %v2836 = vadd.s32 %v2791, 360
    %v2837 = vadd.s32 %v2791, 368
    %v2838 = vadd.s32 %v2791, 376
    %v2839 = vadd.s32 %v2791, 384
    %v2840 = vadd.s32 %v2791, 392
    %v2841 = vadd.s32 %v2791, 400
    %v2842 = vadd.s32 %v2791, 408
    %v2843 = vadd.s32 %v2791, 416
    %v2844 = vadd.s32 %v2791, 424
    %v2845 = vadd.s32 %v2791, 432
    %v2846 = vadd.s32 %v2791, 440
    %v2847 = vadd.s32 %v2791, 448
    %v2848 = vadd.s32 %v2791, 456
    %v2849 = vadd.s32 %v2791, 464
    %v2850 = vadd.s32 %v2791, 472
    %v2851 = vadd.s32 %v2791, 480
    %v2852 = vadd.s32 %v2791, 488
    %v2853 = vadd.s32 %v2791, 496
    %v2854 = vadd.s32 %v2791, 504
    %s2855 = smul.u32 0, 512
    %v2856 = vstv %s2855
    %v2857 = vadd.s32 %v2791, %v2856
    %v2858 = vadd.s32 %v2792, %v2856
    %v2859 = vadd.s32 %v2793, %v2856
    %v2860 = vadd.s32 %v2794, %v2856
    %v2861 = vadd.s32 %v2795, %v2856
    %v2862 = vadd.s32 %v2796, %v2856
    %v2863 = vadd.s32 %v2797, %v2856
    %v2864 = vadd.s32 %v2798, %v2856
    %v2865 = vadd.s32 %v2799, %v2856
    %v2866 = vadd.s32 %v2800, %v2856
    %v2867 = vadd.s32 %v2801, %v2856
    %v2868 = vadd.s32 %v2802, %v2856
    %v2869 = vadd.s32 %v2803, %v2856
    %v2870 = vadd.s32 %v2804, %v2856
    %v2871 = vadd.s32 %v2805, %v2856
    %v2872 = vadd.s32 %v2806, %v2856
    %v2873 = vadd.s32 %v2807, %v2856
    %v2874 = vadd.s32 %v2808, %v2856
    %v2875 = vadd.s32 %v2809, %v2856
    %v2876 = vadd.s32 %v2810, %v2856
    %v2877 = vadd.s32 %v2811, %v2856
    %v2878 = vadd.s32 %v2812, %v2856
    %v2879 = vadd.s32 %v2813, %v2856
    %v2880 = vadd.s32 %v2814, %v2856
    %v2881 = vadd.s32 %v2815, %v2856
    %v2882 = vadd.s32 %v2816, %v2856
    %v2883 = vadd.s32 %v2817, %v2856
    %v2884 = vadd.s32 %v2818, %v2856
    %v2885 = vadd.s32 %v2819, %v2856
    %v2886 = vadd.s32 %v2820, %v2856
    %v2887 = vadd.s32 %v2821, %v2856
    %v2888 = vadd.s32 %v2822, %v2856
    %v2889 = vadd.s32 %v2823, %v2856
    %v2890 = vadd.s32 %v2824, %v2856
    %v2891 = vadd.s32 %v2825, %v2856
    %v2892 = vadd.s32 %v2826, %v2856
    %v2893 = vadd.s32 %v2827, %v2856
    %v2894 = vadd.s32 %v2828, %v2856
    %v2895 = vadd.s32 %v2829, %v2856
    %v2896 = vadd.s32 %v2830, %v2856
    %v2897 = vadd.s32 %v2831, %v2856
    %v2898 = vadd.s32 %v2832, %v2856
    %v2899 = vadd.s32 %v2833, %v2856
    %v2900 = vadd.s32 %v2834, %v2856
    %v2901 = vadd.s32 %v2835, %v2856
    %v2902 = vadd.s32 %v2836, %v2856
    %v2903 = vadd.s32 %v2837, %v2856
    %v2904 = vadd.s32 %v2838, %v2856
    %v2905 = vadd.s32 %v2839, %v2856
    %v2906 = vadd.s32 %v2840, %v2856
    %v2907 = vadd.s32 %v2841, %v2856
    %v2908 = vadd.s32 %v2842, %v2856
    %v2909 = vadd.s32 %v2843, %v2856
    %v2910 = vadd.s32 %v2844, %v2856
    %v2911 = vadd.s32 %v2845, %v2856
    %v2912 = vadd.s32 %v2846, %v2856
    %v2913 = vadd.s32 %v2847, %v2856
    %v2914 = vadd.s32 %v2848, %v2856
    %v2915 = vadd.s32 %v2849, %v2856
    %v2916 = vadd.s32 %v2850, %v2856
    %v2917 = vadd.s32 %v2851, %v2856
    %v2918 = vadd.s32 %v2852, %v2856
    %v2919 = vadd.s32 %v2853, %v2856
    %v2920 = vadd.s32 %v2854, %v2856
    %s2921 = sld [smem:[#allocation2]]
    %v2922 = vstv %s2921
    %vm2923 = vcmp.lt.s32.totalorder %v2857, %v2922
    %vm2924 = vcmp.lt.s32.totalorder %v2858, %v2922
    %vm2925 = vcmp.lt.s32.totalorder %v2859, %v2922
    %vm2926 = vcmp.lt.s32.totalorder %v2860, %v2922
    %vm2927 = vcmp.lt.s32.totalorder %v2861, %v2922
    %vm2928 = vcmp.lt.s32.totalorder %v2862, %v2922
    %vm2929 = vcmp.lt.s32.totalorder %v2863, %v2922
    %vm2930 = vcmp.lt.s32.totalorder %v2864, %v2922
    %vm2931 = vcmp.lt.s32.totalorder %v2865, %v2922
    %vm2932 = vcmp.lt.s32.totalorder %v2866, %v2922
    %vm2933 = vcmp.lt.s32.totalorder %v2867, %v2922
    %vm2934 = vcmp.lt.s32.totalorder %v2868, %v2922
    %vm2935 = vcmp.lt.s32.totalorder %v2869, %v2922
    %vm2936 = vcmp.lt.s32.totalorder %v2870, %v2922
    %vm2937 = vcmp.lt.s32.totalorder %v2871, %v2922
    %vm2938 = vcmp.lt.s32.totalorder %v2872, %v2922
    %vm2939 = vcmp.lt.s32.totalorder %v2873, %v2922
    %vm2940 = vcmp.lt.s32.totalorder %v2874, %v2922
    %vm2941 = vcmp.lt.s32.totalorder %v2875, %v2922
    %vm2942 = vcmp.lt.s32.totalorder %v2876, %v2922
    %vm2943 = vcmp.lt.s32.totalorder %v2877, %v2922
    %vm2944 = vcmp.lt.s32.totalorder %v2878, %v2922
    %vm2945 = vcmp.lt.s32.totalorder %v2879, %v2922
    %vm2946 = vcmp.lt.s32.totalorder %v2880, %v2922
    %vm2947 = vcmp.lt.s32.totalorder %v2881, %v2922
    %vm2948 = vcmp.lt.s32.totalorder %v2882, %v2922
    %vm2949 = vcmp.lt.s32.totalorder %v2883, %v2922
    %vm2950 = vcmp.lt.s32.totalorder %v2884, %v2922
    %vm2951 = vcmp.lt.s32.totalorder %v2885, %v2922
    %vm2952 = vcmp.lt.s32.totalorder %v2886, %v2922
    %vm2953 = vcmp.lt.s32.totalorder %v2887, %v2922
    %vm2954 = vcmp.lt.s32.totalorder %v2888, %v2922
    %vm2955 = vcmp.lt.s32.totalorder %v2889, %v2922
    %vm2956 = vcmp.lt.s32.totalorder %v2890, %v2922
    %vm2957 = vcmp.lt.s32.totalorder %v2891, %v2922
    %vm2958 = vcmp.lt.s32.totalorder %v2892, %v2922
    %vm2959 = vcmp.lt.s32.totalorder %v2893, %v2922
    %vm2960 = vcmp.lt.s32.totalorder %v2894, %v2922
    %vm2961 = vcmp.lt.s32.totalorder %v2895, %v2922
    %vm2962 = vcmp.lt.s32.totalorder %v2896, %v2922
    %vm2963 = vcmp.lt.s32.totalorder %v2897, %v2922
    %vm2964 = vcmp.lt.s32.totalorder %v2898, %v2922
    %vm2965 = vcmp.lt.s32.totalorder %v2899, %v2922
    %vm2966 = vcmp.lt.s32.totalorder %v2900, %v2922
    %vm2967 = vcmp.lt.s32.totalorder %v2901, %v2922
    %vm2968 = vcmp.lt.s32.totalorder %v2902, %v2922
    %vm2969 = vcmp.lt.s32.totalorder %v2903, %v2922
    %vm2970 = vcmp.lt.s32.totalorder %v2904, %v2922
    %vm2971 = vcmp.lt.s32.totalorder %v2905, %v2922
    %vm2972 = vcmp.lt.s32.totalorder %v2906, %v2922
    %vm2973 = vcmp.lt.s32.totalorder %v2907, %v2922
    %vm2974 = vcmp.lt.s32.totalorder %v2908, %v2922
    %vm2975 = vcmp.lt.s32.totalorder %v2909, %v2922
    %vm2976 = vcmp.lt.s32.totalorder %v2910, %v2922
    %vm2977 = vcmp.lt.s32.totalorder %v2911, %v2922
    %vm2978 = vcmp.lt.s32.totalorder %v2912, %v2922
    %vm2979 = vcmp.lt.s32.totalorder %v2913, %v2922
    %vm2980 = vcmp.lt.s32.totalorder %v2914, %v2922
    %vm2981 = vcmp.lt.s32.totalorder %v2915, %v2922
    %vm2982 = vcmp.lt.s32.totalorder %v2916, %v2922
    %vm2983 = vcmp.lt.s32.totalorder %v2917, %v2922
    %vm2984 = vcmp.lt.s32.totalorder %v2918, %v2922
    %vm2985 = vcmp.lt.s32.totalorder %v2919, %v2922
    %vm2986 = vcmp.lt.s32.totalorder %v2920, %v2922
    %v2987 = vsel %vm2923, 1, 0
    %v2988 = vsel %vm2924, 1, 0
    %v2989 = vsel %vm2925, 1, 0
    %v2990 = vsel %vm2926, 1, 0
    %v2991 = vsel %vm2927, 1, 0
    %v2992 = vsel %vm2928, 1, 0
    %v2993 = vsel %vm2929, 1, 0
    %v2994 = vsel %vm2930, 1, 0
    %v2995 = vsel %vm2931, 1, 0
    %v2996 = vsel %vm2932, 1, 0
    %v2997 = vsel %vm2933, 1, 0
    %v2998 = vsel %vm2934, 1, 0
    %v2999 = vsel %vm2935, 1, 0
    %v3000 = vsel %vm2936, 1, 0
    %v3001 = vsel %vm2937, 1, 0
    %v3002 = vsel %vm2938, 1, 0
    %v3003 = vsel %vm2939, 1, 0
    %v3004 = vsel %vm2940, 1, 0
    %v3005 = vsel %vm2941, 1, 0
    %v3006 = vsel %vm2942, 1, 0
    %v3007 = vsel %vm2943, 1, 0
    %v3008 = vsel %vm2944, 1, 0
    %v3009 = vsel %vm2945, 1, 0
    %v3010 = vsel %vm2946, 1, 0
    %v3011 = vsel %vm2947, 1, 0
    %v3012 = vsel %vm2948, 1, 0
    %v3013 = vsel %vm2949, 1, 0
    %v3014 = vsel %vm2950, 1, 0
    %v3015 = vsel %vm2951, 1, 0
    %v3016 = vsel %vm2952, 1, 0
    %v3017 = vsel %vm2953, 1, 0
    %v3018 = vsel %vm2954, 1, 0
    %v3019 = vsel %vm2955, 1, 0
    %v3020 = vsel %vm2956, 1, 0
    %v3021 = vsel %vm2957, 1, 0
    %v3022 = vsel %vm2958, 1, 0
    %v3023 = vsel %vm2959, 1, 0
    %v3024 = vsel %vm2960, 1, 0
    %v3025 = vsel %vm2961, 1, 0
    %v3026 = vsel %vm2962, 1, 0
    %v3027 = vsel %vm2963, 1, 0
    %v3028 = vsel %vm2964, 1, 0
    %v3029 = vsel %vm2965, 1, 0
    %v3030 = vsel %vm2966, 1, 0
    %v3031 = vsel %vm2967, 1, 0
    %v3032 = vsel %vm2968, 1, 0
    %v3033 = vsel %vm2969, 1, 0
    %v3034 = vsel %vm2970, 1, 0
    %v3035 = vsel %vm2971, 1, 0
    %v3036 = vsel %vm2972, 1, 0
    %v3037 = vsel %vm2973, 1, 0
    %v3038 = vsel %vm2974, 1, 0
    %v3039 = vsel %vm2975, 1, 0
    %v3040 = vsel %vm2976, 1, 0
    %v3041 = vsel %vm2977, 1, 0
    %v3042 = vsel %vm2978, 1, 0
    %v3043 = vsel %vm2979, 1, 0
    %v3044 = vsel %vm2980, 1, 0
    %v3045 = vsel %vm2981, 1, 0
    %v3046 = vsel %vm2982, 1, 0
    %v3047 = vsel %vm2983, 1, 0
    %v3048 = vsel %vm2984, 1, 0
    %v3049 = vsel %vm2985, 1, 0
    %v3050 = vsel %vm2986, 1, 0
    %v3051 = vcvt.s32.f32 %v2987
    %v3052 = vcvt.s32.f32 %v2988
    %v3053 = vcvt.s32.f32 %v2989
    %v3054 = vcvt.s32.f32 %v2990
    %v3055 = vcvt.s32.f32 %v2991
    %v3056 = vcvt.s32.f32 %v2992
    %v3057 = vcvt.s32.f32 %v2993
    %v3058 = vcvt.s32.f32 %v2994
    %v3059 = vcvt.s32.f32 %v2995
    %v3060 = vcvt.s32.f32 %v2996
    %v3061 = vcvt.s32.f32 %v2997
    %v3062 = vcvt.s32.f32 %v2998
    %v3063 = vcvt.s32.f32 %v2999
    %v3064 = vcvt.s32.f32 %v3000
    %v3065 = vcvt.s32.f32 %v3001
    %v3066 = vcvt.s32.f32 %v3002
    %v3067 = vcvt.s32.f32 %v3003
    %v3068 = vcvt.s32.f32 %v3004
    %v3069 = vcvt.s32.f32 %v3005
    %v3070 = vcvt.s32.f32 %v3006
    %v3071 = vcvt.s32.f32 %v3007
    %v3072 = vcvt.s32.f32 %v3008
    %v3073 = vcvt.s32.f32 %v3009
    %v3074 = vcvt.s32.f32 %v3010
    %v3075 = vcvt.s32.f32 %v3011
    %v3076 = vcvt.s32.f32 %v3012
    %v3077 = vcvt.s32.f32 %v3013
    %v3078 = vcvt.s32.f32 %v3014
    %v3079 = vcvt.s32.f32 %v3015
    %v3080 = vcvt.s32.f32 %v3016
    %v3081 = vcvt.s32.f32 %v3017
    %v3082 = vcvt.s32.f32 %v3018
    %v3083 = vcvt.s32.f32 %v3019
    %v3084 = vcvt.s32.f32 %v3020
    %v3085 = vcvt.s32.f32 %v3021
    %v3086 = vcvt.s32.f32 %v3022
    %v3087 = vcvt.s32.f32 %v3023
    %v3088 = vcvt.s32.f32 %v3024
    %v3089 = vcvt.s32.f32 %v3025
    %v3090 = vcvt.s32.f32 %v3026
    %v3091 = vcvt.s32.f32 %v3027
    %v3092 = vcvt.s32.f32 %v3028
    %v3093 = vcvt.s32.f32 %v3029
    %v3094 = vcvt.s32.f32 %v3030
    %v3095 = vcvt.s32.f32 %v3031
    %v3096 = vcvt.s32.f32 %v3032
    %v3097 = vcvt.s32.f32 %v3033
    %v3098 = vcvt.s32.f32 %v3034
    %v3099 = vcvt.s32.f32 %v3035
    %v3100 = vcvt.s32.f32 %v3036
    %v3101 = vcvt.s32.f32 %v3037
    %v3102 = vcvt.s32.f32 %v3038
    %v3103 = vcvt.s32.f32 %v3039
    %v3104 = vcvt.s32.f32 %v3040
    %v3105 = vcvt.s32.f32 %v3041
    %v3106 = vcvt.s32.f32 %v3042
    %v3107 = vcvt.s32.f32 %v3043
    %v3108 = vcvt.s32.f32 %v3044
    %v3109 = vcvt.s32.f32 %v3045
    %v3110 = vcvt.s32.f32 %v3046
    %v3111 = vcvt.s32.f32 %v3047
    %v3112 = vcvt.s32.f32 %v3048
    %v3113 = vcvt.s32.f32 %v3049
    %v3114 = vcvt.s32.f32 %v3050
    %v3115 = vsub.f32 %v431, %v2726
    %v3116 = vsub.f32 %v433, %v2727
    %v3117 = vsub.f32 %v436, %v2728
    %v3118 = vsub.f32 %v438, %v2729
    %v3119 = vsub.f32 %v441, %v2730
    %v3120 = vsub.f32 %v443, %v2731
    %v3121 = vsub.f32 %v446, %v2732
    %v3122 = vsub.f32 %v448, %v2733
    %v3123 = vsub.f32 %v451, %v2734
    %v3124 = vsub.f32 %v453, %v2735
    %v3125 = vsub.f32 %v456, %v2736
    %v3126 = vsub.f32 %v458, %v2737
    %v3127 = vsub.f32 %v461, %v2738
    %v3128 = vsub.f32 %v463, %v2739
    %v3129 = vsub.f32 %v466, %v2740
    %v3130 = vsub.f32 %v468, %v2741
    %v3131 = vsub.f32 %v471, %v2742
    %v3132 = vsub.f32 %v473, %v2743
    %v3133 = vsub.f32 %v476, %v2744
    %v3134 = vsub.f32 %v478, %v2745
    %v3135 = vsub.f32 %v481, %v2746
    %v3136 = vsub.f32 %v483, %v2747
    %v3137 = vsub.f32 %v486, %v2748
    %v3138 = vsub.f32 %v488, %v2749
    %v3139 = vsub.f32 %v491, %v2750
    %v3140 = vsub.f32 %v493, %v2751
    %v3141 = vsub.f32 %v496, %v2752
    %v3142 = vsub.f32 %v498, %v2753
    %v3143 = vsub.f32 %v501, %v2754
    %v3144 = vsub.f32 %v503, %v2755
    %v3145 = vsub.f32 %v506, %v2756
    %v3146 = vsub.f32 %v508, %v2757
    %v3147 = vsub.f32 %v511, %v2758
    %v3148 = vsub.f32 %v513, %v2759
    %v3149 = vsub.f32 %v516, %v2760
    %v3150 = vsub.f32 %v518, %v2761
    %v3151 = vsub.f32 %v521, %v2762
    %v3152 = vsub.f32 %v523, %v2763
    %v3153 = vsub.f32 %v526, %v2764
    %v3154 = vsub.f32 %v528, %v2765
    %v3155 = vsub.f32 %v531, %v2766
    %v3156 = vsub.f32 %v533, %v2767
    %v3157 = vsub.f32 %v536, %v2768
    %v3158 = vsub.f32 %v538, %v2769
    %v3159 = vsub.f32 %v541, %v2770
    %v3160 = vsub.f32 %v543, %v2771
    %v3161 = vsub.f32 %v546, %v2772
    %v3162 = vsub.f32 %v548, %v2773
    %v3163 = vsub.f32 %v551, %v2774
    %v3164 = vsub.f32 %v553, %v2775
    %v3165 = vsub.f32 %v556, %v2776
    %v3166 = vsub.f32 %v558, %v2777
    %v3167 = vsub.f32 %v561, %v2778
    %v3168 = vsub.f32 %v563, %v2779
    %v3169 = vsub.f32 %v566, %v2780
    %v3170 = vsub.f32 %v568, %v2781
    %v3171 = vsub.f32 %v571, %v2782
    %v3172 = vsub.f32 %v573, %v2783
    %v3173 = vsub.f32 %v576, %v2784
    %v3174 = vsub.f32 %v578, %v2785
    %v3175 = vsub.f32 %v581, %v2786
    %v3176 = vsub.f32 %v583, %v2787
    %v3177 = vsub.f32 %v586, %v2788
    %v3178 = vsub.f32 %v588, %v2789
    %v3179 = vmul.f32 %v3115, %v3051
    %v3180 = vmul.f32 %v3116, %v3052
    %v3181 = vmul.f32 %v3117, %v3053
    %v3182 = vmul.f32 %v3118, %v3054
    %v3183 = vmul.f32 %v3119, %v3055
    %v3184 = vmul.f32 %v3120, %v3056
    %v3185 = vmul.f32 %v3121, %v3057
    %v3186 = vmul.f32 %v3122, %v3058
    %v3187 = vmul.f32 %v3123, %v3059
    %v3188 = vmul.f32 %v3124, %v3060
    %v3189 = vmul.f32 %v3125, %v3061
    %v3190 = vmul.f32 %v3126, %v3062
    %v3191 = vmul.f32 %v3127, %v3063
    %v3192 = vmul.f32 %v3128, %v3064
    %v3193 = vmul.f32 %v3129, %v3065
    %v3194 = vmul.f32 %v3130, %v3066
    %v3195 = vmul.f32 %v3131, %v3067
    %v3196 = vmul.f32 %v3132, %v3068
    %v3197 = vmul.f32 %v3133, %v3069
    %v3198 = vmul.f32 %v3134, %v3070
    %v3199 = vmul.f32 %v3135, %v3071
    %v3200 = vmul.f32 %v3136, %v3072
    %v3201 = vmul.f32 %v3137, %v3073
    %v3202 = vmul.f32 %v3138, %v3074
    %v3203 = vmul.f32 %v3139, %v3075
    %v3204 = vmul.f32 %v3140, %v3076
    %v3205 = vmul.f32 %v3141, %v3077
    %v3206 = vmul.f32 %v3142, %v3078
    %v3207 = vmul.f32 %v3143, %v3079
    %v3208 = vmul.f32 %v3144, %v3080
    %v3209 = vmul.f32 %v3145, %v3081
    %v3210 = vmul.f32 %v3146, %v3082
    %v3211 = vmul.f32 %v3147, %v3083
    %v3212 = vmul.f32 %v3148, %v3084
    %v3213 = vmul.f32 %v3149, %v3085
    %v3214 = vmul.f32 %v3150, %v3086
    %v3215 = vmul.f32 %v3151, %v3087
    %v3216 = vmul.f32 %v3152, %v3088
    %v3217 = vmul.f32 %v3153, %v3089
    %v3218 = vmul.f32 %v3154, %v3090
    %v3219 = vmul.f32 %v3155, %v3091
    %v3220 = vmul.f32 %v3156, %v3092
    %v3221 = vmul.f32 %v3157, %v3093
    %v3222 = vmul.f32 %v3158, %v3094
    %v3223 = vmul.f32 %v3159, %v3095
    %v3224 = vmul.f32 %v3160, %v3096
    %v3225 = vmul.f32 %v3161, %v3097
    %v3226 = vmul.f32 %v3162, %v3098
    %v3227 = vmul.f32 %v3163, %v3099
    %v3228 = vmul.f32 %v3164, %v3100
    %v3229 = vmul.f32 %v3165, %v3101
    %v3230 = vmul.f32 %v3166, %v3102
    %v3231 = vmul.f32 %v3167, %v3103
    %v3232 = vmul.f32 %v3168, %v3104
    %v3233 = vmul.f32 %v3169, %v3105
    %v3234 = vmul.f32 %v3170, %v3106
    %v3235 = vmul.f32 %v3171, %v3107
    %v3236 = vmul.f32 %v3172, %v3108
    %v3237 = vmul.f32 %v3173, %v3109
    %v3238 = vmul.f32 %v3174, %v3110
    %v3239 = vmul.f32 %v3175, %v3111
    %v3240 = vmul.f32 %v3176, %v3112
    %v3241 = vmul.f32 %v3177, %v3113
    %v3242 = vmul.f32 %v3178, %v3114
    %v3243 = vmul.f32 %v3179, %v3179
    %v3244 = vmul.f32 %v3180, %v3180
    %v3245 = vmul.f32 %v3181, %v3181
    %v3246 = vmul.f32 %v3182, %v3182
    %v3247 = vmul.f32 %v3183, %v3183
    %v3248 = vmul.f32 %v3184, %v3184
    %v3249 = vmul.f32 %v3185, %v3185
    %v3250 = vmul.f32 %v3186, %v3186
    %v3251 = vmul.f32 %v3187, %v3187
    %v3252 = vmul.f32 %v3188, %v3188
    %v3253 = vmul.f32 %v3189, %v3189
    %v3254 = vmul.f32 %v3190, %v3190
    %v3255 = vmul.f32 %v3191, %v3191
    %v3256 = vmul.f32 %v3192, %v3192
    %v3257 = vmul.f32 %v3193, %v3193
    %v3258 = vmul.f32 %v3194, %v3194
    %v3259 = vmul.f32 %v3195, %v3195
    %v3260 = vmul.f32 %v3196, %v3196
    %v3261 = vmul.f32 %v3197, %v3197
    %v3262 = vmul.f32 %v3198, %v3198
    %v3263 = vmul.f32 %v3199, %v3199
    %v3264 = vmul.f32 %v3200, %v3200
    %v3265 = vmul.f32 %v3201, %v3201
    %v3266 = vmul.f32 %v3202, %v3202
    %v3267 = vmul.f32 %v3203, %v3203
    %v3268 = vmul.f32 %v3204, %v3204
    %v3269 = vmul.f32 %v3205, %v3205
    %v3270 = vmul.f32 %v3206, %v3206
    %v3271 = vmul.f32 %v3207, %v3207
    %v3272 = vmul.f32 %v3208, %v3208
    %v3273 = vmul.f32 %v3209, %v3209
    %v3274 = vmul.f32 %v3210, %v3210
    %v3275 = vmul.f32 %v3211, %v3211
    %v3276 = vmul.f32 %v3212, %v3212
    %v3277 = vmul.f32 %v3213, %v3213
    %v3278 = vmul.f32 %v3214, %v3214
    %v3279 = vmul.f32 %v3215, %v3215
    %v3280 = vmul.f32 %v3216, %v3216
    %v3281 = vmul.f32 %v3217, %v3217
    %v3282 = vmul.f32 %v3218, %v3218
    %v3283 = vmul.f32 %v3219, %v3219
    %v3284 = vmul.f32 %v3220, %v3220
    %v3285 = vmul.f32 %v3221, %v3221
    %v3286 = vmul.f32 %v3222, %v3222
    %v3287 = vmul.f32 %v3223, %v3223
    %v3288 = vmul.f32 %v3224, %v3224
    %v3289 = vmul.f32 %v3225, %v3225
    %v3290 = vmul.f32 %v3226, %v3226
    %v3291 = vmul.f32 %v3227, %v3227
    %v3292 = vmul.f32 %v3228, %v3228
    %v3293 = vmul.f32 %v3229, %v3229
    %v3294 = vmul.f32 %v3230, %v3230
    %v3295 = vmul.f32 %v3231, %v3231
    %v3296 = vmul.f32 %v3232, %v3232
    %v3297 = vmul.f32 %v3233, %v3233
    %v3298 = vmul.f32 %v3234, %v3234
    %v3299 = vmul.f32 %v3235, %v3235
    %v3300 = vmul.f32 %v3236, %v3236
    %v3301 = vmul.f32 %v3237, %v3237
    %v3302 = vmul.f32 %v3238, %v3238
    %v3303 = vmul.f32 %v3239, %v3239
    %v3304 = vmul.f32 %v3240, %v3240
    %v3305 = vmul.f32 %v3241, %v3241
    %v3306 = vmul.f32 %v3242, %v3242
    %v3307 = vadd.f32 %v3243, %v3244
    %v3308 = vadd.f32 %v3307, %v3245
    %v3309 = vadd.f32 %v3308, %v3246
    %v3310 = vadd.f32 %v3309, %v3247
    %v3311 = vadd.f32 %v3310, %v3248
    %v3312 = vadd.f32 %v3311, %v3249
    %v3313 = vadd.f32 %v3312, %v3250
    %v3314 = vadd.f32 %v3313, %v3251
    %v3315 = vadd.f32 %v3314, %v3252
    %v3316 = vadd.f32 %v3315, %v3253
    %v3317 = vadd.f32 %v3316, %v3254
    %v3318 = vadd.f32 %v3317, %v3255
    %v3319 = vadd.f32 %v3318, %v3256
    %v3320 = vadd.f32 %v3319, %v3257
    %v3321 = vadd.f32 %v3320, %v3258
    %v3322 = vadd.f32 %v3321, %v3259
    %v3323 = vadd.f32 %v3322, %v3260
    %v3324 = vadd.f32 %v3323, %v3261
    %v3325 = vadd.f32 %v3324, %v3262
    %v3326 = vadd.f32 %v3325, %v3263
    %v3327 = vadd.f32 %v3326, %v3264
    %v3328 = vadd.f32 %v3327, %v3265
    %v3329 = vadd.f32 %v3328, %v3266
    %v3330 = vadd.f32 %v3329, %v3267
    %v3331 = vadd.f32 %v3330, %v3268
    %v3332 = vadd.f32 %v3331, %v3269
    %v3333 = vadd.f32 %v3332, %v3270
    %v3334 = vadd.f32 %v3333, %v3271
    %v3335 = vadd.f32 %v3334, %v3272
    %v3336 = vadd.f32 %v3335, %v3273
    %v3337 = vadd.f32 %v3336, %v3274
    %v3338 = vadd.f32 %v3337, %v3275
    %v3339 = vadd.f32 %v3338, %v3276
    %v3340 = vadd.f32 %v3339, %v3277
    %v3341 = vadd.f32 %v3340, %v3278
    %v3342 = vadd.f32 %v3341, %v3279
    %v3343 = vadd.f32 %v3342, %v3280
    %v3344 = vadd.f32 %v3343, %v3281
    %v3345 = vadd.f32 %v3344, %v3282
    %v3346 = vadd.f32 %v3345, %v3283
    %v3347 = vadd.f32 %v3346, %v3284
    %v3348 = vadd.f32 %v3347, %v3285
    %v3349 = vadd.f32 %v3348, %v3286
    %v3350 = vadd.f32 %v3349, %v3287
    %v3351 = vadd.f32 %v3350, %v3288
    %v3352 = vadd.f32 %v3351, %v3289
    %v3353 = vadd.f32 %v3352, %v3290
    %v3354 = vadd.f32 %v3353, %v3291
    %v3355 = vadd.f32 %v3354, %v3292
    %v3356 = vadd.f32 %v3355, %v3293
    %v3357 = vadd.f32 %v3356, %v3294
    %v3358 = vadd.f32 %v3357, %v3295
    %v3359 = vadd.f32 %v3358, %v3296
    %v3360 = vadd.f32 %v3359, %v3297
    %v3361 = vadd.f32 %v3360, %v3298
    %v3362 = vadd.f32 %v3361, %v3299
    %v3363 = vadd.f32 %v3362, %v3300
    %v3364 = vadd.f32 %v3363, %v3301
    %v3365 = vadd.f32 %v3364, %v3302
    %v3366 = vadd.f32 %v3365, %v3303
    %v3367 = vadd.f32 %v3366, %v3304
    %v3368 = vadd.f32 %v3367, %v3305
    %v3369 = vadd.f32 %v3368, %v3306
    %3370 = vadd.xlane.f32.xlu0 %v3369
    %v3371 = vpop.xlane.xlu0 %3370
    %v3372 = vrot.slane %v3371, 4
    %v3373 = vadd.f32 %v3371, %v3372
    %v3374 = vrot.slane %v3373, 2
    %v3375 = vadd.f32 %v3373, %v3374
    %v3376 = vrot.slane %v3375, 1
    %v3377 = vadd.f32 %v3375, %v3376
    %s3378 = vtos %v3377
    %s3379 = scalar_lea.smem [#allocation13], 0
    %3380 = sst [smem:[%s3379]] %s3378
    %v3381 = vpack.c.bf16 %v2727, %v2726
    %v3382 = vpack.c.bf16 %v2729, %v2728
    %v3383 = vpack.c.bf16 %v2731, %v2730
    %v3384 = vpack.c.bf16 %v2733, %v2732
    %v3385 = vpack.c.bf16 %v2735, %v2734
    %v3386 = vpack.c.bf16 %v2737, %v2736
    %v3387 = vpack.c.bf16 %v2739, %v2738
    %v3388 = vpack.c.bf16 %v2741, %v2740
    %v3389 = vpack.c.bf16 %v2743, %v2742
    %v3390 = vpack.c.bf16 %v2745, %v2744
    %v3391 = vpack.c.bf16 %v2747, %v2746
    %v3392 = vpack.c.bf16 %v2749, %v2748
    %v3393 = vpack.c.bf16 %v2751, %v2750
    %v3394 = vpack.c.bf16 %v2753, %v2752
    %v3395 = vpack.c.bf16 %v2755, %v2754
    %v3396 = vpack.c.bf16 %v2757, %v2756
    %v3397 = vpack.c.bf16 %v2759, %v2758
    %v3398 = vpack.c.bf16 %v2761, %v2760
    %v3399 = vpack.c.bf16 %v2763, %v2762
    %v3400 = vpack.c.bf16 %v2765, %v2764
    %v3401 = vpack.c.bf16 %v2767, %v2766
    %v3402 = vpack.c.bf16 %v2769, %v2768
    %v3403 = vpack.c.bf16 %v2771, %v2770
    %v3404 = vpack.c.bf16 %v2773, %v2772
    %v3405 = vpack.c.bf16 %v2775, %v2774
    %v3406 = vpack.c.bf16 %v2777, %v2776
    %v3407 = vpack.c.bf16 %v2779, %v2778
    %v3408 = vpack.c.bf16 %v2781, %v2780
    %v3409 = vpack.c.bf16 %v2783, %v2782
    %v3410 = vpack.c.bf16 %v2785, %v2784
    %v3411 = vpack.c.bf16 %v2787, %v2786
    %v3412 = vpack.c.bf16 %v2789, %v2788
    %v3413 = vld [vmem:[#allocation10] sm:$0xf]
    %v3414 = vld [vmem:[#allocation10 + $0x4] sm:$0xf]
    %v3415 = vld [vmem:[#allocation10 + $0x8] sm:$0xf]
    %v3416 = vld [vmem:[#allocation10 + $0xc] sm:$0xf]
    %v3417 = vld [vmem:[#allocation10 + $0x10] sm:$0xf]
    %v3418 = vld [vmem:[#allocation10 + $0x14] sm:$0xf]
    %v3419 = vld [vmem:[#allocation10 + $0x18] sm:$0xf]
    %v3420 = vld [vmem:[#allocation10 + $0x1c] sm:$0xf]
    %v3421 = vld [vmem:[#allocation10 + $0x20] sm:$0xf]
    %v3422 = vld [vmem:[#allocation10 + $0x24] sm:$0xf]
    %v3423 = vld [vmem:[#allocation10 + $0x28] sm:$0xf]
    %v3424 = vld [vmem:[#allocation10 + $0x2c] sm:$0xf]
    %v3425 = vld [vmem:[#allocation10 + $0x30] sm:$0xf]
    %v3426 = vld [vmem:[#allocation10 + $0x34] sm:$0xf]
    %v3427 = vld [vmem:[#allocation10 + $0x38] sm:$0xf]
    %v3428 = vld [vmem:[#allocation10 + $0x3c] sm:$0xf]
    %v3429 = vld [vmem:[%s7] sm:$0x1]
    %v3431 = vperm.slane %v3429, 0
    %v3449 = vunpack.c.l.b16 %v3413
    %v3450 = vunpack.c.l.b16 %v3414
    %v3451 = vunpack.c.l.b16 %v3415
    %v3452 = vunpack.c.l.b16 %v3416
    %v3453 = vunpack.c.l.b16 %v3417
    %v3454 = vunpack.c.l.b16 %v3418
    %v3455 = vunpack.c.l.b16 %v3419
    %v3456 = vunpack.c.l.b16 %v3420
    %v3457 = vunpack.c.l.b16 %v3421
    %v3458 = vunpack.c.l.b16 %v3422
    %v3459 = vunpack.c.l.b16 %v3423
    %v3460 = vunpack.c.l.b16 %v3424
    %v3461 = vunpack.c.l.b16 %v3425
    %v3462 = vunpack.c.l.b16 %v3426
    %v3463 = vunpack.c.l.b16 %v3427
    %v3464 = vunpack.c.l.b16 %v3428
    %v3465 = vpack.c.b16 %v3450, %v3449
    %v3466 = vpack.c.b16 %v3452, %v3451
    %v3467 = vpack.c.b16 %v3454, %v3453
    %v3468 = vpack.c.b16 %v3456, %v3455
    %v3469 = vpack.c.b16 %v3458, %v3457
    %v3470 = vpack.c.b16 %v3460, %v3459
    %v3471 = vpack.c.b16 %v3462, %v3461
    %v3472 = vpack.c.b16 %v3464, %v3463
    %3481 = vmatpush.bf16.msra.mxu0 %v3472
    %3482 = vmatpush.bf16.msra.mxu0 %v3471
    %3483 = vmatpush.bf16.msra.mxu0 %v3470
    %3484 = vmatpush.bf16.msra.mxu0 %v3469
    %3485 = vmatpush.bf16.msra.mxu0 %v3468
    %3486 = vmatpush.bf16.msra.mxu0 %v3467
    %3487 = vmatpush.bf16.msra.mxu0 %v3466
    %3488 = vmatpush.bf16.msra.mxu0 %v3465
    %3489 = vmatmul.bf16.gmra.mxu0 %v3381
    %v3490 = vpop.f32.mrf.mxu0
    %v3491 = vadd.f32 %v3431, %v3490
    %v3492 = vpop.f32.mrf.mxu0
    %v3493 = vadd.f32 %v3431, %v3492
    %3494 = vmatmul.bf16.gmra.mxu0 %v3382
    %v3495 = vpop.f32.mrf.mxu0
    %v3496 = vadd.f32 %v3431, %v3495
    %v3497 = vpop.f32.mrf.mxu0
    %v3498 = vadd.f32 %v3431, %v3497
    %3499 = vmatmul.bf16.gmra.mxu0 %v3383
    %v3500 = vpop.f32.mrf.mxu0
    %v3501 = vadd.f32 %v3431, %v3500
    %v3502 = vpop.f32.mrf.mxu0
    %v3503 = vadd.f32 %v3431, %v3502
    %3504 = vmatmul.bf16.gmra.mxu0 %v3384
    %v3505 = vpop.f32.mrf.mxu0
    %v3506 = vadd.f32 %v3431, %v3505
    %v3507 = vpop.f32.mrf.mxu0
    %v3508 = vadd.f32 %v3431, %v3507
    %3509 = vmatmul.bf16.gmra.mxu0 %v3385
    %v3510 = vpop.f32.mrf.mxu0
    %v3511 = vadd.f32 %v3431, %v3510
    %v3512 = vpop.f32.mrf.mxu0
    %v3513 = vadd.f32 %v3431, %v3512
    %3514 = vmatmul.bf16.gmra.mxu0 %v3386
    %v3515 = vpop.f32.mrf.mxu0
    %v3516 = vadd.f32 %v3431, %v3515
    %v3517 = vpop.f32.mrf.mxu0
    %v3518 = vadd.f32 %v3431, %v3517
    %3519 = vmatmul.bf16.gmra.mxu0 %v3387
    %v3520 = vpop.f32.mrf.mxu0
    %v3521 = vadd.f32 %v3431, %v3520
    %v3522 = vpop.f32.mrf.mxu0
    %v3523 = vadd.f32 %v3431, %v3522
    %3524 = vmatmul.bf16.gmra.mxu0 %v3388
    %v3525 = vpop.f32.mrf.mxu0
    %v3526 = vadd.f32 %v3431, %v3525
    %v3527 = vpop.f32.mrf.mxu0
    %v3528 = vadd.f32 %v3431, %v3527
    %3529 = vmatmul.bf16.gmra.mxu0 %v3389
    %v3530 = vpop.f32.mrf.mxu0
    %v3531 = vadd.f32 %v3431, %v3530
    %v3532 = vpop.f32.mrf.mxu0
    %v3533 = vadd.f32 %v3431, %v3532
    %3534 = vmatmul.bf16.gmra.mxu0 %v3390
    %v3535 = vpop.f32.mrf.mxu0
    %v3536 = vadd.f32 %v3431, %v3535
    %v3537 = vpop.f32.mrf.mxu0
    %v3538 = vadd.f32 %v3431, %v3537
    %3539 = vmatmul.bf16.gmra.mxu0 %v3391
    %v3540 = vpop.f32.mrf.mxu0
    %v3541 = vadd.f32 %v3431, %v3540
    %v3542 = vpop.f32.mrf.mxu0
    %v3543 = vadd.f32 %v3431, %v3542
    %3544 = vmatmul.bf16.gmra.mxu0 %v3392
    %v3545 = vpop.f32.mrf.mxu0
    %v3546 = vadd.f32 %v3431, %v3545
    %v3547 = vpop.f32.mrf.mxu0
    %v3548 = vadd.f32 %v3431, %v3547
    %3549 = vmatmul.bf16.gmra.mxu0 %v3393
    %v3550 = vpop.f32.mrf.mxu0
    %v3551 = vadd.f32 %v3431, %v3550
    %v3552 = vpop.f32.mrf.mxu0
    %v3553 = vadd.f32 %v3431, %v3552
    %3554 = vmatmul.bf16.gmra.mxu0 %v3394
    %v3555 = vpop.f32.mrf.mxu0
    %v3556 = vadd.f32 %v3431, %v3555
    %v3557 = vpop.f32.mrf.mxu0
    %v3558 = vadd.f32 %v3431, %v3557
    %3559 = vmatmul.bf16.gmra.mxu0 %v3395
    %v3560 = vpop.f32.mrf.mxu0
    %v3561 = vadd.f32 %v3431, %v3560
    %v3562 = vpop.f32.mrf.mxu0
    %v3563 = vadd.f32 %v3431, %v3562
    %3564 = vmatmul.bf16.gmra.mxu0 %v3396
    %v3565 = vpop.f32.mrf.mxu0
    %v3566 = vadd.f32 %v3431, %v3565
    %v3567 = vpop.f32.mrf.mxu0
    %v3568 = vadd.f32 %v3431, %v3567
    %3569 = vmatmul.bf16.gmra.mxu0 %v3397
    %v3570 = vpop.f32.mrf.mxu0
    %v3571 = vadd.f32 %v3431, %v3570
    %v3572 = vpop.f32.mrf.mxu0
    %v3573 = vadd.f32 %v3431, %v3572
    %3574 = vmatmul.bf16.gmra.mxu0 %v3398
    %v3575 = vpop.f32.mrf.mxu0
    %v3576 = vadd.f32 %v3431, %v3575
    %v3577 = vpop.f32.mrf.mxu0
    %v3578 = vadd.f32 %v3431, %v3577
    %3579 = vmatmul.bf16.gmra.mxu0 %v3399
    %v3580 = vpop.f32.mrf.mxu0
    %v3581 = vadd.f32 %v3431, %v3580
    %v3582 = vpop.f32.mrf.mxu0
    %v3583 = vadd.f32 %v3431, %v3582
    %3584 = vmatmul.bf16.gmra.mxu0 %v3400
    %v3585 = vpop.f32.mrf.mxu0
    %v3586 = vadd.f32 %v3431, %v3585
    %v3587 = vpop.f32.mrf.mxu0
    %v3588 = vadd.f32 %v3431, %v3587
    %3589 = vmatmul.bf16.gmra.mxu0 %v3401
    %v3590 = vpop.f32.mrf.mxu0
    %v3591 = vadd.f32 %v3431, %v3590
    %v3592 = vpop.f32.mrf.mxu0
    %v3593 = vadd.f32 %v3431, %v3592
    %3594 = vmatmul.bf16.gmra.mxu0 %v3402
    %v3595 = vpop.f32.mrf.mxu0
    %v3596 = vadd.f32 %v3431, %v3595
    %v3597 = vpop.f32.mrf.mxu0
    %v3598 = vadd.f32 %v3431, %v3597
    %3599 = vmatmul.bf16.gmra.mxu0 %v3403
    %v3600 = vpop.f32.mrf.mxu0
    %v3601 = vadd.f32 %v3431, %v3600
    %v3602 = vpop.f32.mrf.mxu0
    %v3603 = vadd.f32 %v3431, %v3602
    %3604 = vmatmul.bf16.gmra.mxu0 %v3404
    %v3605 = vpop.f32.mrf.mxu0
    %v3606 = vadd.f32 %v3431, %v3605
    %v3607 = vpop.f32.mrf.mxu0
    %v3608 = vadd.f32 %v3431, %v3607
    %3609 = vmatmul.bf16.gmra.mxu0 %v3405
    %v3610 = vpop.f32.mrf.mxu0
    %v3611 = vadd.f32 %v3431, %v3610
    %v3612 = vpop.f32.mrf.mxu0
    %v3613 = vadd.f32 %v3431, %v3612
    %3614 = vmatmul.bf16.gmra.mxu0 %v3406
    %v3615 = vpop.f32.mrf.mxu0
    %v3616 = vadd.f32 %v3431, %v3615
    %v3617 = vpop.f32.mrf.mxu0
    %v3618 = vadd.f32 %v3431, %v3617
    %3619 = vmatmul.bf16.gmra.mxu0 %v3407
    %v3620 = vpop.f32.mrf.mxu0
    %v3621 = vadd.f32 %v3431, %v3620
    %v3622 = vpop.f32.mrf.mxu0
    %v3623 = vadd.f32 %v3431, %v3622
    %3624 = vmatmul.bf16.gmra.mxu0 %v3408
    %v3625 = vpop.f32.mrf.mxu0
    %v3626 = vadd.f32 %v3431, %v3625
    %v3627 = vpop.f32.mrf.mxu0
    %v3628 = vadd.f32 %v3431, %v3627
    %3629 = vmatmul.bf16.gmra.mxu0 %v3409
    %v3630 = vpop.f32.mrf.mxu0
    %v3631 = vadd.f32 %v3431, %v3630
    %v3632 = vpop.f32.mrf.mxu0
    %v3633 = vadd.f32 %v3431, %v3632
    %3634 = vmatmul.bf16.gmra.mxu0 %v3410
    %v3635 = vpop.f32.mrf.mxu0
    %v3636 = vadd.f32 %v3431, %v3635
    %v3637 = vpop.f32.mrf.mxu0
    %v3638 = vadd.f32 %v3431, %v3637
    %3639 = vmatmul.bf16.gmra.mxu0 %v3411
    %v3640 = vpop.f32.mrf.mxu0
    %v3641 = vadd.f32 %v3431, %v3640
    %v3642 = vpop.f32.mrf.mxu0
    %v3643 = vadd.f32 %v3431, %v3642
    %3644 = vmatmul.bf16.gmra.mxu0 %v3412
    %v3645 = vpop.f32.mrf.mxu0
    %v3646 = vadd.f32 %v3431, %v3645
    %v3647 = vpop.f32.mrf.mxu0
    %v3648 = vadd.f32 %v3431, %v3647
    %3649 = vdwg.mxu0
    %3650 = vst [vmem:[#allocation12] sm:$0xff] %v3491
    %3651 = vst [vmem:[#allocation12 + $0x8] sm:$0xff] %v3493
    %3652 = vst [vmem:[#allocation12 + $0x10] sm:$0xff] %v3496
    %3653 = vst [vmem:[#allocation12 + $0x18] sm:$0xff] %v3498
    %3654 = vst [vmem:[#allocation12 + $0x20] sm:$0xff] %v3501
    %3655 = vst [vmem:[#allocation12 + $0x28] sm:$0xff] %v3503
    %3656 = vst [vmem:[#allocation12 + $0x30] sm:$0xff] %v3506
    %3657 = vst [vmem:[#allocation12 + $0x38] sm:$0xff] %v3508
    %3658 = vst [vmem:[#allocation12 + $0x40] sm:$0xff] %v3511
    %3659 = vst [vmem:[#allocation12 + $0x48] sm:$0xff] %v3513
    %3660 = vst [vmem:[#allocation12 + $0x50] sm:$0xff] %v3516
    %3661 = vst [vmem:[#allocation12 + $0x58] sm:$0xff] %v3518
    %3662 = vst [vmem:[#allocation12 + $0x60] sm:$0xff] %v3521
    %3663 = vst [vmem:[#allocation12 + $0x68] sm:$0xff] %v3523
    %3664 = vst [vmem:[#allocation12 + $0x70] sm:$0xff] %v3526
    %3665 = vst [vmem:[#allocation12 + $0x78] sm:$0xff] %v3528
    %3666 = vst [vmem:[#allocation12 + $0x80] sm:$0xff] %v3531
    %3667 = vst [vmem:[#allocation12 + $0x88] sm:$0xff] %v3533
    %3668 = vst [vmem:[#allocation12 + $0x90] sm:$0xff] %v3536
    %3669 = vst [vmem:[#allocation12 + $0x98] sm:$0xff] %v3538
    %3670 = vst [vmem:[#allocation12 + $0xa0] sm:$0xff] %v3541
    %3671 = vst [vmem:[#allocation12 + $0xa8] sm:$0xff] %v3543
    %3672 = vst [vmem:[#allocation12 + $0xb0] sm:$0xff] %v3546
    %3673 = vst [vmem:[#allocation12 + $0xb8] sm:$0xff] %v3548
    %3674 = vst [vmem:[#allocation12 + $0xc0] sm:$0xff] %v3551
    %3675 = vst [vmem:[#allocation12 + $0xc8] sm:$0xff] %v3553
    %3676 = vst [vmem:[#allocation12 + $0xd0] sm:$0xff] %v3556
    %3677 = vst [vmem:[#allocation12 + $0xd8] sm:$0xff] %v3558
    %3678 = vst [vmem:[#allocation12 + $0xe0] sm:$0xff] %v3561
    %3679 = vst [vmem:[#allocation12 + $0xe8] sm:$0xff] %v3563
    %3680 = vst [vmem:[#allocation12 + $0xf0] sm:$0xff] %v3566
    %3681 = vst [vmem:[#allocation12 + $0xf8] sm:$0xff] %v3568
    %3682 = vst [vmem:[#allocation12 + $0x100] sm:$0xff] %v3571
    %3683 = vst [vmem:[#allocation12 + $0x108] sm:$0xff] %v3573
    %3684 = vst [vmem:[#allocation12 + $0x110] sm:$0xff] %v3576
    %3685 = vst [vmem:[#allocation12 + $0x118] sm:$0xff] %v3578
    %3686 = vst [vmem:[#allocation12 + $0x120] sm:$0xff] %v3581
    %3687 = vst [vmem:[#allocation12 + $0x128] sm:$0xff] %v3583
    %3688 = vst [vmem:[#allocation12 + $0x130] sm:$0xff] %v3586
    %3689 = vst [vmem:[#allocation12 + $0x138] sm:$0xff] %v3588
    %3690 = vst [vmem:[#allocation12 + $0x140] sm:$0xff] %v3591
    %3691 = vst [vmem:[#allocation12 + $0x148] sm:$0xff] %v3593
    %3692 = vst [vmem:[#allocation12 + $0x150] sm:$0xff] %v3596
    %3693 = vst [vmem:[#allocation12 + $0x158] sm:$0xff] %v3598
    %3694 = vst [vmem:[#allocation12 + $0x160] sm:$0xff] %v3601
    %3695 = vst [vmem:[#allocation12 + $0x168] sm:$0xff] %v3603
    %3696 = vst [vmem:[#allocation12 + $0x170] sm:$0xff] %v3606
    %3697 = vst [vmem:[#allocation12 + $0x178] sm:$0xff] %v3608
    %3698 = vst [vmem:[#allocation12 + $0x180] sm:$0xff] %v3611
    %3699 = vst [vmem:[#allocation12 + $0x188] sm:$0xff] %v3613
    %3700 = vst [vmem:[#allocation12 + $0x190] sm:$0xff] %v3616
    %3701 = vst [vmem:[#allocation12 + $0x198] sm:$0xff] %v3618
    %3702 = vst [vmem:[#allocation12 + $0x1a0] sm:$0xff] %v3621
    %3703 = vst [vmem:[#allocation12 + $0x1a8] sm:$0xff] %v3623
    %3704 = vst [vmem:[#allocation12 + $0x1b0] sm:$0xff] %v3626
    %3705 = vst [vmem:[#allocation12 + $0x1b8] sm:$0xff] %v3628
    %3706 = vst [vmem:[#allocation12 + $0x1c0] sm:$0xff] %v3631
    %3707 = vst [vmem:[#allocation12 + $0x1c8] sm:$0xff] %v3633
    %3708 = vst [vmem:[#allocation12 + $0x1d0] sm:$0xff] %v3636
    %3709 = vst [vmem:[#allocation12 + $0x1d8] sm:$0xff] %v3638
    %3710 = vst [vmem:[#allocation12 + $0x1e0] sm:$0xff] %v3641
    %3711 = vst [vmem:[#allocation12 + $0x1e8] sm:$0xff] %v3643
    %3712 = vst [vmem:[#allocation12 + $0x1f0] sm:$0xff] %v3646
    %3713 = vst [vmem:[#allocation12 + $0x1f8] sm:$0xff] %v3648
    // Predicated region
    $region50: #{tpu_custom_call.1} parent=1 // pred_check
      _
    $region51: #{tpu_custom_call.1} parent=1 // pred_check_branch
      %3715 = sbr.rel (0) target = $region53
    $region52: #{tpu_custom_call.1} parent=1 // pred_region
      %3717 = vsyncadd [#allocation5], 0
      %s3718 = sshll.u32 [#allocation12], 4
      %s3719 = int_to_ptr.vmem [resolvable:$true] %s3718
      %s3720 = sshll.u32 %s8, 4
      %s3721 = int_to_ptr.hbm [resolvable:$true] %s3720
      %3726 = dma.vmem_to_hbm [thread:$0]  %s3719, 8192, %s3721, [#allocation5], 128, 128, 8
    $region53: #{tpu_custom_call.1} parent=1 // pred_fallthru
      _
    // Predicated region
    $region54: #{tpu_custom_call.1} parent=1 // pred_check
      _
    $region55: #{tpu_custom_call.1} parent=1 // pred_check_branch
      %3728 = sbr.rel (0) target = $region57
    $region56: #{tpu_custom_call.1} parent=1 // pred_region
      %3730 = vsyncadd [#allocation6], 0
      %s3732 = sshll.u32 %s9, 4
      %s3733 = int_to_ptr.hbm [resolvable:$true] %s3732
      %3735 = dma.smem_to_hbm [#allocation13], 16, %s3733, [#allocation6]
    $region57: #{tpu_custom_call.1} parent=1 // pred_fallthru
      _
    // Predicated region
    $region58: #{tpu_custom_call.1} parent=1 // pred_check
      _
    $region59: #{tpu_custom_call.1} parent=1 // pred_check_branch
      %3737 = sbr.rel (0) target = $region61
    $region60: #{tpu_custom_call.1} parent=1 // pred_region
      %3739 = dma.done [#allocation5], 8192
    $region61: #{tpu_custom_call.1} parent=1 // pred_fallthru
      _
    // Predicated region
    $region62: #{tpu_custom_call.1} parent=1 // pred_check
      _
    $region63: #{tpu_custom_call.1} parent=1 // pred_check_branch
      %3741 = sbr.rel (0) target = $region65
    $region64: #{tpu_custom_call.1} parent=1 // pred_region
      %3743 = dma.done [#allocation6], 16
    $region65: #{tpu_custom_call.1} parent=1 // pred_fallthru
      _
    %3744 = sfence
    %3745 = vsyncpa [#allocation4], 1
    %3746 = vsyncpa [#allocation8], 1
    %3747 = vsyncpa [#allocation11], 1
    %3748 = vsyncpa [#allocation5], 1
    %3749 = vsyncpa [#allocation6], 1

</llo_original>
